<compile_context>
chip_gen: v7x
topology: tpu7x:2x2x1
jax: 0.10.0
libtpu: 0.0.40
codegen_flags: <defaults>
</compile_context>

<pallas_src>
import math
import functools
import jax
import jax.numpy as jnp
from jax import lax
from jax.experimental import pallas as pl
from jax.experimental.pallas import tpu as pltpu


# ----------------------------- kernel -----------------------------------------


def _attention_cl_kernel(x_ref, wqkv_ref, bqkv_ref, wp_ref, bp_ref, o_ref, *,
                         block_b, num_heads, head_dim):
    # x_ref:    (Bt, N, C)  bf16
    # wqkv_ref: (C, 3C) bf16    bqkv_ref: (1, 3C) f32  (softmax scale folded into Q third)
    # wp_ref:   (C, C)  bf16    bp_ref:   (1, C)  f32
    # o_ref:    (Bt, N, C) f32
    C = num_heads * head_dim
    N = x_ref.shape[1]
    M = block_b * N

    # Fused QKV projection for all Bt windows at once: (Bt*N, C) x (C, 3C) -> (Bt*N, 3C).
    x2d = x_ref[...].reshape(M, C)                                   # free reshape
    qkv = jnp.dot(x2d, wqkv_ref[...], preferred_element_type=jnp.float32)
    qkv = qkv + bqkv_ref[...]                                        # f32 bias add
    qkv3 = qkv.reshape(block_b, N, 3 * C)                            # split leading dim

    wp = wp_ref[...]                                                 # (C, C) bf16
    acc = jnp.zeros((M, C), jnp.float32)                             # proj accumulator

    for h in range(num_heads):                                       # static, small
        lo = h * head_dim
        q = qkv3[:, :, lo:lo + head_dim].astype(jnp.bfloat16)              # (Bt,N,hd), scaled
        k = qkv3[:, :, C + lo:C + lo + head_dim].astype(jnp.bfloat16)      # (Bt,N,hd)
        v = qkv3[:, :, 2 * C + lo:2 * C + lo + head_dim].astype(jnp.bfloat16)

        # q @ k^T, heads handled one at a time, Bt as the batch dim (no XLU transpose).
        s = jnp.einsum("bnd,bmd->bnm", q, k,
                       preferred_element_type=jnp.float32)           # (Bt, N, N) f32

        # softmax along the last axis (f32; exact normalization)
        m = jnp.max(s, axis=-1, keepdims=True)
        e = jnp.exp(s - m)
        denom = jnp.sum(e, axis=-1, keepdims=True)
        p = (e * (1.0 / denom)).astype(jnp.bfloat16)

        head_out = jnp.einsum("bnm,bmd->bnd", p, v,
                              preferred_element_type=jnp.float32)    # (Bt, N, hd) f32

        # Fold this head's contribution through the output projection immediately.
        acc = acc + jnp.dot(head_out.reshape(M, head_dim).astype(jnp.bfloat16),
                            wp[lo:lo + head_dim, :],
                            preferred_element_type=jnp.float32)      # (Bt*N, C)

    out = acc + bp_ref[...]
    o_ref[...] = out.reshape(block_b, N, C).astype(o_ref.dtype)


# ----------------------------- param prep (one-time) ---------------------------


def prepare_attention_cl_params(params, head_dim=32):
    """One-time weight layout/dtype transform (do once at parameter creation)."""
    w_qkv = params["w_qkv"].astype(jnp.float32)     # (3C, C) torch nn.Linear: y = x @ W^T + b
    b_qkv = params["b_qkv"].astype(jnp.float32)     # (3C,)  ordered (3, num_heads, head_dim)
    w_proj = params["w_proj"].astype(jnp.float32)   # (C, C)
    b_proj = params["b_proj"].astype(jnp.float32)   # (C,)
    C = w_qkv.shape[1]
    scale = head_dim ** (-0.5)

    # Fold the softmax scale into the Q third of the fused weight / bias (in f32, then cast).
    scale_vec = jnp.concatenate([
        jnp.full((C,), scale, dtype=jnp.float32),
        jnp.ones((2 * C,), dtype=jnp.float32),
    ])
    return {
        "w_qkv_f": (w_qkv.T * scale_vec[None, :]).astype(jnp.bfloat16),   # (C, 3C) bf16
        "b_qkv_f": (b_qkv * scale_vec)[None, :].astype(jnp.float32),      # (1, 3C) f32
        "w_proj_t": w_proj.T.astype(jnp.bfloat16),                        # (C, C)  bf16
        "b_proj_r": b_proj[None, :].astype(jnp.float32),                  # (1, C)  f32
    }


# ----------------------------- wrapper -----------------------------------------


def _choose_block_batch(B, max_bt=8):
    """Largest Bt <= max_bt dividing B, preferring a grid length >= 2 (v7x has 2 TCs)."""
    candidates = [bt for bt in range(1, min(max_bt, B) + 1) if B % bt == 0]
    multi = [bt for bt in candidates if B // bt >= 2]
    return max(multi) if multi else max(candidates)


def attention_cl(x, prepared, head_dim=32, max_block_b=8):
    """x: [B, H, W, C] float32, channels-last. Returns [B, H, W, C] float32."""
    B, H, W, C = x.shape
    assert C % head_dim == 0
    num_heads = C // head_dim
    N = H * W
    Bt = _choose_block_batch(B, max_block_b)
    grid_b = B // Bt

    # bf16 input operand for the MXU (halves HBM read traffic); output stays f32.
    x_tok = x.reshape(B, N, C).astype(jnp.bfloat16)

    kernel = functools.partial(_attention_cl_kernel,
                               block_b=Bt, num_heads=num_heads, head_dim=head_dim)

    flops = B * (2 * N * C * 3 * C                      # fused QKV
                 + num_heads * 4 * N * N * head_dim     # q@k^T and p@v
                 + 2 * N * C * C)                       # output projection
    bytes_accessed = (B * N * C * 2                     # x (bf16)
                      + (C * 3 * C + C * C) * 2         # weights (bf16)
                      + (3 * C + C) * 4                 # biases (f32)
                      + B * N * C * 4)                  # output (f32)
    cost = pl.CostEstimate(flops=flops,
                           transcendentals=B * num_heads * N * N,
                           bytes_accessed=bytes_accessed)

    out = pl.pallas_call(
        kernel,
        out_shape=jax.ShapeDtypeStruct((B, N, C), jnp.float32),
        grid_spec=pltpu.PrefetchScalarGridSpec(
            num_scalar_prefetch=0,
            grid=(grid_b,),
            in_specs=[
                pl.BlockSpec((Bt, N, C), lambda b: (b, 0, 0)),
                pl.BlockSpec((C, 3 * C), lambda b: (0, 0)),
                pl.BlockSpec((1, 3 * C), lambda b: (0, 0)),
                pl.BlockSpec((C, C), lambda b: (0, 0)),
                pl.BlockSpec((1, C), lambda b: (0, 0)),
            ],
            out_specs=pl.BlockSpec((Bt, N, C), lambda b: (b, 0, 0)),
        ),
        compiler_params=pltpu.CompilerParams(
            dimension_semantics=("parallel",)),
        cost_estimate=cost,
    )(x_tok, prepared["w_qkv_f"], prepared["b_qkv_f"],
      prepared["w_proj_t"], prepared["b_proj_r"])

    return out.reshape(B, H, W, C)


# ----------------------------- reference (pure JAX, f32) -----------------------


def attention_cl_ref(x, params, head_dim=32):
    B, H, W, C = x.shape
    num_heads = C // head_dim
    N = H * W
    scale = head_dim ** (-0.5)
    xt = x.reshape(B, N, C)
    qkv = xt @ params["w_qkv"].T + params["b_qkv"]
    qkv = qkv.reshape(B, N, 3, num_heads, head_dim)
    qkv = jnp.transpose(qkv, (2, 0, 3, 1, 4))
    q, k, v = qkv[0], qkv[1], qkv[2]
    q = q * scale
    attn = jnp.einsum("bhnd,bhmd->bhnm", q, k)
    attn = jax.nn.softmax(attn, axis=-1)
    out = jnp.einsum("bhnm,bhmd->bhnd", attn, v)
    out = jnp.transpose(out, (0, 2, 1, 3)).reshape(B, N, C)
    out = out @ params["w_proj"].T + params["b_proj"]
    return out.reshape(B, H, W, C)


# ----------------------------- main --------------------------------------------


if __name__ == "__main__":
    key = jax.random.PRNGKey(0)
    # B = 8 windows exercises the multi-window-per-step path (Bt=4, grid=2).
    B, Hs, Ws, C = 8, 8, 8, 64
    head_dim = 32

    kx, k1, k2, k3, k4 = jax.random.split(key, 5)
    x = jax.random.normal(kx, (B, Hs, Ws, C), dtype=jnp.float32)

    # Deterministic parameter init (torch nn.Linear-style uniform bounds).
    bound = 1.0 / math.sqrt(C)
    params = {
        "w_qkv": jax.random.uniform(k1, (3 * C, C), jnp.float32, -bound, bound),
        "b_qkv": jax.random.uniform(k2, (3 * C,), jnp.float32, -bound, bound),
        "w_proj": jax.random.uniform(k3, (C, C), jnp.float32, -bound, bound),
        "b_proj": jax.random.uniform(k4, (C,), jnp.float32, -bound, bound),
    }

    # One-time layout/dtype transform (folded scale, fused bf16 QKV slab, transposed proj).
    prepared = jax.tree.map(jax.block_until_ready,
                            prepare_attention_cl_params(params, head_dim=head_dim))

    out = attention_cl(x, prepared, head_dim=head_dim)
    out = jax.block_until_ready(out)

    ref = attention_cl_ref(x, params, head_dim=head_dim)
    assert out.shape == (B, Hs, Ws, C)
    # bf16 MXU operands (weights + activations) introduce ~1e-2-level absolute error vs
    # the pure-f32 reference; softmax itself is exact f32.
    max_err = float(jnp.max(jnp.abs(out - ref)))
    assert jnp.allclose(out, ref, atol=2.5e-2, rtol=2.5e-2), max_err

    print("KERNEL_OK")
</pallas_src>

<mosaic_0001>
module attributes {stable_mosaic.version = 11 : i64} {
  func.func @_attention_cl_kernel(%arg0: i32, %arg1: memref<4x64x64xbf16, #tpu.memory_space<vmem>>, %arg2: memref<64x192xbf16, #tpu.memory_space<vmem>>, %arg3: memref<1x192xf32, #tpu.memory_space<vmem>>, %arg4: memref<64x64xbf16, #tpu.memory_space<vmem>>, %arg5: memref<1x64xf32, #tpu.memory_space<vmem>>, %arg6: memref<4x64x64xf32, #tpu.memory_space<vmem>>) attributes {dimension_semantics = [#tpu.dimension_semantics<parallel>], iteration_bounds = array<i64: 2>, scalar_prefetch = 0 : i64, scratch_operands = 0 : i64, tpu.core_type = #tpu.core_type<tc>, window_params = [{transform_indices = @transform_0, window_bounds = array<i64: 4, 64, 64>}, {pipeline_mode = #tpu.pipeline_mode<synchronous>, transform_indices = @transform_1, window_bounds = array<i64: 64, 192>}, {pipeline_mode = #tpu.pipeline_mode<synchronous>, transform_indices = @transform_2, window_bounds = array<i64: 1, 192>}, {pipeline_mode = #tpu.pipeline_mode<synchronous>, transform_indices = @transform_3, window_bounds = array<i64: 64, 64>}, {pipeline_mode = #tpu.pipeline_mode<synchronous>, transform_indices = @transform_4, window_bounds = array<i64: 1, 64>}, {transform_indices = @transform_5, window_bounds = array<i64: 4, 64, 64>}]} {
    %c0 = arith.constant 0 : index
    %c0_0 = arith.constant 0 : index
    %c0_1 = arith.constant 0 : index
    %0 = vector.load %arg1[%c0, %c0_0, %c0_1] : memref<4x64x64xbf16, #tpu.memory_space<vmem>>, vector<4x64x64xbf16>
    %1 = vector.shape_cast %0 : vector<4x64x64xbf16> to vector<256x64xbf16>
    %c0_2 = arith.constant 0 : index
    %c0_3 = arith.constant 0 : index
    %2 = vector.load %arg2[%c0_2, %c0_3] : memref<64x192xbf16, #tpu.memory_space<vmem>>, vector<64x192xbf16>
    %cst = arith.constant dense<0.000000e+00> : vector<256x192xf32>
    %3 = tpu.matmul %1, %2, %cst {dimension_numbers = #tpu.dot_dimension_numbers<[1], [0], [0], [1], [0, 0, 1, 1], [], []>} : vector<256x64xbf16>, vector<64x192xbf16>, vector<256x192xf32> -> vector<256x192xf32>
    %c0_4 = arith.constant 0 : index
    %c0_5 = arith.constant 0 : index
    %4 = vector.load %arg3[%c0_4, %c0_5] : memref<1x192xf32, #tpu.memory_space<vmem>>, vector<1x192xf32>
    %5 = vector.broadcast %4 : vector<1x192xf32> to vector<256x192xf32>
    %6 = arith.addf %3, %5 : vector<256x192xf32>
    %7 = vector.shape_cast %6 : vector<256x192xf32> to vector<4x64x192xf32>
    %c0_6 = arith.constant 0 : index
    %c0_7 = arith.constant 0 : index
    %8 = vector.load %arg4[%c0_6, %c0_7] : memref<64x64xbf16, #tpu.memory_space<vmem>>, vector<64x64xbf16>
    %cst_8 = arith.constant 0.000000e+00 : f32
    %9 = vector.broadcast %cst_8 : f32 to vector<256x64xf32>
    %10 = vector.extract_strided_slice %7 {offsets = [0, 0, 0], sizes = [4, 64, 32], strides = [1, 1, 1]} : vector<4x64x192xf32> to vector<4x64x32xf32>
    %11 = arith.truncf %10 : vector<4x64x32xf32> to vector<4x64x32xbf16>
    %12 = vector.extract_strided_slice %7 {offsets = [0, 0, 64], sizes = [4, 64, 32], strides = [1, 1, 1]} : vector<4x64x192xf32> to vector<4x64x32xf32>
    %13 = arith.truncf %12 : vector<4x64x32xf32> to vector<4x64x32xbf16>
    %14 = vector.extract_strided_slice %7 {offsets = [0, 0, 128], sizes = [4, 64, 32], strides = [1, 1, 1]} : vector<4x64x192xf32> to vector<4x64x32xf32>
    %15 = arith.truncf %14 : vector<4x64x32xf32> to vector<4x64x32xbf16>
    "tpu.trace_start"() <{level = 10 : i32, message = "bnd,bmd->bnm"}> : () -> ()
    %cst_9 = arith.constant dense<0.000000e+00> : vector<4x64x64xf32>
    %16 = tpu.matmul %11, %13, %cst_9 {dimension_numbers = #tpu.dot_dimension_numbers<[2], [2], [1], [1], [0, 0, 0, 1, 1, 1], [0], [0]>} : vector<4x64x32xbf16>, vector<4x64x32xbf16>, vector<4x64x64xf32> -> vector<4x64x64xf32>
    "tpu.trace_stop"() : () -> ()
    %cst_10 = arith.constant dense<0xFF800000> : vector<4x64xf32>
    %17 = vector.multi_reduction <maximumf>, %16, %cst_10 [2] : vector<4x64x64xf32> to vector<4x64xf32>
    %18 = vector.shape_cast %17 : vector<4x64xf32> to vector<4x64x1xf32>
    %19 = vector.broadcast %18 : vector<4x64x1xf32> to vector<4x64x64xf32>
    %20 = arith.subf %16, %19 : vector<4x64x64xf32>
    %21 = math.exp %20 : vector<4x64x64xf32>
    %cst_11 = arith.constant dense<0.000000e+00> : vector<4x64xf32>
    %22 = vector.multi_reduction <add>, %21, %cst_11 [2] : vector<4x64x64xf32> to vector<4x64xf32>
    %23 = vector.shape_cast %22 : vector<4x64xf32> to vector<4x64x1xf32>
    %cst_12 = arith.constant 1.000000e+00 : f32
    %24 = vector.broadcast %cst_12 : f32 to vector<4x64x1xf32>
    %25 = arith.divf %24, %23 : vector<4x64x1xf32>
    %26 = vector.broadcast %25 : vector<4x64x1xf32> to vector<4x64x64xf32>
    %27 = arith.mulf %21, %26 : vector<4x64x64xf32>
    %28 = arith.truncf %27 : vector<4x64x64xf32> to vector<4x64x64xbf16>
    "tpu.trace_start"() <{level = 10 : i32, message = "bnm,bmd->bnd"}> : () -> ()
    %cst_13 = arith.constant dense<0.000000e+00> : vector<4x64x32xf32>
    %29 = tpu.matmul %28, %15, %cst_13 {dimension_numbers = #tpu.dot_dimension_numbers<[2], [1], [1], [2], [0, 0, 0, 1, 1, 2], [0], [0]>} : vector<4x64x64xbf16>, vector<4x64x32xbf16>, vector<4x64x32xf32> -> vector<4x64x32xf32>
    "tpu.trace_stop"() : () -> ()
    %30 = vector.shape_cast %29 : vector<4x64x32xf32> to vector<256x32xf32>
    %31 = arith.truncf %30 : vector<256x32xf32> to vector<256x32xbf16>
    %32 = vector.extract_strided_slice %8 {offsets = [0, 0], sizes = [32, 64], strides = [1, 1]} : vector<64x64xbf16> to vector<32x64xbf16>
    %cst_14 = arith.constant dense<0.000000e+00> : vector<256x64xf32>
    %33 = tpu.matmul %31, %32, %cst_14 {dimension_numbers = #tpu.dot_dimension_numbers<[1], [0], [0], [1], [0, 0, 1, 1], [], []>} : vector<256x32xbf16>, vector<32x64xbf16>, vector<256x64xf32> -> vector<256x64xf32>
    %34 = arith.addf %9, %33 : vector<256x64xf32>
    %35 = vector.extract_strided_slice %7 {offsets = [0, 0, 32], sizes = [4, 64, 32], strides = [1, 1, 1]} : vector<4x64x192xf32> to vector<4x64x32xf32>
    %36 = arith.truncf %35 : vector<4x64x32xf32> to vector<4x64x32xbf16>
    %37 = vector.extract_strided_slice %7 {offsets = [0, 0, 96], sizes = [4, 64, 32], strides = [1, 1, 1]} : vector<4x64x192xf32> to vector<4x64x32xf32>
    %38 = arith.truncf %37 : vector<4x64x32xf32> to vector<4x64x32xbf16>
    %39 = vector.extract_strided_slice %7 {offsets = [0, 0, 160], sizes = [4, 64, 32], strides = [1, 1, 1]} : vector<4x64x192xf32> to vector<4x64x32xf32>
    %40 = arith.truncf %39 : vector<4x64x32xf32> to vector<4x64x32xbf16>
    "tpu.trace_start"() <{level = 10 : i32, message = "bnd,bmd->bnm"}> : () -> ()
    %cst_15 = arith.constant dense<0.000000e+00> : vector<4x64x64xf32>
    %41 = tpu.matmul %36, %38, %cst_15 {dimension_numbers = #tpu.dot_dimension_numbers<[2], [2], [1], [1], [0, 0, 0, 1, 1, 1], [0], [0]>} : vector<4x64x32xbf16>, vector<4x64x32xbf16>, vector<4x64x64xf32> -> vector<4x64x64xf32>
    "tpu.trace_stop"() : () -> ()
    %cst_16 = arith.constant dense<0xFF800000> : vector<4x64xf32>
    %42 = vector.multi_reduction <maximumf>, %41, %cst_16 [2] : vector<4x64x64xf32> to vector<4x64xf32>
    %43 = vector.shape_cast %42 : vector<4x64xf32> to vector<4x64x1xf32>
    %44 = vector.broadcast %43 : vector<4x64x1xf32> to vector<4x64x64xf32>
    %45 = arith.subf %41, %44 : vector<4x64x64xf32>
    %46 = math.exp %45 : vector<4x64x64xf32>
    %cst_17 = arith.constant dense<0.000000e+00> : vector<4x64xf32>
    %47 = vector.multi_reduction <add>, %46, %cst_17 [2] : vector<4x64x64xf32> to vector<4x64xf32>
    %48 = vector.shape_cast %47 : vector<4x64xf32> to vector<4x64x1xf32>
    %cst_18 = arith.constant 1.000000e+00 : f32
    %49 = vector.broadcast %cst_18 : f32 to vector<4x64x1xf32>
    %50 = arith.divf %49, %48 : vector<4x64x1xf32>
    %51 = vector.broadcast %50 : vector<4x64x1xf32> to vector<4x64x64xf32>
    %52 = arith.mulf %46, %51 : vector<4x64x64xf32>
    %53 = arith.truncf %52 : vector<4x64x64xf32> to vector<4x64x64xbf16>
    "tpu.trace_start"() <{level = 10 : i32, message = "bnm,bmd->bnd"}> : () -> ()
    %cst_19 = arith.constant dense<0.000000e+00> : vector<4x64x32xf32>
    %54 = tpu.matmul %53, %40, %cst_19 {dimension_numbers = #tpu.dot_dimension_numbers<[2], [1], [1], [2], [0, 0, 0, 1, 1, 2], [0], [0]>} : vector<4x64x64xbf16>, vector<4x64x32xbf16>, vector<4x64x32xf32> -> vector<4x64x32xf32>
    "tpu.trace_stop"() : () -> ()
    %55 = vector.shape_cast %54 : vector<4x64x32xf32> to vector<256x32xf32>
    %56 = arith.truncf %55 : vector<256x32xf32> to vector<256x32xbf16>
    %57 = vector.extract_strided_slice %8 {offsets = [32, 0], sizes = [32, 64], strides = [1, 1]} : vector<64x64xbf16> to vector<32x64xbf16>
    %cst_20 = arith.constant dense<0.000000e+00> : vector<256x64xf32>
    %58 = tpu.matmul %56, %57, %cst_20 {dimension_numbers = #tpu.dot_dimension_numbers<[1], [0], [0], [1], [0, 0, 1, 1], [], []>} : vector<256x32xbf16>, vector<32x64xbf16>, vector<256x64xf32> -> vector<256x64xf32>
    %59 = arith.addf %34, %58 : vector<256x64xf32>
    %c0_21 = arith.constant 0 : index
    %c0_22 = arith.constant 0 : index
    %60 = vector.load %arg5[%c0_21, %c0_22] : memref<1x64xf32, #tpu.memory_space<vmem>>, vector<1x64xf32>
    %61 = vector.broadcast %60 : vector<1x64xf32> to vector<256x64xf32>
    %62 = arith.addf %59, %61 : vector<256x64xf32>
    %63 = vector.shape_cast %62 : vector<256x64xf32> to vector<4x64x64xf32>
    %c0_23 = arith.constant 0 : index
    %c0_24 = arith.constant 0 : index
    %c0_25 = arith.constant 0 : index
    %64 = vector.load %arg6[%c0_23, %c0_24, %c0_25] : memref<4x64x64xf32, #tpu.memory_space<vmem>>, vector<4x64x64xf32>
    tpu.vector_store %arg6[%c0_23, %c0_24, %c0_25], %63 {strides = array<i32>} : memref<4x64x64xf32, #tpu.memory_space<vmem>>, vector<4x64x64xf32>,
    return
  }
  func.func @transform_0(%arg0: i32) -> (i32, i32, i32) {
    %c0_i32 = arith.constant 0 : i32
    %c0_i32_0 = arith.constant 0 : i32
    %c0_i32_1 = arith.constant 0 : i32
    return %arg0, %c0_i32, %c0_i32_0 : i32, i32, i32
  }
  func.func @transform_1(%arg0: i32) -> (i32, i32) {
    %c0_i32 = arith.constant 0 : i32
    %c0_i32_0 = arith.constant 0 : i32
    %c0_i32_1 = arith.constant 0 : i32
    return %c0_i32, %c0_i32_0 : i32, i32
  }
  func.func @transform_2(%arg0: i32) -> (i32, i32) {
    %c0_i32 = arith.constant 0 : i32
    %c0_i32_0 = arith.constant 0 : i32
    %c0_i32_1 = arith.constant 0 : i32
    return %c0_i32, %c0_i32_0 : i32, i32
  }
  func.func @transform_3(%arg0: i32) -> (i32, i32) {
    %c0_i32 = arith.constant 0 : i32
    %c0_i32_0 = arith.constant 0 : i32
    %c0_i32_1 = arith.constant 0 : i32
    return %c0_i32, %c0_i32_0 : i32, i32
  }
  func.func @transform_4(%arg0: i32) -> (i32, i32) {
    %c0_i32 = arith.constant 0 : i32
    %c0_i32_0 = arith.constant 0 : i32
    %c0_i32_1 = arith.constant 0 : i32
    return %c0_i32, %c0_i32_0 : i32, i32
  }
  func.func @transform_5(%arg0: i32) -> (i32, i32, i32) {
    %c0_i32 = arith.constant 0 : i32
    %c0_i32_0 = arith.constant 0 : i32
    %c0_i32_1 = arith.constant 0 : i32
    return %arg0, %c0_i32, %c0_i32_0 : i32, i32, i32
  }
}

</mosaic_0001>

<llo_original>
// kernel: tpu_custom_call.1
$region0: #{tpu_custom_call.1}
  #allocation0 [shape = 'u32[]', space=smem, size = 0x4, offset = 0x4, fixed_abs, tag = 'smem constant byte address 0x4 - core index']
  #allocation1 [shape = 'u32[144,128]{1,0:T(1,128)}', space=vmem, size = 0x12000, scoped, tag = 'internal scratch']
  %s0 = inlined_call_operand.hbm [shape: bf16[8,64,64], index: 0, kind: input, shape index: {}]
  %s1 = inlined_call_operand.hbm [shape: bf16[64,192], index: 1, kind: input, shape index: {}]
  %s2 = inlined_call_operand.vmem [shape: f32[1,192], index: 2, kind: input, shape index: {}]
  %s3 = inlined_call_operand.hbm [shape: bf16[64,64], index: 3, kind: input, shape index: {}]
  %s4 = inlined_call_operand.vmem [shape: f32[1,64], index: 4, kind: input, shape index: {}]
  %s5 = inlined_call_operand.hbm [shape: f32[8,64,64], index: 5, kind: output, shape index: {}]
  %s6 = sld [smem:[#allocation0]]
  $region65: #{tpu_custom_call.1} parent=0
    _
  %s8 = ssub.s32 1, %s6
  %s9 = scalar_select 0, %s8, %s6
  $region1: #{tpu_custom_call.1} parent=0
    #allocation2 [shape = 'u8[131072]{0}', space=vmem, size = 0x20000, scoped, tag = 'input window, operand 0']
    #allocation3 [shape = 's32[2]{0}', space=sflag, size = 0x8, scoped, tag = 'scoped memory for tpu_custom_call.1']
    #allocation4 [shape = 's32[2]{0}', space=sflag, size = 0x8, scoped, tag = 'scoped memory for tpu_custom_call.1']
    #allocation5 [shape = 'u8[32768]{0}', space=vmem, size = 0x8000, scoped, tag = 'input window, operand 1, single buffered']
    #allocation6 [shape = 's32[1]{0}', space=sflag, size = 0x4, scoped, tag = 'scoped memory for tpu_custom_call.1']
    #allocation7 [shape = 'u8[16384]{0}', space=vmem, size = 0x4000, scoped, tag = 'input window, operand 3, single buffered']
    #allocation8 [shape = 'u8[262144]{0}', space=vmem, size = 0x40000, scoped, tag = 'output window, operand 0']
    %10 = vsyncpa [#allocation3], 0
    %s11 = scalar_lea.sflag [#allocation3], 1
    %12 = vsyncpa %s11, 0
    %13 = vsyncpa [#allocation6], 0
    %14 = vsyncpa [#allocation4], 0
    %s15 = scalar_lea.sflag [#allocation4], 1
    %16 = vsyncpa %s15, 0
    loop: start=0, step=1, limit=4
    $region2: #{tpu_custom_call.1} parent=1 // loop_pre_header
      _
    $region3: #{tpu_custom_call.1} parent=1 // loop_header
      %s18 = sphi 0, %s22
      %p19 = scmp.ge.s32.totalorder %s18, 4
      %s28 = sphi 0, %s30
      %s31 = sphi 0, %s28
      %s32 = sphi 0, %s31
      %s48 = sphi 0, %s32
      %s52 = sphi 0, %s52
      %s54 = sphi 0, %s52
      %s55 = sphi 0, %s54
      %s69 = sphi 0, %s55
      %s73 = sphi 0, %s73
      %s75 = sphi 0, %s73
      %s76 = sphi 0, %s75
      %s90 = sphi 0, %s76
      %s94 = sphi 0, %s94
      %s96 = sphi 0, %s94
      %s97 = sphi 0, %s96
      %s111 = sphi 0, %s97
      %s115 = sphi 0, %s115
      %s117 = sphi 0, %s115
      %s118 = sphi 0, %s117
      %s132 = sphi 0, %s118
      %s138 = sphi 0, %s140
      %s141 = sphi 0, %s138
      %s142 = sphi 0, %s141
      %s158 = sphi 0, %s142
    $region4: #{tpu_custom_call.1} parent=1 // loop_header_branch
      %21 = sbr.rel (%p19) target = $region8
    $region5: #{tpu_custom_call.1} parent=1 // loop_body
      %s23 = ssub.s32 %s18, 1
      %s24 = ssub.s32 %s18, 2
      %s25 = sadd.s32 %s18, 1
      %s26 = ssub.s32 %s18, %s25
      %p27 = scmp.eq.s32.totalorder %s26, 0
      %s29 = sadd.s32 %s28, 1
      %s30 = scalar_select %p27, %s28, %s29
      %p33 = pneg %p27
      %p34 = scmp.eq.s32.totalorder %s18, 1
      %p35 = por %p33, %p34
      %p36 = scmp.ne.s32.totalorder %s28, %s31
      %p37 = scmp.eq.s32.totalorder %s18, 0
      %p38 = por %p36, %p37
      %p39 = scmp.ne.s32.totalorder %s28, %s31
      %p40 = scmp.eq.s32.totalorder %s23, 1
      %p41 = por %p39, %p40
      %p42 = scmp.ne.s32.totalorder %s31, %s32
      %p43 = scmp.eq.s32.totalorder %s23, 0
      %p44 = por %p42, %p43
      %p45 = scmp.ne.s32.totalorder %s31, %s32
      %p46 = scmp.eq.s32.totalorder %s24, 1
      %p47 = por %p45, %p46
      %p49 = scmp.ne.s32.totalorder %s32, %s48
      %p50 = scmp.eq.s32.totalorder %s24, 0
      %p51 = por %p49, %p50
      %s53 = sadd.s32 %s52, 1
      %p56 = scmp.eq.s32.totalorder %s18, 1
      %p57 = scmp.ne.s32.totalorder %s52, %s54
      %p58 = scmp.eq.s32.totalorder %s18, 0
      %p59 = por %p57, %p58
      %p60 = scmp.ne.s32.totalorder %s52, %s54
      %p61 = scmp.eq.s32.totalorder %s23, 1
      %p62 = por %p60, %p61
      %p63 = scmp.ne.s32.totalorder %s54, %s55
      %p64 = scmp.eq.s32.totalorder %s23, 0
      %p65 = por %p63, %p64
      %p66 = scmp.ne.s32.totalorder %s54, %s55
      %p67 = scmp.eq.s32.totalorder %s24, 1
      %p68 = por %p66, %p67
      %p70 = scmp.ne.s32.totalorder %s55, %s69
      %p71 = scmp.eq.s32.totalorder %s24, 0
      %p72 = por %p70, %p71
      %s74 = sadd.s32 %s73, 1
      %p77 = scmp.eq.s32.totalorder %s18, 1
      %p78 = scmp.ne.s32.totalorder %s73, %s75
      %p79 = scmp.eq.s32.totalorder %s18, 0
      %p80 = por %p78, %p79
      %p81 = scmp.ne.s32.totalorder %s73, %s75
      %p82 = scmp.eq.s32.totalorder %s23, 1
      %p83 = por %p81, %p82
      %p84 = scmp.ne.s32.totalorder %s75, %s76
      %p85 = scmp.eq.s32.totalorder %s23, 0
      %p86 = por %p84, %p85
      %p87 = scmp.ne.s32.totalorder %s75, %s76
      %p88 = scmp.eq.s32.totalorder %s24, 1
      %p89 = por %p87, %p88
      %p91 = scmp.ne.s32.totalorder %s76, %s90
      %p92 = scmp.eq.s32.totalorder %s24, 0
      %p93 = por %p91, %p92
      %s95 = sadd.s32 %s94, 1
      %p98 = scmp.eq.s32.totalorder %s18, 1
      %p99 = scmp.ne.s32.totalorder %s94, %s96
      %p100 = scmp.eq.s32.totalorder %s18, 0
      %p101 = por %p99, %p100
      %p102 = scmp.ne.s32.totalorder %s94, %s96
      %p103 = scmp.eq.s32.totalorder %s23, 1
      %p104 = por %p102, %p103
      %p105 = scmp.ne.s32.totalorder %s96, %s97
      %p106 = scmp.eq.s32.totalorder %s23, 0
      %p107 = por %p105, %p106
      %p108 = scmp.ne.s32.totalorder %s96, %s97
      %p109 = scmp.eq.s32.totalorder %s24, 1
      %p110 = por %p108, %p109
      %p112 = scmp.ne.s32.totalorder %s97, %s111
      %p113 = scmp.eq.s32.totalorder %s24, 0
      %p114 = por %p112, %p113
      %s116 = sadd.s32 %s115, 1
      %p119 = scmp.eq.s32.totalorder %s18, 1
      %p120 = scmp.ne.s32.totalorder %s115, %s117
      %p121 = scmp.eq.s32.totalorder %s18, 0
      %p122 = por %p120, %p121
      %p123 = scmp.ne.s32.totalorder %s115, %s117
      %p124 = scmp.eq.s32.totalorder %s23, 1
      %p125 = por %p123, %p124
      %p126 = scmp.ne.s32.totalorder %s117, %s118
      %p127 = scmp.eq.s32.totalorder %s23, 0
      %p128 = por %p126, %p127
      %p129 = scmp.ne.s32.totalorder %s117, %s118
      %p130 = scmp.eq.s32.totalorder %s24, 1
      %p131 = por %p129, %p130
      %p133 = scmp.ne.s32.totalorder %s118, %s132
      %p134 = scmp.eq.s32.totalorder %s24, 0
      %p135 = por %p133, %p134
      %s136 = ssub.s32 %s18, %s25
      %p137 = scmp.eq.s32.totalorder %s136, 0
      %s139 = sadd.s32 %s138, 1
      %s140 = scalar_select %p137, %s138, %s139
      %p143 = pneg %p137
      %p144 = scmp.eq.s32.totalorder %s18, 1
      %p145 = por %p143, %p144
      %p146 = scmp.ne.s32.totalorder %s138, %s141
      %p147 = scmp.eq.s32.totalorder %s18, 0
      %p148 = por %p146, %p147
      %p149 = scmp.ne.s32.totalorder %s138, %s141
      %p150 = scmp.eq.s32.totalorder %s23, 1
      %p151 = por %p149, %p150
      %p152 = scmp.ne.s32.totalorder %s141, %s142
      %p153 = scmp.eq.s32.totalorder %s23, 0
      %p154 = por %p152, %p153
      %p155 = scmp.ne.s32.totalorder %s141, %s142
      %p156 = scmp.eq.s32.totalorder %s24, 1
      %p157 = por %p155, %p156
      %p159 = scmp.ne.s32.totalorder %s142, %s158
      %p160 = scmp.eq.s32.totalorder %s24, 0
      %p161 = por %p159, %p160
      %p162 = scmp.le.s32.totalorder 1, %s18
      %p163 = scmp.lt.s32.totalorder %s18, 3
      %p164 = pnand %p162, %p163
      %p165 = pneg %p164
      // Predicated region
      $region9: #{tpu_custom_call.1} parent=5 // pred_check
        _
      $region10: #{tpu_custom_call.1} parent=5 // pred_check_branch
        %167 = sbr.rel (%p164) target = $region12
      $region11: #{tpu_custom_call.1} parent=5 // pred_region
        %s168 = ssub.s32 %s18, 1
        // Predicated region
        $region13: #{tpu_custom_call.1} parent=11 // pred_check
          %p169 = pneg %p65
        $region14: #{tpu_custom_call.1} parent=11 // pred_check_branch
          %171 = sbr.rel (%p169) target = $region16
        $region15: #{tpu_custom_call.1} parent=11 // pred_region
          %s173 = ssub.s32 1024, 1024
          %174 = vsyncadd [#allocation6], %s173
          %s175 = sshll.u32 [#allocation5], 4
          %s176 = int_to_ptr.vmem [resolvable:$true] %s175
          %181 = dma.hbm_to_vmem [thread:$0]  %s1, 1024, %s176, [#allocation6], 128, 128, 8
        $region16: #{tpu_custom_call.1} parent=11 // pred_fallthru
          _
        // Predicated region
        $region17: #{tpu_custom_call.1} parent=11 // pred_check
          %p182 = pneg %p86
        $region18: #{tpu_custom_call.1} parent=11 // pred_check_branch
          %184 = sbr.rel (%p182) target = $region20
        $region19: #{tpu_custom_call.1} parent=11 // pred_region
          _
        $region20: #{tpu_custom_call.1} parent=11 // pred_fallthru
          _
        // Predicated region
        $region21: #{tpu_custom_call.1} parent=11 // pred_check
          %p185 = pneg %p107
        $region22: #{tpu_custom_call.1} parent=11 // pred_check_branch
          %187 = sbr.rel (%p185) target = $region24
        $region23: #{tpu_custom_call.1} parent=11 // pred_region
          %s189 = ssub.s32 512, 512
          %190 = vsyncadd [#allocation6], %s189
          %s191 = sshll.u32 [#allocation7], 4
          %s192 = int_to_ptr.vmem [resolvable:$true] %s191
          %197 = dma.hbm_to_vmem [thread:$0]  %s3, 512, %s192, [#allocation6], 64, 64, 4
        $region24: #{tpu_custom_call.1} parent=11 // pred_fallthru
          _
        // Predicated region
        $region25: #{tpu_custom_call.1} parent=11 // pred_check
          %p198 = pneg %p128
        $region26: #{tpu_custom_call.1} parent=11 // pred_check_branch
          %200 = sbr.rel (%p198) target = $region28
        $region27: #{tpu_custom_call.1} parent=11 // pred_region
          _
        $region28: #{tpu_custom_call.1} parent=11 // pred_fallthru
          _
      $region12: #{tpu_custom_call.1} parent=5 // pred_fallthru
        _
      %p201 = scmp.lt.s32.totalorder %s18, 2
      // Predicated region
      $region29: #{tpu_custom_call.1} parent=5 // pred_check
        %p202 = pneg %p201
      $region30: #{tpu_custom_call.1} parent=5 // pred_check_branch
        %204 = sbr.rel (%p202) target = $region32
      $region31: #{tpu_custom_call.1} parent=5 // pred_region
        // Predicated region
        $region33: #{tpu_custom_call.1} parent=31 // pred_check
          %p205 = pneg %p38
        $region34: #{tpu_custom_call.1} parent=31 // pred_check_branch
          %207 = sbr.rel (%p205) target = $region36
        $region35: #{tpu_custom_call.1} parent=31 // pred_region
          %s208 = sand.u32 %s28, 1
          %s209 = scalar_lea.sflag [#allocation3], %s208
          %s210 = sand.u32 %s28, 1
          %s211 = smul.addr %s210, 128
          %s212 = scalar_lea.vmem [#allocation2], %s211
          %s213 = smul.u32 4, %s18
          %s215 = ssub.s32 2048, 2048
          %216 = vsyncadd %s209, %s215
          %s217 = smul.addr %s213, 8
          %s218 = smul.addr %s217, 64
          %s219 = scalar_lea.hbm %s0, %s218
          %s220 = sshll.u32 %s212, 4
          %s221 = int_to_ptr.vmem [resolvable:$true] %s220
          %226 = dma.hbm_to_vmem [thread:$0]  %s219, 2048, %s221, %s209, 64, 64, 4
        $region36: #{tpu_custom_call.1} parent=31 // pred_fallthru
          _
      $region32: #{tpu_custom_call.1} parent=5 // pred_fallthru
        _
      %p227 = scmp.le.s32.totalorder 1, %s18
      %p228 = scmp.lt.s32.totalorder %s18, 3
      %p229 = pnand %p227, %p228
      %p230 = pneg %p229
      // Predicated region
      $region37: #{tpu_custom_call.1} parent=5 // pred_check
        _
      $region38: #{tpu_custom_call.1} parent=5 // pred_check_branch
        %232 = sbr.rel (%p229) target = $region40
      $region39: #{tpu_custom_call.1} parent=5 // pred_region
        %s233 = ssub.s32 %s18, 1
        %s234 = sand.u32 %s31, 1
        %s235 = scalar_lea.sflag [#allocation3], %s234
        %s236 = sand.u32 %s31, 1
        %s237 = smul.addr %s236, 128
        %s238 = scalar_lea.vmem [#allocation2], %s237
        // Predicated region
        $region41: #{tpu_custom_call.1} parent=39 // pred_check
          %p239 = pneg %p44
        $region42: #{tpu_custom_call.1} parent=39 // pred_check_branch
          %241 = sbr.rel (%p239) target = $region44
        $region43: #{tpu_custom_call.1} parent=39 // pred_region
          %242 = dma.done %s235, 2048
        $region44: #{tpu_custom_call.1} parent=39 // pred_fallthru
          _
        // Predicated region
        $region45: #{tpu_custom_call.1} parent=39 // pred_check
          %p243 = pneg %p65
        $region46: #{tpu_custom_call.1} parent=39 // pred_check_branch
          %245 = sbr.rel (%p243) target = $region48
        $region47: #{tpu_custom_call.1} parent=39 // pred_region
          %246 = dma.done [#allocation6], 1024
        $region48: #{tpu_custom_call.1} parent=39 // pred_fallthru
          _
        // Predicated region
        $region49: #{tpu_custom_call.1} parent=39 // pred_check
          %p247 = pneg %p107
        $region50: #{tpu_custom_call.1} parent=39 // pred_check_branch
          %249 = sbr.rel (%p247) target = $region52
        $region51: #{tpu_custom_call.1} parent=39 // pred_region
          %250 = dma.done [#allocation6], 512
        $region52: #{tpu_custom_call.1} parent=39 // pred_fallthru
          _
        %s251 = sand.u32 %s31, 1
        %s252 = scalar_lea.sflag [#allocation3], %s251
        %s253 = sand.u32 %s31, 1
        %s254 = smul.addr %s253, 128
        %s255 = scalar_lea.vmem [#allocation2], %s254
        %p256 = pneg %p44
        %p257 = pneg %p41
        %p258 = pneg %p65
        %p259 = pneg %p62
        %p260 = pneg %p86
        %p261 = pneg %p83
        %p262 = pneg %p107
        %p263 = pneg %p104
        %p264 = pneg %p128
        %p265 = pneg %p125
        %p266 = pneg %p154
        %p267 = pneg %p151
        %s268 = sand.u32 %s141, 1
        %s269 = scalar_lea.sflag [#allocation4], %s268
        %s270 = sand.u32 %s141, 1
        %s271 = smul.addr %s270, 256
        %s272 = scalar_lea.vmem [#allocation8], %s271
        %s273 = smul.u32 4, %s23
        %s274 = smul.u32 4, %s23
        %v276 = vld [vmem:[%s238] sm:$0xf]
        %v277 = vld [vmem:[%s238 + $0x4] sm:$0xf]
        %v278 = vld [vmem:[%s238 + $0x8] sm:$0xf]
        %v279 = vld [vmem:[%s238 + $0xc] sm:$0xf]
        %v280 = vld [vmem:[%s238 + $0x10] sm:$0xf]
        %v281 = vld [vmem:[%s238 + $0x14] sm:$0xf]
        %v282 = vld [vmem:[%s238 + $0x18] sm:$0xf]
        %v283 = vld [vmem:[%s238 + $0x1c] sm:$0xf]
        %v284 = vld [vmem:[%s238 + $0x20] sm:$0xf]
        %v285 = vld [vmem:[%s238 + $0x24] sm:$0xf]
        %v286 = vld [vmem:[%s238 + $0x28] sm:$0xf]
        %v287 = vld [vmem:[%s238 + $0x2c] sm:$0xf]
        %v288 = vld [vmem:[%s238 + $0x30] sm:$0xf]
        %v289 = vld [vmem:[%s238 + $0x34] sm:$0xf]
        %v290 = vld [vmem:[%s238 + $0x38] sm:$0xf]
        %v291 = vld [vmem:[%s238 + $0x3c] sm:$0xf]
        %v292 = vld [vmem:[%s238 + $0x40] sm:$0xf]
        %v293 = vld [vmem:[%s238 + $0x44] sm:$0xf]
        %v294 = vld [vmem:[%s238 + $0x48] sm:$0xf]
        %v295 = vld [vmem:[%s238 + $0x4c] sm:$0xf]
        %v296 = vld [vmem:[%s238 + $0x50] sm:$0xf]
        %v297 = vld [vmem:[%s238 + $0x54] sm:$0xf]
        %v298 = vld [vmem:[%s238 + $0x58] sm:$0xf]
        %v299 = vld [vmem:[%s238 + $0x5c] sm:$0xf]
        %v300 = vld [vmem:[%s238 + $0x60] sm:$0xf]
        %v301 = vld [vmem:[%s238 + $0x64] sm:$0xf]
        %v302 = vld [vmem:[%s238 + $0x68] sm:$0xf]
        %v303 = vld [vmem:[%s238 + $0x6c] sm:$0xf]
        %v304 = vld [vmem:[%s238 + $0x70] sm:$0xf]
        %v305 = vld [vmem:[%s238 + $0x74] sm:$0xf]
        %v306 = vld [vmem:[%s238 + $0x78] sm:$0xf]
        %v307 = vld [vmem:[%s238 + $0x7c] sm:$0xf]
        %v308 = vld [vmem:[#allocation5] sm:$0xff]
        %v309 = vld [vmem:[#allocation5 + $0x8] sm:$0xff]
        %v310 = vld [vmem:[#allocation5 + $0x10] sm:$0xff]
        %v311 = vld [vmem:[#allocation5 + $0x18] sm:$0xff]
        %v312 = vld [vmem:[#allocation5 + $0x20] sm:$0xff]
        %v313 = vld [vmem:[#allocation5 + $0x28] sm:$0xff]
        %v314 = vld [vmem:[#allocation5 + $0x30] sm:$0xff]
        %v315 = vld [vmem:[#allocation5 + $0x38] sm:$0xff]
        %v316 = vld [vmem:[%s2] sm:$0x3]
        %v318 = vlaneseq
        %v319 = vshrl.u32 %v318, 7
        %v320 = vsub.s32 0, %v319
        %v321 = vrot.slane %v316, %v320
        %v322 = vlaneseq
        %v323 = vshrl.u32 %v322, 7
        %v324 = vsub.s32 1, %v323
        %v325 = vrot.slane %v316, %v324
        %v360 = vunpack.c.l.b16 %v276
        %v361 = vunpack.c.l.b16 %v277
        %v362 = vunpack.c.l.b16 %v278
        %v363 = vunpack.c.l.b16 %v279
        %v364 = vunpack.c.l.b16 %v280
        %v365 = vunpack.c.l.b16 %v281
        %v366 = vunpack.c.l.b16 %v282
        %v367 = vunpack.c.l.b16 %v283
        %v368 = vunpack.c.l.b16 %v284
        %v369 = vunpack.c.l.b16 %v285
        %v370 = vunpack.c.l.b16 %v286
        %v371 = vunpack.c.l.b16 %v287
        %v372 = vunpack.c.l.b16 %v288
        %v373 = vunpack.c.l.b16 %v289
        %v374 = vunpack.c.l.b16 %v290
        %v375 = vunpack.c.l.b16 %v291
        %v376 = vunpack.c.l.b16 %v292
        %v377 = vunpack.c.l.b16 %v293
        %v378 = vunpack.c.l.b16 %v294
        %v379 = vunpack.c.l.b16 %v295
        %v380 = vunpack.c.l.b16 %v296
        %v381 = vunpack.c.l.b16 %v297
        %v382 = vunpack.c.l.b16 %v298
        %v383 = vunpack.c.l.b16 %v299
        %v384 = vunpack.c.l.b16 %v300
        %v385 = vunpack.c.l.b16 %v301
        %v386 = vunpack.c.l.b16 %v302
        %v387 = vunpack.c.l.b16 %v303
        %v388 = vunpack.c.l.b16 %v304
        %v389 = vunpack.c.l.b16 %v305
        %v390 = vunpack.c.l.b16 %v306
        %v391 = vunpack.c.l.b16 %v307
        %v392 = vpack.c.b16 %v361, %v360
        %v393 = vpack.c.b16 %v363, %v362
        %v394 = vpack.c.b16 %v365, %v364
        %v395 = vpack.c.b16 %v367, %v366
        %v396 = vpack.c.b16 %v369, %v368
        %v397 = vpack.c.b16 %v371, %v370
        %v398 = vpack.c.b16 %v373, %v372
        %v399 = vpack.c.b16 %v375, %v374
        %v400 = vpack.c.b16 %v377, %v376
        %v401 = vpack.c.b16 %v379, %v378
        %v402 = vpack.c.b16 %v381, %v380
        %v403 = vpack.c.b16 %v383, %v382
        %v404 = vpack.c.b16 %v385, %v384
        %v405 = vpack.c.b16 %v387, %v386
        %v406 = vpack.c.b16 %v389, %v388
        %v407 = vpack.c.b16 %v391, %v390
        %v416 = vunpack.c.l.b16 %v308
        %v417 = vunpack.c.h.b16 %v308
        %v418 = vunpack.c.l.b16 %v309
        %v419 = vunpack.c.h.b16 %v309
        %v420 = vunpack.c.l.b16 %v310
        %v421 = vunpack.c.h.b16 %v310
        %v422 = vunpack.c.l.b16 %v311
        %v423 = vunpack.c.h.b16 %v311
        %v424 = vunpack.c.l.b16 %v312
        %v425 = vunpack.c.h.b16 %v312
        %v426 = vunpack.c.l.b16 %v313
        %v427 = vunpack.c.h.b16 %v313
        %v428 = vunpack.c.l.b16 %v314
        %v429 = vunpack.c.h.b16 %v314
        %v430 = vunpack.c.l.b16 %v315
        %v431 = vunpack.c.h.b16 %v315
        %v432 = vpack.c.b16 %v418, %v416
        %v433 = vpack.c.b16 %v419, %v417
        %v434 = vpack.c.b16 %v422, %v420
        %v435 = vpack.c.b16 %v423, %v421
        %v436 = vpack.c.b16 %v426, %v424
        %v437 = vpack.c.b16 %v427, %v425
        %v438 = vpack.c.b16 %v430, %v428
        %v439 = vpack.c.b16 %v431, %v429
        %vm448 = vcmask 523264
        %v450 = vsel %vm448, %v392, 0
        %v453 = vsel %vm448, %v393, 0
        %v456 = vsel %vm448, %v394, 0
        %v459 = vsel %vm448, %v395, 0
        %v462 = vsel %vm448, %v396, 0
        %v465 = vsel %vm448, %v397, 0
        %v468 = vsel %vm448, %v398, 0
        %v471 = vsel %vm448, %v399, 0
        %v474 = vsel %vm448, %v400, 0
        %v477 = vsel %vm448, %v401, 0
        %v480 = vsel %vm448, %v402, 0
        %v483 = vsel %vm448, %v403, 0
        %v486 = vsel %vm448, %v404, 0
        %v489 = vsel %vm448, %v405, 0
        %v492 = vsel %vm448, %v406, 0
        %v495 = vsel %vm448, %v407, 0
        %497 = vmatprep.subr.bf16.mxu0 %v433
        %498 = vmatpush1.bf16.msra.mxu0 %v432
        %499 = vmatprep.subr.bf16.mxu0 %v435
        %500 = vmatpush1.bf16.msra.mxu0 %v434
        %501 = vmatprep.subr.bf16.mxu0 %v437
        %502 = vmatpush1.bf16.msra.mxu0 %v436
        %503 = vmatprep.subr.bf16.mxu0 %v439
        %504 = vmatpush1.bf16.msra.mxu0 %v438
        %505 = vmatprep.subr.bf16.mxu0 0
        %506 = vmatpush1.bf16.msra.mxu0 0
        %507 = vmatprep.subr.bf16.mxu0 0
        %508 = vmatpush1.bf16.msra.mxu0 0
        %509 = vmatprep.subr.bf16.mxu0 0
        %510 = vmatpush1.bf16.msra.mxu0 0
        %511 = vmatprep.subr.bf16.mxu0 0
        %512 = vmatpush1.bf16.msra.mxu0 0
        %513 = vmatprep.subr.bf16.mxu0 0
        %514 = vmatpush1.bf16.msra.mxu0 0
        %515 = vmatprep.subr.bf16.mxu0 0
        %516 = vmatpush1.bf16.msra.mxu0 0
        %517 = vmatprep.subr.bf16.mxu0 0
        %518 = vmatpush1.bf16.msra.mxu0 0
        %519 = vmatprep.subr.bf16.mxu0 0
        %520 = vmatpush1.bf16.msra.mxu0 0
        %521 = vmatprep.subr.bf16.mxu0 0
        %522 = vmatpush1.bf16.msra.mxu0 0
        %523 = vmatprep.subr.bf16.mxu0 0
        %524 = vmatpush1.bf16.msra.mxu0 0
        %525 = vmatprep.subr.bf16.mxu0 0
        %526 = vmatpush1.bf16.msra.mxu0 0
        %527 = vmatprep.subr.bf16.mxu0 0
        %528 = vmatpush1.bf16.msra.mxu0 0
        %529 = vmatprep.mubr.bf16.mxu0 0
        %530 = vmatmul.mubr.bf16.gmra.mrb[0].mxu0 %v450
        %v531 = vpop.f32.mrb[0].mxu0
        %v532 = vadd.f32 %v321, %v531
        %v533 = vpop.f32.mrb[0].mxu0
        %v534 = vadd.f32 %v325, %v533
        %v535 = vpop.f32.mrb[0].mxu0
        %v536 = vadd.f32 %v321, %v535
        %v537 = vpop.f32.mrb[0].mxu0
        %v538 = vadd.f32 %v325, %v537
        %539 = vmatprep.mubr.bf16.mxu0 0
        %540 = vmatmul.mubr.bf16.gmra.mrb[0].mxu0 %v453
        %v541 = vpop.f32.mrb[0].mxu0
        %v542 = vadd.f32 %v321, %v541
        %v543 = vpop.f32.mrb[0].mxu0
        %v544 = vadd.f32 %v325, %v543
        %v545 = vpop.f32.mrb[0].mxu0
        %v546 = vadd.f32 %v321, %v545
        %v547 = vpop.f32.mrb[0].mxu0
        %v548 = vadd.f32 %v325, %v547
        %549 = vmatprep.mubr.bf16.mxu0 0
        %550 = vmatmul.mubr.bf16.gmra.mrb[0].mxu0 %v456
        %v551 = vpop.f32.mrb[0].mxu0
        %v552 = vadd.f32 %v321, %v551
        %v553 = vpop.f32.mrb[0].mxu0
        %v554 = vadd.f32 %v325, %v553
        %v555 = vpop.f32.mrb[0].mxu0
        %v556 = vadd.f32 %v321, %v555
        %v557 = vpop.f32.mrb[0].mxu0
        %v558 = vadd.f32 %v325, %v557
        %559 = vmatprep.mubr.bf16.mxu0 0
        %560 = vmatmul.mubr.bf16.gmra.mrb[0].mxu0 %v459
        %v561 = vpop.f32.mrb[0].mxu0
        %v562 = vadd.f32 %v321, %v561
        %v563 = vpop.f32.mrb[0].mxu0
        %v564 = vadd.f32 %v325, %v563
        %v565 = vpop.f32.mrb[0].mxu0
        %v566 = vadd.f32 %v321, %v565
        %v567 = vpop.f32.mrb[0].mxu0
        %v568 = vadd.f32 %v325, %v567
        %569 = vmatprep.mubr.bf16.mxu0 0
        %570 = vmatmul.mubr.bf16.gmra.mrb[0].mxu0 %v462
        %v571 = vpop.f32.mrb[0].mxu0
        %v572 = vadd.f32 %v321, %v571
        %v573 = vpop.f32.mrb[0].mxu0
        %v574 = vadd.f32 %v325, %v573
        %v575 = vpop.f32.mrb[0].mxu0
        %v576 = vadd.f32 %v321, %v575
        %v577 = vpop.f32.mrb[0].mxu0
        %v578 = vadd.f32 %v325, %v577
        %579 = vmatprep.mubr.bf16.mxu0 0
        %580 = vmatmul.mubr.bf16.gmra.mrb[0].mxu0 %v465
        %v581 = vpop.f32.mrb[0].mxu0
        %v582 = vadd.f32 %v321, %v581
        %v583 = vpop.f32.mrb[0].mxu0
        %v584 = vadd.f32 %v325, %v583
        %v585 = vpop.f32.mrb[0].mxu0
        %v586 = vadd.f32 %v321, %v585
        %v587 = vpop.f32.mrb[0].mxu0
        %v588 = vadd.f32 %v325, %v587
        %589 = vmatprep.mubr.bf16.mxu0 0
        %590 = vmatmul.mubr.bf16.gmra.mrb[0].mxu0 %v468
        %v591 = vpop.f32.mrb[0].mxu0
        %v592 = vadd.f32 %v321, %v591
        %v593 = vpop.f32.mrb[0].mxu0
        %v594 = vadd.f32 %v325, %v593
        %v595 = vpop.f32.mrb[0].mxu0
        %v596 = vadd.f32 %v321, %v595
        %v597 = vpop.f32.mrb[0].mxu0
        %v598 = vadd.f32 %v325, %v597
        %599 = vmatprep.mubr.bf16.mxu0 0
        %600 = vmatmul.mubr.bf16.gmra.mrb[0].mxu0 %v471
        %v601 = vpop.f32.mrb[0].mxu0
        %v602 = vadd.f32 %v321, %v601
        %v603 = vpop.f32.mrb[0].mxu0
        %v604 = vadd.f32 %v325, %v603
        %v605 = vpop.f32.mrb[0].mxu0
        %v606 = vadd.f32 %v321, %v605
        %v607 = vpop.f32.mrb[0].mxu0
        %v608 = vadd.f32 %v325, %v607
        %609 = vmatprep.mubr.bf16.mxu0 0
        %610 = vmatmul.mubr.bf16.gmra.mrb[0].mxu0 %v474
        %v611 = vpop.f32.mrb[0].mxu0
        %v612 = vadd.f32 %v321, %v611
        %v613 = vpop.f32.mrb[0].mxu0
        %v614 = vadd.f32 %v325, %v613
        %v615 = vpop.f32.mrb[0].mxu0
        %v616 = vadd.f32 %v321, %v615
        %v617 = vpop.f32.mrb[0].mxu0
        %v618 = vadd.f32 %v325, %v617
        %619 = vmatprep.mubr.bf16.mxu0 0
        %620 = vmatmul.mubr.bf16.gmra.mrb[0].mxu0 %v477
        %v621 = vpop.f32.mrb[0].mxu0
        %v622 = vadd.f32 %v321, %v621
        %v623 = vpop.f32.mrb[0].mxu0
        %v624 = vadd.f32 %v325, %v623
        %v625 = vpop.f32.mrb[0].mxu0
        %v626 = vadd.f32 %v321, %v625
        %v627 = vpop.f32.mrb[0].mxu0
        %v628 = vadd.f32 %v325, %v627
        %629 = vmatprep.mubr.bf16.mxu0 0
        %630 = vmatmul.mubr.bf16.gmra.mrb[0].mxu0 %v480
        %v631 = vpop.f32.mrb[0].mxu0
        %v632 = vadd.f32 %v321, %v631
        %v633 = vpop.f32.mrb[0].mxu0
        %v634 = vadd.f32 %v325, %v633
        %v635 = vpop.f32.mrb[0].mxu0
        %v636 = vadd.f32 %v321, %v635
        %v637 = vpop.f32.mrb[0].mxu0
        %v638 = vadd.f32 %v325, %v637
        %639 = vmatprep.mubr.bf16.mxu0 0
        %640 = vmatmul.mubr.bf16.gmra.mrb[0].mxu0 %v483
        %v641 = vpop.f32.mrb[0].mxu0
        %v642 = vadd.f32 %v321, %v641
        %v643 = vpop.f32.mrb[0].mxu0
        %v644 = vadd.f32 %v325, %v643
        %v645 = vpop.f32.mrb[0].mxu0
        %v646 = vadd.f32 %v321, %v645
        %v647 = vpop.f32.mrb[0].mxu0
        %v648 = vadd.f32 %v325, %v647
        %649 = vmatprep.mubr.bf16.mxu0 0
        %650 = vmatmul.mubr.bf16.gmra.mrb[0].mxu0 %v486
        %v651 = vpop.f32.mrb[0].mxu0
        %v652 = vadd.f32 %v321, %v651
        %v653 = vpop.f32.mrb[0].mxu0
        %v654 = vadd.f32 %v325, %v653
        %v655 = vpop.f32.mrb[0].mxu0
        %v656 = vadd.f32 %v321, %v655
        %v657 = vpop.f32.mrb[0].mxu0
        %v658 = vadd.f32 %v325, %v657
        %659 = vmatprep.mubr.bf16.mxu0 0
        %660 = vmatmul.mubr.bf16.gmra.mrb[0].mxu0 %v489
        %v661 = vpop.f32.mrb[0].mxu0
        %v662 = vadd.f32 %v321, %v661
        %v663 = vpop.f32.mrb[0].mxu0
        %v664 = vadd.f32 %v325, %v663
        %v665 = vpop.f32.mrb[0].mxu0
        %v666 = vadd.f32 %v321, %v665
        %v667 = vpop.f32.mrb[0].mxu0
        %v668 = vadd.f32 %v325, %v667
        %669 = vmatprep.mubr.bf16.mxu0 0
        %670 = vmatmul.mubr.bf16.gmra.mrb[0].mxu0 %v492
        %v671 = vpop.f32.mrb[0].mxu0
        %v672 = vadd.f32 %v321, %v671
        %v673 = vpop.f32.mrb[0].mxu0
        %v674 = vadd.f32 %v325, %v673
        %v675 = vpop.f32.mrb[0].mxu0
        %v676 = vadd.f32 %v321, %v675
        %v677 = vpop.f32.mrb[0].mxu0
        %v678 = vadd.f32 %v325, %v677
        %679 = vmatprep.mubr.bf16.mxu0 0
        %680 = vmatmul.mubr.bf16.gmra.mrb[0].mxu0 %v495
        %v681 = vpop.f32.mrb[0].mxu0
        %v682 = vadd.f32 %v321, %v681
        %v683 = vpop.f32.mrb[0].mxu0
        %v684 = vadd.f32 %v325, %v683
        %v685 = vpop.f32.mrb[0].mxu0
        %v686 = vadd.f32 %v321, %v685
        %v687 = vpop.f32.mrb[0].mxu0
        %v688 = vadd.f32 %v325, %v687
        %689 = vdwg.mxu0
        %v690 = vld [vmem:[#allocation7] sm:$0xf]
        %v691 = vld [vmem:[#allocation7 + $0x4] sm:$0xf]
        %v692 = vld [vmem:[#allocation7 + $0x8] sm:$0xf]
        %v693 = vld [vmem:[#allocation7 + $0xc] sm:$0xf]
        %v694 = vld [vmem:[#allocation7 + $0x10] sm:$0xf]
        %v695 = vld [vmem:[#allocation7 + $0x14] sm:$0xf]
        %v696 = vld [vmem:[#allocation7 + $0x18] sm:$0xf]
        %v697 = vld [vmem:[#allocation7 + $0x1c] sm:$0xf]
        %v698 = vpack.c.bf16 %v536, %v532
        %v699 = vpack.c.bf16 %v546, %v542
        %v700 = vpack.c.bf16 %v556, %v552
        %v701 = vpack.c.bf16 %v566, %v562
        %v702 = vpack.c.bf16 %v576, %v572
        %v703 = vpack.c.bf16 %v586, %v582
        %v704 = vpack.c.bf16 %v596, %v592
        %v705 = vpack.c.bf16 %v606, %v602
        %v706 = vpack.c.bf16 %v616, %v612
        %v707 = vpack.c.bf16 %v626, %v622
        %v708 = vpack.c.bf16 %v636, %v632
        %v709 = vpack.c.bf16 %v646, %v642
        %v710 = vpack.c.bf16 %v656, %v652
        %v711 = vpack.c.bf16 %v666, %v662
        %v712 = vpack.c.bf16 %v676, %v672
        %v713 = vpack.c.bf16 %v686, %v682
        %v714 = vpack.c.bf16 %v538, %v534
        %v715 = vpack.c.bf16 %v548, %v544
        %v716 = vpack.c.bf16 %v558, %v554
        %v717 = vpack.c.bf16 %v568, %v564
        %v718 = vpack.c.bf16 %v578, %v574
        %v719 = vpack.c.bf16 %v588, %v584
        %v720 = vpack.c.bf16 %v598, %v594
        %v721 = vpack.c.bf16 %v608, %v604
        %v722 = vpack.c.bf16 %v618, %v614
        %v723 = vpack.c.bf16 %v628, %v624
        %v724 = vpack.c.bf16 %v638, %v634
        %v725 = vpack.c.bf16 %v648, %v644
        %v726 = vpack.c.bf16 %v658, %v654
        %v727 = vpack.c.bf16 %v668, %v664
        %v728 = vpack.c.bf16 %v678, %v674
        %v729 = vpack.c.bf16 %v688, %v684
        %734 = vrot.lane.b32.xlu0 %v698, 64
        %v735 = vpop.permute.xlu0 %734
        %736 = vrot.lane.b32.xlu0 %v699, 64
        %v737 = vpop.permute.xlu0 %736
        %738 = vrot.lane.b32.xlu0 %v700, 64
        %v739 = vpop.permute.xlu0 %738
        %740 = vrot.lane.b32.xlu0 %v701, 64
        %v741 = vpop.permute.xlu0 %740
        %vm742 = vcmask 261120
        %v744 = vsel %vm742, %v698, 0
        %v747 = vsel %vm742, %v699, 0
        %v750 = vsel %vm742, %v700, 0
        %v753 = vsel %vm742, %v701, 0
        %v756 = vsel %vm742, %v735, 0
        %v759 = vsel %vm742, %v737, 0
        %v762 = vsel %vm742, %v739, 0
        %v765 = vsel %vm742, %v741, 0
        %767 = vmatprep.subr.bf16.mxu0 0
        %768 = vmatpush1.bf16.xpose.msra.mxu0 %v756
        %769 = vmatprep.subr.bf16.mxu0 0
        %770 = vmatpush1.bf16.xpose.msra.mxu0 %v759
        %771 = vmatprep.subr.bf16.mxu0 0
        %772 = vmatpush1.bf16.xpose.msra.mxu0 %v762
        %773 = vmatprep.subr.bf16.mxu0 0
        %774 = vmatpush1.bf16.xpose.msra.mxu0 %v765
        %775 = vmatprep.subr.bf16.mxu0 0
        %776 = vmatpush1.bf16.xpose.msra.mxu0 0
        %777 = vmatprep.subr.bf16.mxu0 0
        %778 = vmatpush1.bf16.xpose.msra.mxu0 0
        %779 = vmatprep.subr.bf16.mxu0 0
        %780 = vmatpush1.bf16.xpose.msra.mxu0 0
        %781 = vmatprep.subr.bf16.mxu0 0
        %782 = vmatpush1.bf16.xpose.msra.mxu0 0
        %783 = vmatprep.subr.bf16.mxu0 0
        %784 = vmatpush1.bf16.xpose.msra.mxu0 0
        %785 = vmatprep.subr.bf16.mxu0 0
        %786 = vmatpush1.bf16.xpose.msra.mxu0 0
        %787 = vmatprep.subr.bf16.mxu0 0
        %788 = vmatpush1.bf16.xpose.msra.mxu0 0
        %789 = vmatprep.subr.bf16.mxu0 0
        %790 = vmatpush1.bf16.xpose.msra.mxu0 0
        %791 = vmatprep.subr.bf16.mxu0 0
        %792 = vmatpush1.bf16.xpose.msra.mxu0 0
        %793 = vmatprep.subr.bf16.mxu0 0
        %794 = vmatpush1.bf16.xpose.msra.mxu0 0
        %795 = vmatprep.subr.bf16.mxu0 0
        %796 = vmatpush1.bf16.xpose.msra.mxu0 0
        %797 = vmatprep.subr.bf16.mxu0 0
        %798 = vmatpush1.bf16.xpose.msra.mxu0 0
        %799 = vmatprep.mubr.bf16.mxu0 0
        %800 = vmatmul.mubr.bf16.gmra.mrb[0].mxu0 %v744
        %v801 = vpop.f32.mrb[0].mxu0
        %v802 = vadd.f32 0.0, %v801
        %v803 = vpop.f32.mrb[0].mxu0
        %v804 = vpop.f32.mrb[0].mxu0
        %v805 = vadd.f32 0.0, %v804
        %v806 = vpop.f32.mrb[0].mxu0
        %807 = vmatprep.mubr.bf16.mxu0 0
        %808 = vmatmul.mubr.bf16.gmra.mrb[0].mxu0 %v747
        %v809 = vpop.f32.mrb[0].mxu0
        %v810 = vadd.f32 0.0, %v809
        %v811 = vpop.f32.mrb[0].mxu0
        %v812 = vpop.f32.mrb[0].mxu0
        %v813 = vadd.f32 0.0, %v812
        %v814 = vpop.f32.mrb[0].mxu0
        %815 = vmatprep.mubr.bf16.mxu0 0
        %816 = vmatmul.mubr.bf16.gmra.mrb[0].mxu0 %v750
        %v817 = vpop.f32.mrb[0].mxu0
        %v818 = vadd.f32 0.0, %v817
        %v819 = vpop.f32.mrb[0].mxu0
        %v820 = vpop.f32.mrb[0].mxu0
        %v821 = vadd.f32 0.0, %v820
        %v822 = vpop.f32.mrb[0].mxu0
        %823 = vmatprep.mubr.bf16.mxu0 0
        %824 = vmatmul.mubr.bf16.gmra.mrb[0].mxu0 %v753
        %v825 = vpop.f32.mrb[0].mxu0
        %v826 = vadd.f32 0.0, %v825
        %v827 = vpop.f32.mrb[0].mxu0
        %v828 = vpop.f32.mrb[0].mxu0
        %v829 = vadd.f32 0.0, %v828
        %v830 = vpop.f32.mrb[0].mxu0
        %831 = vdwg.mxu0
        %836 = vrot.lane.b32.xlu0 %v702, 64
        %v837 = vpop.permute.xlu0 %836
        %838 = vrot.lane.b32.xlu0 %v703, 64
        %v839 = vpop.permute.xlu0 %838
        %840 = vrot.lane.b32.xlu0 %v704, 64
        %v841 = vpop.permute.xlu0 %840
        %842 = vrot.lane.b32.xlu0 %v705, 64
        %v843 = vpop.permute.xlu0 %842
        %v845 = vsel %vm742, %v702, 0
        %v848 = vsel %vm742, %v703, 0
        %v851 = vsel %vm742, %v704, 0
        %v854 = vsel %vm742, %v705, 0
        %v857 = vsel %vm742, %v837, 0
        %v860 = vsel %vm742, %v839, 0
        %v863 = vsel %vm742, %v841, 0
        %v866 = vsel %vm742, %v843, 0
        %868 = vmatprep.subr.bf16.mxu0 0
        %869 = vmatpush1.bf16.xpose.msra.mxu0 %v857
        %870 = vmatprep.subr.bf16.mxu0 0
        %871 = vmatpush1.bf16.xpose.msra.mxu0 %v860
        %872 = vmatprep.subr.bf16.mxu0 0
        %873 = vmatpush1.bf16.xpose.msra.mxu0 %v863
        %874 = vmatprep.subr.bf16.mxu0 0
        %875 = vmatpush1.bf16.xpose.msra.mxu0 %v866
        %876 = vmatprep.subr.bf16.mxu0 0
        %877 = vmatpush1.bf16.xpose.msra.mxu0 0
        %878 = vmatprep.subr.bf16.mxu0 0
        %879 = vmatpush1.bf16.xpose.msra.mxu0 0
        %880 = vmatprep.subr.bf16.mxu0 0
        %881 = vmatpush1.bf16.xpose.msra.mxu0 0
        %882 = vmatprep.subr.bf16.mxu0 0
        %883 = vmatpush1.bf16.xpose.msra.mxu0 0
        %884 = vmatprep.subr.bf16.mxu0 0
        %885 = vmatpush1.bf16.xpose.msra.mxu0 0
        %886 = vmatprep.subr.bf16.mxu0 0
        %887 = vmatpush1.bf16.xpose.msra.mxu0 0
        %888 = vmatprep.subr.bf16.mxu0 0
        %889 = vmatpush1.bf16.xpose.msra.mxu0 0
        %890 = vmatprep.subr.bf16.mxu0 0
        %891 = vmatpush1.bf16.xpose.msra.mxu0 0
        %892 = vmatprep.subr.bf16.mxu0 0
        %893 = vmatpush1.bf16.xpose.msra.mxu0 0
        %894 = vmatprep.subr.bf16.mxu0 0
        %895 = vmatpush1.bf16.xpose.msra.mxu0 0
        %896 = vmatprep.subr.bf16.mxu0 0
        %897 = vmatpush1.bf16.xpose.msra.mxu0 0
        %898 = vmatprep.subr.bf16.mxu0 0
        %899 = vmatpush1.bf16.xpose.msra.mxu0 0
        %900 = vmatprep.mubr.bf16.mxu0 0
        %901 = vmatmul.mubr.bf16.gmra.mrb[0].mxu0 %v845
        %v902 = vpop.f32.mrb[0].mxu0
        %v903 = vadd.f32 0.0, %v902
        %v904 = vpop.f32.mrb[0].mxu0
        %v905 = vpop.f32.mrb[0].mxu0
        %v906 = vadd.f32 0.0, %v905
        %v907 = vpop.f32.mrb[0].mxu0
        %908 = vmatprep.mubr.bf16.mxu0 0
        %909 = vmatmul.mubr.bf16.gmra.mrb[0].mxu0 %v848
        %v910 = vpop.f32.mrb[0].mxu0
        %v911 = vadd.f32 0.0, %v910
        %v912 = vpop.f32.mrb[0].mxu0
        %v913 = vpop.f32.mrb[0].mxu0
        %v914 = vadd.f32 0.0, %v913
        %v915 = vpop.f32.mrb[0].mxu0
        %916 = vmatprep.mubr.bf16.mxu0 0
        %917 = vmatmul.mubr.bf16.gmra.mrb[0].mxu0 %v851
        %v918 = vpop.f32.mrb[0].mxu0
        %v919 = vadd.f32 0.0, %v918
        %v920 = vpop.f32.mrb[0].mxu0
        %v921 = vpop.f32.mrb[0].mxu0
        %v922 = vadd.f32 0.0, %v921
        %v923 = vpop.f32.mrb[0].mxu0
        %924 = vmatprep.mubr.bf16.mxu0 0
        %925 = vmatmul.mubr.bf16.gmra.mrb[0].mxu0 %v854
        %v926 = vpop.f32.mrb[0].mxu0
        %v927 = vadd.f32 0.0, %v926
        %v928 = vpop.f32.mrb[0].mxu0
        %v929 = vpop.f32.mrb[0].mxu0
        %v930 = vadd.f32 0.0, %v929
        %v931 = vpop.f32.mrb[0].mxu0
        %932 = vdwg.mxu0
        %937 = vrot.lane.b32.xlu0 %v706, 64
        %v938 = vpop.permute.xlu0 %937
        %939 = vrot.lane.b32.xlu0 %v707, 64
        %v940 = vpop.permute.xlu0 %939
        %941 = vrot.lane.b32.xlu0 %v708, 64
        %v942 = vpop.permute.xlu0 %941
        %943 = vrot.lane.b32.xlu0 %v709, 64
        %v944 = vpop.permute.xlu0 %943
        %v946 = vsel %vm742, %v706, 0
        %v949 = vsel %vm742, %v707, 0
        %v952 = vsel %vm742, %v708, 0
        %v955 = vsel %vm742, %v709, 0
        %v958 = vsel %vm742, %v938, 0
        %v961 = vsel %vm742, %v940, 0
        %v964 = vsel %vm742, %v942, 0
        %v967 = vsel %vm742, %v944, 0
        %969 = vmatprep.subr.bf16.mxu0 0
        %970 = vmatpush1.bf16.xpose.msra.mxu0 %v958
        %971 = vmatprep.subr.bf16.mxu0 0
        %972 = vmatpush1.bf16.xpose.msra.mxu0 %v961
        %973 = vmatprep.subr.bf16.mxu0 0
        %974 = vmatpush1.bf16.xpose.msra.mxu0 %v964
        %975 = vmatprep.subr.bf16.mxu0 0
        %976 = vmatpush1.bf16.xpose.msra.mxu0 %v967
        %977 = vmatprep.subr.bf16.mxu0 0
        %978 = vmatpush1.bf16.xpose.msra.mxu0 0
        %979 = vmatprep.subr.bf16.mxu0 0
        %980 = vmatpush1.bf16.xpose.msra.mxu0 0
        %981 = vmatprep.subr.bf16.mxu0 0
        %982 = vmatpush1.bf16.xpose.msra.mxu0 0
        %983 = vmatprep.subr.bf16.mxu0 0
        %984 = vmatpush1.bf16.xpose.msra.mxu0 0
        %985 = vmatprep.subr.bf16.mxu0 0
        %986 = vmatpush1.bf16.xpose.msra.mxu0 0
        %987 = vmatprep.subr.bf16.mxu0 0
        %988 = vmatpush1.bf16.xpose.msra.mxu0 0
        %989 = vmatprep.subr.bf16.mxu0 0
        %990 = vmatpush1.bf16.xpose.msra.mxu0 0
        %991 = vmatprep.subr.bf16.mxu0 0
        %992 = vmatpush1.bf16.xpose.msra.mxu0 0
        %993 = vmatprep.subr.bf16.mxu0 0
        %994 = vmatpush1.bf16.xpose.msra.mxu0 0
        %995 = vmatprep.subr.bf16.mxu0 0
        %996 = vmatpush1.bf16.xpose.msra.mxu0 0
        %997 = vmatprep.subr.bf16.mxu0 0
        %998 = vmatpush1.bf16.xpose.msra.mxu0 0
        %999 = vmatprep.subr.bf16.mxu0 0
        %1000 = vmatpush1.bf16.xpose.msra.mxu0 0
        %1001 = vmatprep.mubr.bf16.mxu0 0
        %1002 = vmatmul.mubr.bf16.gmra.mrb[0].mxu0 %v946
        %v1003 = vpop.f32.mrb[0].mxu0
        %v1004 = vadd.f32 0.0, %v1003
        %v1005 = vpop.f32.mrb[0].mxu0
        %v1006 = vpop.f32.mrb[0].mxu0
        %v1007 = vadd.f32 0.0, %v1006
        %v1008 = vpop.f32.mrb[0].mxu0
        %1009 = vmatprep.mubr.bf16.mxu0 0
        %1010 = vmatmul.mubr.bf16.gmra.mrb[0].mxu0 %v949
        %v1011 = vpop.f32.mrb[0].mxu0
        %v1012 = vadd.f32 0.0, %v1011
        %v1013 = vpop.f32.mrb[0].mxu0
        %v1014 = vpop.f32.mrb[0].mxu0
        %v1015 = vadd.f32 0.0, %v1014
        %v1016 = vpop.f32.mrb[0].mxu0
        %1017 = vmatprep.mubr.bf16.mxu0 0
        %1018 = vmatmul.mubr.bf16.gmra.mrb[0].mxu0 %v952
        %v1019 = vpop.f32.mrb[0].mxu0
        %v1020 = vadd.f32 0.0, %v1019
        %v1021 = vpop.f32.mrb[0].mxu0
        %v1022 = vpop.f32.mrb[0].mxu0
        %v1023 = vadd.f32 0.0, %v1022
        %v1024 = vpop.f32.mrb[0].mxu0
        %1025 = vmatprep.mubr.bf16.mxu0 0
        %1026 = vmatmul.mubr.bf16.gmra.mrb[0].mxu0 %v955
        %v1027 = vpop.f32.mrb[0].mxu0
        %v1028 = vadd.f32 0.0, %v1027
        %v1029 = vpop.f32.mrb[0].mxu0
        %v1030 = vpop.f32.mrb[0].mxu0
        %v1031 = vadd.f32 0.0, %v1030
        %v1032 = vpop.f32.mrb[0].mxu0
        %1033 = vdwg.mxu0
        %1038 = vrot.lane.b32.xlu0 %v710, 64
        %v1039 = vpop.permute.xlu0 %1038
        %1040 = vrot.lane.b32.xlu0 %v711, 64
        %v1041 = vpop.permute.xlu0 %1040
        %1042 = vrot.lane.b32.xlu0 %v712, 64
        %v1043 = vpop.permute.xlu0 %1042
        %1044 = vrot.lane.b32.xlu0 %v713, 64
        %v1045 = vpop.permute.xlu0 %1044
        %v1047 = vsel %vm742, %v710, 0
        %v1050 = vsel %vm742, %v711, 0
        %v1053 = vsel %vm742, %v712, 0
        %v1056 = vsel %vm742, %v713, 0
        %v1059 = vsel %vm742, %v1039, 0
        %v1062 = vsel %vm742, %v1041, 0
        %v1065 = vsel %vm742, %v1043, 0
        %v1068 = vsel %vm742, %v1045, 0
        %1070 = vmatprep.subr.bf16.mxu0 0
        %1071 = vmatpush1.bf16.xpose.msra.mxu0 %v1059
        %1072 = vmatprep.subr.bf16.mxu0 0
        %1073 = vmatpush1.bf16.xpose.msra.mxu0 %v1062
        %1074 = vmatprep.subr.bf16.mxu0 0
        %1075 = vmatpush1.bf16.xpose.msra.mxu0 %v1065
        %1076 = vmatprep.subr.bf16.mxu0 0
        %1077 = vmatpush1.bf16.xpose.msra.mxu0 %v1068
        %1078 = vmatprep.subr.bf16.mxu0 0
        %1079 = vmatpush1.bf16.xpose.msra.mxu0 0
        %1080 = vmatprep.subr.bf16.mxu0 0
        %1081 = vmatpush1.bf16.xpose.msra.mxu0 0
        %1082 = vmatprep.subr.bf16.mxu0 0
        %1083 = vmatpush1.bf16.xpose.msra.mxu0 0
        %1084 = vmatprep.subr.bf16.mxu0 0
        %1085 = vmatpush1.bf16.xpose.msra.mxu0 0
        %1086 = vmatprep.subr.bf16.mxu0 0
        %1087 = vmatpush1.bf16.xpose.msra.mxu0 0
        %1088 = vmatprep.subr.bf16.mxu0 0
        %1089 = vmatpush1.bf16.xpose.msra.mxu0 0
        %1090 = vmatprep.subr.bf16.mxu0 0
        %1091 = vmatpush1.bf16.xpose.msra.mxu0 0
        %1092 = vmatprep.subr.bf16.mxu0 0
        %1093 = vmatpush1.bf16.xpose.msra.mxu0 0
        %1094 = vmatprep.subr.bf16.mxu0 0
        %1095 = vmatpush1.bf16.xpose.msra.mxu0 0
        %1096 = vmatprep.subr.bf16.mxu0 0
        %1097 = vmatpush1.bf16.xpose.msra.mxu0 0
        %1098 = vmatprep.subr.bf16.mxu0 0
        %1099 = vmatpush1.bf16.xpose.msra.mxu0 0
        %1100 = vmatprep.subr.bf16.mxu0 0
        %1101 = vmatpush1.bf16.xpose.msra.mxu0 0
        %1102 = vmatprep.mubr.bf16.mxu0 0
        %1103 = vmatmul.mubr.bf16.gmra.mrb[0].mxu0 %v1047
        %v1104 = vpop.f32.mrb[0].mxu0
        %v1105 = vadd.f32 0.0, %v1104
        %v1106 = vpop.f32.mrb[0].mxu0
        %v1107 = vpop.f32.mrb[0].mxu0
        %v1108 = vadd.f32 0.0, %v1107
        %v1109 = vpop.f32.mrb[0].mxu0
        %1110 = vmatprep.mubr.bf16.mxu0 0
        %1111 = vmatmul.mubr.bf16.gmra.mrb[0].mxu0 %v1050
        %v1112 = vpop.f32.mrb[0].mxu0
        %v1113 = vadd.f32 0.0, %v1112
        %v1114 = vpop.f32.mrb[0].mxu0
        %v1115 = vpop.f32.mrb[0].mxu0
        %v1116 = vadd.f32 0.0, %v1115
        %v1117 = vpop.f32.mrb[0].mxu0
        %1118 = vmatprep.mubr.bf16.mxu0 0
        %1119 = vmatmul.mubr.bf16.gmra.mrb[0].mxu0 %v1053
        %v1120 = vpop.f32.mrb[0].mxu0
        %v1121 = vadd.f32 0.0, %v1120
        %v1122 = vpop.f32.mrb[0].mxu0
        %v1123 = vpop.f32.mrb[0].mxu0
        %v1124 = vadd.f32 0.0, %v1123
        %v1125 = vpop.f32.mrb[0].mxu0
        %1126 = vmatprep.mubr.bf16.mxu0 0
        %1127 = vmatmul.mubr.bf16.gmra.mrb[0].mxu0 %v1056
        %v1128 = vpop.f32.mrb[0].mxu0
        %v1129 = vadd.f32 0.0, %v1128
        %v1130 = vpop.f32.mrb[0].mxu0
        %v1131 = vpop.f32.mrb[0].mxu0
        %v1132 = vadd.f32 0.0, %v1131
        %v1133 = vpop.f32.mrb[0].mxu0
        %1134 = vdwg.mxu0
        %v1135 = vsel %vm448, %v802, -inf
        %1136 = vmax.xlane.f32.xlu0 %v1135
        %v1137 = vpop.xlane.xlu0 %1136
        %v1138 = vsel %vm448, %v805, -inf
        %1139 = vmax.xlane.f32.xlu0 %v1138
        %v1140 = vpop.xlane.xlu0 %1139
        %v1141 = vsel %vm448, %v810, -inf
        %1142 = vmax.xlane.f32.xlu0 %v1141
        %v1143 = vpop.xlane.xlu0 %1142
        %v1144 = vsel %vm448, %v813, -inf
        %1145 = vmax.xlane.f32.xlu0 %v1144
        %v1146 = vpop.xlane.xlu0 %1145
        %v1147 = vsel %vm448, %v818, -inf
        %1148 = vmax.xlane.f32.xlu0 %v1147
        %v1149 = vpop.xlane.xlu0 %1148
        %v1150 = vsel %vm448, %v821, -inf
        %1151 = vmax.xlane.f32.xlu0 %v1150
        %v1152 = vpop.xlane.xlu0 %1151
        %v1153 = vsel %vm448, %v826, -inf
        %1154 = vmax.xlane.f32.xlu0 %v1153
        %v1155 = vpop.xlane.xlu0 %1154
        %v1156 = vsel %vm448, %v829, -inf
        %1157 = vmax.xlane.f32.xlu0 %v1156
        %v1158 = vpop.xlane.xlu0 %1157
        %v1159 = vsel %vm448, %v903, -inf
        %1160 = vmax.xlane.f32.xlu0 %v1159
        %v1161 = vpop.xlane.xlu0 %1160
        %v1162 = vsel %vm448, %v906, -inf
        %1163 = vmax.xlane.f32.xlu0 %v1162
        %v1164 = vpop.xlane.xlu0 %1163
        %v1165 = vsel %vm448, %v911, -inf
        %1166 = vmax.xlane.f32.xlu0 %v1165
        %v1167 = vpop.xlane.xlu0 %1166
        %v1168 = vsel %vm448, %v914, -inf
        %1169 = vmax.xlane.f32.xlu0 %v1168
        %v1170 = vpop.xlane.xlu0 %1169
        %v1171 = vsel %vm448, %v919, -inf
        %1172 = vmax.xlane.f32.xlu0 %v1171
        %v1173 = vpop.xlane.xlu0 %1172
        %v1174 = vsel %vm448, %v922, -inf
        %1175 = vmax.xlane.f32.xlu0 %v1174
        %v1176 = vpop.xlane.xlu0 %1175
        %v1177 = vsel %vm448, %v927, -inf
        %1178 = vmax.xlane.f32.xlu0 %v1177
        %v1179 = vpop.xlane.xlu0 %1178
        %v1180 = vsel %vm448, %v930, -inf
        %1181 = vmax.xlane.f32.xlu0 %v1180
        %v1182 = vpop.xlane.xlu0 %1181
        %v1183 = vsel %vm448, %v1004, -inf
        %1184 = vmax.xlane.f32.xlu0 %v1183
        %v1185 = vpop.xlane.xlu0 %1184
        %v1186 = vsel %vm448, %v1007, -inf
        %1187 = vmax.xlane.f32.xlu0 %v1186
        %v1188 = vpop.xlane.xlu0 %1187
        %v1189 = vsel %vm448, %v1012, -inf
        %1190 = vmax.xlane.f32.xlu0 %v1189
        %v1191 = vpop.xlane.xlu0 %1190
        %v1192 = vsel %vm448, %v1015, -inf
        %1193 = vmax.xlane.f32.xlu0 %v1192
        %v1194 = vpop.xlane.xlu0 %1193
        %v1195 = vsel %vm448, %v1020, -inf
        %1196 = vmax.xlane.f32.xlu0 %v1195
        %v1197 = vpop.xlane.xlu0 %1196
        %v1198 = vsel %vm448, %v1023, -inf
        %1199 = vmax.xlane.f32.xlu0 %v1198
        %v1200 = vpop.xlane.xlu0 %1199
        %v1201 = vsel %vm448, %v1028, -inf
        %1202 = vmax.xlane.f32.xlu0 %v1201
        %v1203 = vpop.xlane.xlu0 %1202
        %v1204 = vsel %vm448, %v1031, -inf
        %1205 = vmax.xlane.f32.xlu0 %v1204
        %v1206 = vpop.xlane.xlu0 %1205
        %v1207 = vsel %vm448, %v1105, -inf
        %1208 = vmax.xlane.f32.xlu0 %v1207
        %v1209 = vpop.xlane.xlu0 %1208
        %v1210 = vsel %vm448, %v1108, -inf
        %1211 = vmax.xlane.f32.xlu0 %v1210
        %v1212 = vpop.xlane.xlu0 %1211
        %v1213 = vsel %vm448, %v1113, -inf
        %1214 = vmax.xlane.f32.xlu0 %v1213
        %v1215 = vpop.xlane.xlu0 %1214
        %v1216 = vsel %vm448, %v1116, -inf
        %1217 = vmax.xlane.f32.xlu0 %v1216
        %v1218 = vpop.xlane.xlu0 %1217
        %v1219 = vsel %vm448, %v1121, -inf
        %1220 = vmax.xlane.f32.xlu0 %v1219
        %v1221 = vpop.xlane.xlu0 %1220
        %v1222 = vsel %vm448, %v1124, -inf
        %1223 = vmax.xlane.f32.xlu0 %v1222
        %v1224 = vpop.xlane.xlu0 %1223
        %v1225 = vsel %vm448, %v1129, -inf
        %1226 = vmax.xlane.f32.xlu0 %v1225
        %v1227 = vpop.xlane.xlu0 %1226
        %v1228 = vsel %vm448, %v1132, -inf
        %1229 = vmax.xlane.f32.xlu0 %v1228
        %v1230 = vpop.xlane.xlu0 %1229
        %v1231 = vsub.f32 %v802, %v1137
        %v1232 = vsub.f32 %v805, %v1140
        %v1233 = vsub.f32 %v810, %v1143
        %v1234 = vsub.f32 %v813, %v1146
        %v1235 = vsub.f32 %v818, %v1149
        %v1236 = vsub.f32 %v821, %v1152
        %v1237 = vsub.f32 %v826, %v1155
        %v1238 = vsub.f32 %v829, %v1158
        %v1239 = vsub.f32 %v903, %v1161
        %v1240 = vsub.f32 %v906, %v1164
        %v1241 = vsub.f32 %v911, %v1167
        %v1242 = vsub.f32 %v914, %v1170
        %v1243 = vsub.f32 %v919, %v1173
        %v1244 = vsub.f32 %v922, %v1176
        %v1245 = vsub.f32 %v927, %v1179
        %v1246 = vsub.f32 %v930, %v1182
        %v1247 = vsub.f32 %v1004, %v1185
        %v1248 = vsub.f32 %v1007, %v1188
        %v1249 = vsub.f32 %v1012, %v1191
        %v1250 = vsub.f32 %v1015, %v1194
        %v1251 = vsub.f32 %v1020, %v1197
        %v1252 = vsub.f32 %v1023, %v1200
        %v1253 = vsub.f32 %v1028, %v1203
        %v1254 = vsub.f32 %v1031, %v1206
        %v1255 = vsub.f32 %v1105, %v1209
        %v1256 = vsub.f32 %v1108, %v1212
        %v1257 = vsub.f32 %v1113, %v1215
        %v1258 = vsub.f32 %v1116, %v1218
        %v1259 = vsub.f32 %v1121, %v1221
        %v1260 = vsub.f32 %v1124, %v1224
        %v1261 = vsub.f32 %v1129, %v1227
        %v1262 = vsub.f32 %v1132, %v1230
        %v1263 = vmul.f32 %v1231, 1.442695
        %v1264 = vpow.pop %v1263
        %v1265 = vmul.f32 %v1232, 1.442695
        %v1266 = vpow.pop %v1265
        %v1267 = vmul.f32 %v1233, 1.442695
        %v1268 = vpow.pop %v1267
        %v1269 = vmul.f32 %v1234, 1.442695
        %v1270 = vpow.pop %v1269
        %v1271 = vmul.f32 %v1235, 1.442695
        %v1272 = vpow.pop %v1271
        %v1273 = vmul.f32 %v1236, 1.442695
        %v1274 = vpow.pop %v1273
        %v1275 = vmul.f32 %v1237, 1.442695
        %v1276 = vpow.pop %v1275
        %v1277 = vmul.f32 %v1238, 1.442695
        %v1278 = vpow.pop %v1277
        %v1279 = vmul.f32 %v1239, 1.442695
        %v1280 = vpow.pop %v1279
        %v1281 = vmul.f32 %v1240, 1.442695
        %v1282 = vpow.pop %v1281
        %v1283 = vmul.f32 %v1241, 1.442695
        %v1284 = vpow.pop %v1283
        %v1285 = vmul.f32 %v1242, 1.442695
        %v1286 = vpow.pop %v1285
        %v1287 = vmul.f32 %v1243, 1.442695
        %v1288 = vpow.pop %v1287
        %v1289 = vmul.f32 %v1244, 1.442695
        %v1290 = vpow.pop %v1289
        %v1291 = vmul.f32 %v1245, 1.442695
        %v1292 = vpow.pop %v1291
        %v1293 = vmul.f32 %v1246, 1.442695
        %v1294 = vpow.pop %v1293
        %v1295 = vmul.f32 %v1247, 1.442695
        %v1296 = vpow.pop %v1295
        %v1297 = vmul.f32 %v1248, 1.442695
        %v1298 = vpow.pop %v1297
        %v1299 = vmul.f32 %v1249, 1.442695
        %v1300 = vpow.pop %v1299
        %v1301 = vmul.f32 %v1250, 1.442695
        %v1302 = vpow.pop %v1301
        %v1303 = vmul.f32 %v1251, 1.442695
        %v1304 = vpow.pop %v1303
        %v1305 = vmul.f32 %v1252, 1.442695
        %v1306 = vpow.pop %v1305
        %v1307 = vmul.f32 %v1253, 1.442695
        %v1308 = vpow.pop %v1307
        %v1309 = vmul.f32 %v1254, 1.442695
        %v1310 = vpow.pop %v1309
        %v1311 = vmul.f32 %v1255, 1.442695
        %v1312 = vpow.pop %v1311
        %v1313 = vmul.f32 %v1256, 1.442695
        %v1314 = vpow.pop %v1313
        %v1315 = vmul.f32 %v1257, 1.442695
        %v1316 = vpow.pop %v1315
        %v1317 = vmul.f32 %v1258, 1.442695
        %v1318 = vpow.pop %v1317
        %v1319 = vmul.f32 %v1259, 1.442695
        %v1320 = vpow.pop %v1319
        %v1321 = vmul.f32 %v1260, 1.442695
        %v1322 = vpow.pop %v1321
        %v1323 = vmul.f32 %v1261, 1.442695
        %v1324 = vpow.pop %v1323
        %v1325 = vmul.f32 %v1262, 1.442695
        %v1326 = vpow.pop %v1325
        %v1327 = vsel %vm448, %v1264, 0.0
        %1328 = vadd.xlane.f32.xlu0 %v1327
        %v1329 = vpop.xlane.xlu0 %1328
        %v1330 = vsel %vm448, %v1266, 0.0
        %1331 = vadd.xlane.f32.xlu0 %v1330
        %v1332 = vpop.xlane.xlu0 %1331
        %v1333 = vsel %vm448, %v1268, 0.0
        %1334 = vadd.xlane.f32.xlu0 %v1333
        %v1335 = vpop.xlane.xlu0 %1334
        %v1336 = vsel %vm448, %v1270, 0.0
        %1337 = vadd.xlane.f32.xlu0 %v1336
        %v1338 = vpop.xlane.xlu0 %1337
        %v1339 = vsel %vm448, %v1272, 0.0
        %1340 = vadd.xlane.f32.xlu0 %v1339
        %v1341 = vpop.xlane.xlu0 %1340
        %v1342 = vsel %vm448, %v1274, 0.0
        %1343 = vadd.xlane.f32.xlu0 %v1342
        %v1344 = vpop.xlane.xlu0 %1343
        %v1345 = vsel %vm448, %v1276, 0.0
        %1346 = vadd.xlane.f32.xlu0 %v1345
        %v1347 = vpop.xlane.xlu0 %1346
        %v1348 = vsel %vm448, %v1278, 0.0
        %1349 = vadd.xlane.f32.xlu0 %v1348
        %v1350 = vpop.xlane.xlu0 %1349
        %v1351 = vsel %vm448, %v1280, 0.0
        %1352 = vadd.xlane.f32.xlu0 %v1351
        %v1353 = vpop.xlane.xlu0 %1352
        %v1354 = vsel %vm448, %v1282, 0.0
        %1355 = vadd.xlane.f32.xlu0 %v1354
        %v1356 = vpop.xlane.xlu0 %1355
        %v1357 = vsel %vm448, %v1284, 0.0
        %1358 = vadd.xlane.f32.xlu0 %v1357
        %v1359 = vpop.xlane.xlu0 %1358
        %v1360 = vsel %vm448, %v1286, 0.0
        %1361 = vadd.xlane.f32.xlu0 %v1360
        %v1362 = vpop.xlane.xlu0 %1361
        %v1363 = vsel %vm448, %v1288, 0.0
        %1364 = vadd.xlane.f32.xlu0 %v1363
        %v1365 = vpop.xlane.xlu0 %1364
        %v1366 = vsel %vm448, %v1290, 0.0
        %1367 = vadd.xlane.f32.xlu0 %v1366
        %v1368 = vpop.xlane.xlu0 %1367
        %v1369 = vsel %vm448, %v1292, 0.0
        %1370 = vadd.xlane.f32.xlu0 %v1369
        %v1371 = vpop.xlane.xlu0 %1370
        %v1372 = vsel %vm448, %v1294, 0.0
        %1373 = vadd.xlane.f32.xlu0 %v1372
        %v1374 = vpop.xlane.xlu0 %1373
        %v1375 = vsel %vm448, %v1296, 0.0
        %1376 = vadd.xlane.f32.xlu0 %v1375
        %v1377 = vpop.xlane.xlu0 %1376
        %v1378 = vsel %vm448, %v1298, 0.0
        %1379 = vadd.xlane.f32.xlu0 %v1378
        %v1380 = vpop.xlane.xlu0 %1379
        %v1381 = vsel %vm448, %v1300, 0.0
        %1382 = vadd.xlane.f32.xlu0 %v1381
        %v1383 = vpop.xlane.xlu0 %1382
        %v1384 = vsel %vm448, %v1302, 0.0
        %1385 = vadd.xlane.f32.xlu0 %v1384
        %v1386 = vpop.xlane.xlu0 %1385
        %v1387 = vsel %vm448, %v1304, 0.0
        %1388 = vadd.xlane.f32.xlu0 %v1387
        %v1389 = vpop.xlane.xlu0 %1388
        %v1390 = vsel %vm448, %v1306, 0.0
        %1391 = vadd.xlane.f32.xlu0 %v1390
        %v1392 = vpop.xlane.xlu0 %1391
        %v1393 = vsel %vm448, %v1308, 0.0
        %1394 = vadd.xlane.f32.xlu0 %v1393
        %v1395 = vpop.xlane.xlu0 %1394
        %v1396 = vsel %vm448, %v1310, 0.0
        %1397 = vadd.xlane.f32.xlu0 %v1396
        %v1398 = vpop.xlane.xlu0 %1397
        %v1399 = vsel %vm448, %v1312, 0.0
        %1400 = vadd.xlane.f32.xlu0 %v1399
        %v1401 = vpop.xlane.xlu0 %1400
        %v1402 = vsel %vm448, %v1314, 0.0
        %1403 = vadd.xlane.f32.xlu0 %v1402
        %v1404 = vpop.xlane.xlu0 %1403
        %v1405 = vsel %vm448, %v1316, 0.0
        %1406 = vadd.xlane.f32.xlu0 %v1405
        %v1407 = vpop.xlane.xlu0 %1406
        %v1408 = vsel %vm448, %v1318, 0.0
        %1409 = vadd.xlane.f32.xlu0 %v1408
        %v1410 = vpop.xlane.xlu0 %1409
        %v1411 = vsel %vm448, %v1320, 0.0
        %1412 = vadd.xlane.f32.xlu0 %v1411
        %v1413 = vpop.xlane.xlu0 %1412
        %v1414 = vsel %vm448, %v1322, 0.0
        %1415 = vadd.xlane.f32.xlu0 %v1414
        %v1416 = vpop.xlane.xlu0 %1415
        %v1417 = vsel %vm448, %v1324, 0.0
        %1418 = vadd.xlane.f32.xlu0 %v1417
        %v1419 = vpop.xlane.xlu0 %1418
        %v1420 = vsel %vm448, %v1326, 0.0
        %1421 = vadd.xlane.f32.xlu0 %v1420
        %v1422 = vpop.xlane.xlu0 %1421
        %v1423 = vrcp.pop %v1329
        %v1424 = vmul.f32 1.0, %v1423
        %v1425 = vrcp.pop %v1332
        %v1426 = vmul.f32 1.0, %v1425
        %v1427 = vrcp.pop %v1335
        %v1428 = vmul.f32 1.0, %v1427
        %v1429 = vrcp.pop %v1338
        %v1430 = vmul.f32 1.0, %v1429
        %v1431 = vrcp.pop %v1341
        %v1432 = vmul.f32 1.0, %v1431
        %v1433 = vrcp.pop %v1344
        %v1434 = vmul.f32 1.0, %v1433
        %v1435 = vrcp.pop %v1347
        %v1436 = vmul.f32 1.0, %v1435
        %v1437 = vrcp.pop %v1350
        %v1438 = vmul.f32 1.0, %v1437
        %v1439 = vrcp.pop %v1353
        %v1440 = vmul.f32 1.0, %v1439
        %v1441 = vrcp.pop %v1356
        %v1442 = vmul.f32 1.0, %v1441
        %v1443 = vrcp.pop %v1359
        %v1444 = vmul.f32 1.0, %v1443
        %v1445 = vrcp.pop %v1362
        %v1446 = vmul.f32 1.0, %v1445
        %v1447 = vrcp.pop %v1365
        %v1448 = vmul.f32 1.0, %v1447
        %v1449 = vrcp.pop %v1368
        %v1450 = vmul.f32 1.0, %v1449
        %v1451 = vrcp.pop %v1371
        %v1452 = vmul.f32 1.0, %v1451
        %v1453 = vrcp.pop %v1374
        %v1454 = vmul.f32 1.0, %v1453
        %v1455 = vrcp.pop %v1377
        %v1456 = vmul.f32 1.0, %v1455
        %v1457 = vrcp.pop %v1380
        %v1458 = vmul.f32 1.0, %v1457
        %v1459 = vrcp.pop %v1383
        %v1460 = vmul.f32 1.0, %v1459
        %v1461 = vrcp.pop %v1386
        %v1462 = vmul.f32 1.0, %v1461
        %v1463 = vrcp.pop %v1389
        %v1464 = vmul.f32 1.0, %v1463
        %v1465 = vrcp.pop %v1392
        %v1466 = vmul.f32 1.0, %v1465
        %v1467 = vrcp.pop %v1395
        %v1468 = vmul.f32 1.0, %v1467
        %v1469 = vrcp.pop %v1398
        %v1470 = vmul.f32 1.0, %v1469
        %v1471 = vrcp.pop %v1401
        %v1472 = vmul.f32 1.0, %v1471
        %v1473 = vrcp.pop %v1404
        %v1474 = vmul.f32 1.0, %v1473
        %v1475 = vrcp.pop %v1407
        %v1476 = vmul.f32 1.0, %v1475
        %v1477 = vrcp.pop %v1410
        %v1478 = vmul.f32 1.0, %v1477
        %v1479 = vrcp.pop %v1413
        %v1480 = vmul.f32 1.0, %v1479
        %v1481 = vrcp.pop %v1416
        %v1482 = vmul.f32 1.0, %v1481
        %v1483 = vrcp.pop %v1419
        %v1484 = vmul.f32 1.0, %v1483
        %v1485 = vrcp.pop %v1422
        %v1486 = vmul.f32 1.0, %v1485
        %v1487 = vmul.f32 %v1264, %v1424
        %v1488 = vmul.f32 %v1266, %v1426
        %v1489 = vmul.f32 %v1268, %v1428
        %v1490 = vmul.f32 %v1270, %v1430
        %v1491 = vmul.f32 %v1272, %v1432
        %v1492 = vmul.f32 %v1274, %v1434
        %v1493 = vmul.f32 %v1276, %v1436
        %v1494 = vmul.f32 %v1278, %v1438
        %v1495 = vmul.f32 %v1280, %v1440
        %v1496 = vmul.f32 %v1282, %v1442
        %v1497 = vmul.f32 %v1284, %v1444
        %v1498 = vmul.f32 %v1286, %v1446
        %v1499 = vmul.f32 %v1288, %v1448
        %v1500 = vmul.f32 %v1290, %v1450
        %v1501 = vmul.f32 %v1292, %v1452
        %v1502 = vmul.f32 %v1294, %v1454
        %v1503 = vmul.f32 %v1296, %v1456
        %v1504 = vmul.f32 %v1298, %v1458
        %v1505 = vmul.f32 %v1300, %v1460
        %v1506 = vmul.f32 %v1302, %v1462
        %v1507 = vmul.f32 %v1304, %v1464
        %v1508 = vmul.f32 %v1306, %v1466
        %v1509 = vmul.f32 %v1308, %v1468
        %v1510 = vmul.f32 %v1310, %v1470
        %v1511 = vmul.f32 %v1312, %v1472
        %v1512 = vmul.f32 %v1314, %v1474
        %v1513 = vmul.f32 %v1316, %v1476
        %v1514 = vmul.f32 %v1318, %v1478
        %v1515 = vmul.f32 %v1320, %v1480
        %v1516 = vmul.f32 %v1322, %v1482
        %v1517 = vmul.f32 %v1324, %v1484
        %v1518 = vmul.f32 %v1326, %v1486
        %v1519 = vpack.c.bf16 %v1488, %v1487
        %v1520 = vpack.c.bf16 %v1490, %v1489
        %v1521 = vpack.c.bf16 %v1492, %v1491
        %v1522 = vpack.c.bf16 %v1494, %v1493
        %v1523 = vpack.c.bf16 %v1496, %v1495
        %v1524 = vpack.c.bf16 %v1498, %v1497
        %v1525 = vpack.c.bf16 %v1500, %v1499
        %v1526 = vpack.c.bf16 %v1502, %v1501
        %v1527 = vpack.c.bf16 %v1504, %v1503
        %v1528 = vpack.c.bf16 %v1506, %v1505
        %v1529 = vpack.c.bf16 %v1508, %v1507
        %v1530 = vpack.c.bf16 %v1510, %v1509
        %v1531 = vpack.c.bf16 %v1512, %v1511
        %v1532 = vpack.c.bf16 %v1514, %v1513
        %v1533 = vpack.c.bf16 %v1516, %v1515
        %v1534 = vpack.c.bf16 %v1518, %v1517
        %v1536 = vsel %vm448, %v1519, 0
        %v1539 = vsel %vm448, %v1520, 0
        %v1542 = vsel %vm448, %v1521, 0
        %v1545 = vsel %vm448, %v1522, 0
        %1547 = vmatprep.subr.bf16.mxu0 0
        %1548 = vmatpush1.bf16.msra.mxu0 %v714
        %1549 = vmatprep.subr.bf16.mxu0 0
        %1550 = vmatpush1.bf16.msra.mxu0 %v715
        %1551 = vmatprep.subr.bf16.mxu0 0
        %1552 = vmatpush1.bf16.msra.mxu0 %v716
        %1553 = vmatprep.subr.bf16.mxu0 0
        %1554 = vmatpush1.bf16.msra.mxu0 %v717
        %1555 = vmatprep.subr.bf16.mxu0 0
        %1556 = vmatpush1.bf16.msra.mxu0 0
        %1557 = vmatprep.subr.bf16.mxu0 0
        %1558 = vmatpush1.bf16.msra.mxu0 0
        %1559 = vmatprep.subr.bf16.mxu0 0
        %1560 = vmatpush1.bf16.msra.mxu0 0
        %1561 = vmatprep.subr.bf16.mxu0 0
        %1562 = vmatpush1.bf16.msra.mxu0 0
        %1563 = vmatprep.subr.bf16.mxu0 0
        %1564 = vmatpush1.bf16.msra.mxu0 0
        %1565 = vmatprep.subr.bf16.mxu0 0
        %1566 = vmatpush1.bf16.msra.mxu0 0
        %1567 = vmatprep.subr.bf16.mxu0 0
        %1568 = vmatpush1.bf16.msra.mxu0 0
        %1569 = vmatprep.subr.bf16.mxu0 0
        %1570 = vmatpush1.bf16.msra.mxu0 0
        %1571 = vmatprep.subr.bf16.mxu0 0
        %1572 = vmatpush1.bf16.msra.mxu0 0
        %1573 = vmatprep.subr.bf16.mxu0 0
        %1574 = vmatpush1.bf16.msra.mxu0 0
        %1575 = vmatprep.subr.bf16.mxu0 0
        %1576 = vmatpush1.bf16.msra.mxu0 0
        %1577 = vmatprep.subr.bf16.mxu0 0
        %1578 = vmatpush1.bf16.msra.mxu0 0
        %1579 = vmatprep.mubr.bf16.mxu0 0
        %1580 = vmatmul.mubr.bf16.gmra.mrb[0].mxu0 %v1536
        %v1581 = vpop.f32.mrb[0].mxu0
        %v1582 = vadd.f32 0.0, %v1581
        %v1583 = vpop.f32.mrb[0].mxu0
        %v1584 = vpop.f32.mrb[0].mxu0
        %v1585 = vadd.f32 0.0, %v1584
        %v1586 = vpop.f32.mrb[0].mxu0
        %1587 = vmatprep.mubr.bf16.mxu0 0
        %1588 = vmatmul.mubr.bf16.gmra.mrb[0].mxu0 %v1539
        %v1589 = vpop.f32.mrb[0].mxu0
        %v1590 = vadd.f32 0.0, %v1589
        %v1591 = vpop.f32.mrb[0].mxu0
        %v1592 = vpop.f32.mrb[0].mxu0
        %v1593 = vadd.f32 0.0, %v1592
        %v1594 = vpop.f32.mrb[0].mxu0
        %1595 = vmatprep.mubr.bf16.mxu0 0
        %1596 = vmatmul.mubr.bf16.gmra.mrb[0].mxu0 %v1542
        %v1597 = vpop.f32.mrb[0].mxu0
        %v1598 = vadd.f32 0.0, %v1597
        %v1599 = vpop.f32.mrb[0].mxu0
        %v1600 = vpop.f32.mrb[0].mxu0
        %v1601 = vadd.f32 0.0, %v1600
        %v1602 = vpop.f32.mrb[0].mxu0
        %1603 = vmatprep.mubr.bf16.mxu0 0
        %1604 = vmatmul.mubr.bf16.gmra.mrb[0].mxu0 %v1545
        %v1605 = vpop.f32.mrb[0].mxu0
        %v1606 = vadd.f32 0.0, %v1605
        %v1607 = vpop.f32.mrb[0].mxu0
        %v1608 = vpop.f32.mrb[0].mxu0
        %v1609 = vadd.f32 0.0, %v1608
        %v1610 = vpop.f32.mrb[0].mxu0
        %1611 = vdwg.mxu0
        %v1613 = vsel %vm448, %v1523, 0
        %v1616 = vsel %vm448, %v1524, 0
        %v1619 = vsel %vm448, %v1525, 0
        %v1622 = vsel %vm448, %v1526, 0
        %1624 = vmatprep.subr.bf16.mxu0 0
        %1625 = vmatpush1.bf16.msra.mxu0 %v718
        %1626 = vmatprep.subr.bf16.mxu0 0
        %1627 = vmatpush1.bf16.msra.mxu0 %v719
        %1628 = vmatprep.subr.bf16.mxu0 0
        %1629 = vmatpush1.bf16.msra.mxu0 %v720
        %1630 = vmatprep.subr.bf16.mxu0 0
        %1631 = vmatpush1.bf16.msra.mxu0 %v721
        %1632 = vmatprep.subr.bf16.mxu0 0
        %1633 = vmatpush1.bf16.msra.mxu0 0
        %1634 = vmatprep.subr.bf16.mxu0 0
        %1635 = vmatpush1.bf16.msra.mxu0 0
        %1636 = vmatprep.subr.bf16.mxu0 0
        %1637 = vmatpush1.bf16.msra.mxu0 0
        %1638 = vmatprep.subr.bf16.mxu0 0
        %1639 = vmatpush1.bf16.msra.mxu0 0
        %1640 = vmatprep.subr.bf16.mxu0 0
        %1641 = vmatpush1.bf16.msra.mxu0 0
        %1642 = vmatprep.subr.bf16.mxu0 0
        %1643 = vmatpush1.bf16.msra.mxu0 0
        %1644 = vmatprep.subr.bf16.mxu0 0
        %1645 = vmatpush1.bf16.msra.mxu0 0
        %1646 = vmatprep.subr.bf16.mxu0 0
        %1647 = vmatpush1.bf16.msra.mxu0 0
        %1648 = vmatprep.subr.bf16.mxu0 0
        %1649 = vmatpush1.bf16.msra.mxu0 0
        %1650 = vmatprep.subr.bf16.mxu0 0
        %1651 = vmatpush1.bf16.msra.mxu0 0
        %1652 = vmatprep.subr.bf16.mxu0 0
        %1653 = vmatpush1.bf16.msra.mxu0 0
        %1654 = vmatprep.subr.bf16.mxu0 0
        %1655 = vmatpush1.bf16.msra.mxu0 0
        %1656 = vmatprep.mubr.bf16.mxu0 0
        %1657 = vmatmul.mubr.bf16.gmra.mrb[0].mxu0 %v1613
        %v1658 = vpop.f32.mrb[0].mxu0
        %v1659 = vadd.f32 0.0, %v1658
        %v1660 = vpop.f32.mrb[0].mxu0
        %v1661 = vpop.f32.mrb[0].mxu0
        %v1662 = vadd.f32 0.0, %v1661
        %v1663 = vpop.f32.mrb[0].mxu0
        %1664 = vmatprep.mubr.bf16.mxu0 0
        %1665 = vmatmul.mubr.bf16.gmra.mrb[0].mxu0 %v1616
        %v1666 = vpop.f32.mrb[0].mxu0
        %v1667 = vadd.f32 0.0, %v1666
        %v1668 = vpop.f32.mrb[0].mxu0
        %v1669 = vpop.f32.mrb[0].mxu0
        %v1670 = vadd.f32 0.0, %v1669
        %v1671 = vpop.f32.mrb[0].mxu0
        %1672 = vmatprep.mubr.bf16.mxu0 0
        %1673 = vmatmul.mubr.bf16.gmra.mrb[0].mxu0 %v1619
        %v1674 = vpop.f32.mrb[0].mxu0
        %v1675 = vadd.f32 0.0, %v1674
        %v1676 = vpop.f32.mrb[0].mxu0
        %v1677 = vpop.f32.mrb[0].mxu0
        %v1678 = vadd.f32 0.0, %v1677
        %v1679 = vpop.f32.mrb[0].mxu0
        %1680 = vmatprep.mubr.bf16.mxu0 0
        %1681 = vmatmul.mubr.bf16.gmra.mrb[0].mxu0 %v1622
        %v1682 = vpop.f32.mrb[0].mxu0
        %v1683 = vadd.f32 0.0, %v1682
        %v1684 = vpop.f32.mrb[0].mxu0
        %v1685 = vpop.f32.mrb[0].mxu0
        %v1686 = vadd.f32 0.0, %v1685
        %v1687 = vpop.f32.mrb[0].mxu0
        %1688 = vdwg.mxu0
        %v1690 = vsel %vm448, %v1527, 0
        %v1693 = vsel %vm448, %v1528, 0
        %v1696 = vsel %vm448, %v1529, 0
        %v1699 = vsel %vm448, %v1530, 0
        %1701 = vmatprep.subr.bf16.mxu0 0
        %1702 = vmatpush1.bf16.msra.mxu0 %v722
        %1703 = vmatprep.subr.bf16.mxu0 0
        %1704 = vmatpush1.bf16.msra.mxu0 %v723
        %1705 = vmatprep.subr.bf16.mxu0 0
        %1706 = vmatpush1.bf16.msra.mxu0 %v724
        %1707 = vmatprep.subr.bf16.mxu0 0
        %1708 = vmatpush1.bf16.msra.mxu0 %v725
        %1709 = vmatprep.subr.bf16.mxu0 0
        %1710 = vmatpush1.bf16.msra.mxu0 0
        %1711 = vmatprep.subr.bf16.mxu0 0
        %1712 = vmatpush1.bf16.msra.mxu0 0
        %1713 = vmatprep.subr.bf16.mxu0 0
        %1714 = vmatpush1.bf16.msra.mxu0 0
        %1715 = vmatprep.subr.bf16.mxu0 0
        %1716 = vmatpush1.bf16.msra.mxu0 0
        %1717 = vmatprep.subr.bf16.mxu0 0
        %1718 = vmatpush1.bf16.msra.mxu0 0
        %1719 = vmatprep.subr.bf16.mxu0 0
        %1720 = vmatpush1.bf16.msra.mxu0 0
        %1721 = vmatprep.subr.bf16.mxu0 0
        %1722 = vmatpush1.bf16.msra.mxu0 0
        %1723 = vmatprep.subr.bf16.mxu0 0
        %1724 = vmatpush1.bf16.msra.mxu0 0
        %1725 = vmatprep.subr.bf16.mxu0 0
        %1726 = vmatpush1.bf16.msra.mxu0 0
        %1727 = vmatprep.subr.bf16.mxu0 0
        %1728 = vmatpush1.bf16.msra.mxu0 0
        %1729 = vmatprep.subr.bf16.mxu0 0
        %1730 = vmatpush1.bf16.msra.mxu0 0
        %1731 = vmatprep.subr.bf16.mxu0 0
        %1732 = vmatpush1.bf16.msra.mxu0 0
        %1733 = vmatprep.mubr.bf16.mxu0 0
        %1734 = vmatmul.mubr.bf16.gmra.mrb[0].mxu0 %v1690
        %v1735 = vpop.f32.mrb[0].mxu0
        %v1736 = vadd.f32 0.0, %v1735
        %v1737 = vpop.f32.mrb[0].mxu0
        %v1738 = vpop.f32.mrb[0].mxu0
        %v1739 = vadd.f32 0.0, %v1738
        %v1740 = vpop.f32.mrb[0].mxu0
        %1741 = vmatprep.mubr.bf16.mxu0 0
        %1742 = vmatmul.mubr.bf16.gmra.mrb[0].mxu0 %v1693
        %v1743 = vpop.f32.mrb[0].mxu0
        %v1744 = vadd.f32 0.0, %v1743
        %v1745 = vpop.f32.mrb[0].mxu0
        %v1746 = vpop.f32.mrb[0].mxu0
        %v1747 = vadd.f32 0.0, %v1746
        %v1748 = vpop.f32.mrb[0].mxu0
        %1749 = vmatprep.mubr.bf16.mxu0 0
        %1750 = vmatmul.mubr.bf16.gmra.mrb[0].mxu0 %v1696
        %v1751 = vpop.f32.mrb[0].mxu0
        %v1752 = vadd.f32 0.0, %v1751
        %v1753 = vpop.f32.mrb[0].mxu0
        %v1754 = vpop.f32.mrb[0].mxu0
        %v1755 = vadd.f32 0.0, %v1754
        %v1756 = vpop.f32.mrb[0].mxu0
        %1757 = vmatprep.mubr.bf16.mxu0 0
        %1758 = vmatmul.mubr.bf16.gmra.mrb[0].mxu0 %v1699
        %v1759 = vpop.f32.mrb[0].mxu0
        %v1760 = vadd.f32 0.0, %v1759
        %v1761 = vpop.f32.mrb[0].mxu0
        %v1762 = vpop.f32.mrb[0].mxu0
        %v1763 = vadd.f32 0.0, %v1762
        %v1764 = vpop.f32.mrb[0].mxu0
        %1765 = vdwg.mxu0
        %v1767 = vsel %vm448, %v1531, 0
        %v1770 = vsel %vm448, %v1532, 0
        %v1773 = vsel %vm448, %v1533, 0
        %v1776 = vsel %vm448, %v1534, 0
        %1778 = vmatprep.subr.bf16.mxu0 0
        %1779 = vmatpush1.bf16.msra.mxu0 %v726
        %1780 = vmatprep.subr.bf16.mxu0 0
        %1781 = vmatpush1.bf16.msra.mxu0 %v727
        %1782 = vmatprep.subr.bf16.mxu0 0
        %1783 = vmatpush1.bf16.msra.mxu0 %v728
        %1784 = vmatprep.subr.bf16.mxu0 0
        %1785 = vmatpush1.bf16.msra.mxu0 %v729
        %1786 = vmatprep.subr.bf16.mxu0 0
        %1787 = vmatpush1.bf16.msra.mxu0 0
        %1788 = vmatprep.subr.bf16.mxu0 0
        %1789 = vmatpush1.bf16.msra.mxu0 0
        %1790 = vmatprep.subr.bf16.mxu0 0
        %1791 = vmatpush1.bf16.msra.mxu0 0
        %1792 = vmatprep.subr.bf16.mxu0 0
        %1793 = vmatpush1.bf16.msra.mxu0 0
        %1794 = vmatprep.subr.bf16.mxu0 0
        %1795 = vmatpush1.bf16.msra.mxu0 0
        %1796 = vmatprep.subr.bf16.mxu0 0
        %1797 = vmatpush1.bf16.msra.mxu0 0
        %1798 = vmatprep.subr.bf16.mxu0 0
        %1799 = vmatpush1.bf16.msra.mxu0 0
        %1800 = vmatprep.subr.bf16.mxu0 0
        %1801 = vmatpush1.bf16.msra.mxu0 0
        %1802 = vmatprep.subr.bf16.mxu0 0
        %1803 = vmatpush1.bf16.msra.mxu0 0
        %1804 = vmatprep.subr.bf16.mxu0 0
        %1805 = vmatpush1.bf16.msra.mxu0 0
        %1806 = vmatprep.subr.bf16.mxu0 0
        %1807 = vmatpush1.bf16.msra.mxu0 0
        %1808 = vmatprep.subr.bf16.mxu0 0
        %1809 = vmatpush1.bf16.msra.mxu0 0
        %1810 = vmatprep.mubr.bf16.mxu0 0
        %1811 = vmatmul.mubr.bf16.gmra.mrb[0].mxu0 %v1767
        %v1812 = vpop.f32.mrb[0].mxu0
        %v1813 = vadd.f32 0.0, %v1812
        %v1814 = vpop.f32.mrb[0].mxu0
        %v1815 = vpop.f32.mrb[0].mxu0
        %v1816 = vadd.f32 0.0, %v1815
        %v1817 = vpop.f32.mrb[0].mxu0
        %1818 = vmatprep.mubr.bf16.mxu0 0
        %1819 = vmatmul.mubr.bf16.gmra.mrb[0].mxu0 %v1770
        %v1820 = vpop.f32.mrb[0].mxu0
        %v1821 = vadd.f32 0.0, %v1820
        %v1822 = vpop.f32.mrb[0].mxu0
        %v1823 = vpop.f32.mrb[0].mxu0
        %v1824 = vadd.f32 0.0, %v1823
        %v1825 = vpop.f32.mrb[0].mxu0
        %1826 = vmatprep.mubr.bf16.mxu0 0
        %1827 = vmatmul.mubr.bf16.gmra.mrb[0].mxu0 %v1773
        %v1828 = vpop.f32.mrb[0].mxu0
        %v1829 = vadd.f32 0.0, %v1828
        %v1830 = vpop.f32.mrb[0].mxu0
        %v1831 = vpop.f32.mrb[0].mxu0
        %v1832 = vadd.f32 0.0, %v1831
        %v1833 = vpop.f32.mrb[0].mxu0
        %1834 = vmatprep.mubr.bf16.mxu0 0
        %1835 = vmatmul.mubr.bf16.gmra.mrb[0].mxu0 %v1776
        %v1836 = vpop.f32.mrb[0].mxu0
        %v1837 = vadd.f32 0.0, %v1836
        %v1838 = vpop.f32.mrb[0].mxu0
        %v1839 = vpop.f32.mrb[0].mxu0
        %v1840 = vadd.f32 0.0, %v1839
        %v1841 = vpop.f32.mrb[0].mxu0
        %1842 = vdwg.mxu0
        %v1843 = vpack.c.bf16 %v1585, %v1582
        %v1844 = vpack.c.bf16 %v1593, %v1590
        %v1845 = vpack.c.bf16 %v1601, %v1598
        %v1846 = vpack.c.bf16 %v1609, %v1606
        %v1847 = vpack.c.bf16 %v1662, %v1659
        %v1848 = vpack.c.bf16 %v1670, %v1667
        %v1849 = vpack.c.bf16 %v1678, %v1675
        %v1850 = vpack.c.bf16 %v1686, %v1683
        %v1851 = vpack.c.bf16 %v1739, %v1736
        %v1852 = vpack.c.bf16 %v1747, %v1744
        %v1853 = vpack.c.bf16 %v1755, %v1752
        %v1854 = vpack.c.bf16 %v1763, %v1760
        %v1855 = vpack.c.bf16 %v1816, %v1813
        %v1856 = vpack.c.bf16 %v1824, %v1821
        %v1857 = vpack.c.bf16 %v1832, %v1829
        %v1858 = vpack.c.bf16 %v1840, %v1837
        %1859 = vrot.lane.b32.xlu0 %v698, 96
        %v1860 = vpop.permute.xlu0 %1859
        %1861 = vrot.lane.b32.xlu0 %v699, 96
        %v1862 = vpop.permute.xlu0 %1861
        %1863 = vrot.lane.b32.xlu0 %v700, 96
        %v1864 = vpop.permute.xlu0 %1863
        %1865 = vrot.lane.b32.xlu0 %v701, 96
        %v1866 = vpop.permute.xlu0 %1865
        %1867 = vrot.lane.b32.xlu0 %v698, 32
        %v1868 = vpop.permute.xlu0 %1867
        %1869 = vrot.lane.b32.xlu0 %v699, 32
        %v1870 = vpop.permute.xlu0 %1869
        %1871 = vrot.lane.b32.xlu0 %v700, 32
        %v1872 = vpop.permute.xlu0 %1871
        %1873 = vrot.lane.b32.xlu0 %v701, 32
        %v1874 = vpop.permute.xlu0 %1873
        %v1876 = vsel %vm742, %v1860, 0
        %v1879 = vsel %vm742, %v1862, 0
        %v1882 = vsel %vm742, %v1864, 0
        %v1885 = vsel %vm742, %v1866, 0
        %v1888 = vsel %vm742, %v1868, 0
        %v1891 = vsel %vm742, %v1870, 0
        %v1894 = vsel %vm742, %v1872, 0
        %v1897 = vsel %vm742, %v1874, 0
        %1899 = vmatprep.subr.bf16.mxu0 0
        %1900 = vmatpush1.bf16.xpose.msra.mxu0 %v1888
        %1901 = vmatprep.subr.bf16.mxu0 0
        %1902 = vmatpush1.bf16.xpose.msra.mxu0 %v1891
        %1903 = vmatprep.subr.bf16.mxu0 0
        %1904 = vmatpush1.bf16.xpose.msra.mxu0 %v1894
        %1905 = vmatprep.subr.bf16.mxu0 0
        %1906 = vmatpush1.bf16.xpose.msra.mxu0 %v1897
        %1907 = vmatprep.subr.bf16.mxu0 0
        %1908 = vmatpush1.bf16.xpose.msra.mxu0 0
        %1909 = vmatprep.subr.bf16.mxu0 0
        %1910 = vmatpush1.bf16.xpose.msra.mxu0 0
        %1911 = vmatprep.subr.bf16.mxu0 0
        %1912 = vmatpush1.bf16.xpose.msra.mxu0 0
        %1913 = vmatprep.subr.bf16.mxu0 0
        %1914 = vmatpush1.bf16.xpose.msra.mxu0 0
        %1915 = vmatprep.subr.bf16.mxu0 0
        %1916 = vmatpush1.bf16.xpose.msra.mxu0 0
        %1917 = vmatprep.subr.bf16.mxu0 0
        %1918 = vmatpush1.bf16.xpose.msra.mxu0 0
        %1919 = vmatprep.subr.bf16.mxu0 0
        %1920 = vmatpush1.bf16.xpose.msra.mxu0 0
        %1921 = vmatprep.subr.bf16.mxu0 0
        %1922 = vmatpush1.bf16.xpose.msra.mxu0 0
        %1923 = vmatprep.subr.bf16.mxu0 0
        %1924 = vmatpush1.bf16.xpose.msra.mxu0 0
        %1925 = vmatprep.subr.bf16.mxu0 0
        %1926 = vmatpush1.bf16.xpose.msra.mxu0 0
        %1927 = vmatprep.subr.bf16.mxu0 0
        %1928 = vmatpush1.bf16.xpose.msra.mxu0 0
        %1929 = vmatprep.subr.bf16.mxu0 0
        %1930 = vmatpush1.bf16.xpose.msra.mxu0 0
        %1931 = vmatprep.mubr.bf16.mxu0 0
        %1932 = vmatmul.mubr.bf16.gmra.mrb[0].mxu0 %v1876
        %v1933 = vpop.f32.mrb[0].mxu0
        %v1934 = vadd.f32 0.0, %v1933
        %v1935 = vpop.f32.mrb[0].mxu0
        %v1936 = vpop.f32.mrb[0].mxu0
        %v1937 = vadd.f32 0.0, %v1936
        %v1938 = vpop.f32.mrb[0].mxu0
        %1939 = vmatprep.mubr.bf16.mxu0 0
        %1940 = vmatmul.mubr.bf16.gmra.mrb[0].mxu0 %v1879
        %v1941 = vpop.f32.mrb[0].mxu0
        %v1942 = vadd.f32 0.0, %v1941
        %v1943 = vpop.f32.mrb[0].mxu0
        %v1944 = vpop.f32.mrb[0].mxu0
        %v1945 = vadd.f32 0.0, %v1944
        %v1946 = vpop.f32.mrb[0].mxu0
        %1947 = vmatprep.mubr.bf16.mxu0 0
        %1948 = vmatmul.mubr.bf16.gmra.mrb[0].mxu0 %v1882
        %v1949 = vpop.f32.mrb[0].mxu0
        %v1950 = vadd.f32 0.0, %v1949
        %v1951 = vpop.f32.mrb[0].mxu0
        %v1952 = vpop.f32.mrb[0].mxu0
        %v1953 = vadd.f32 0.0, %v1952
        %v1954 = vpop.f32.mrb[0].mxu0
        %1955 = vmatprep.mubr.bf16.mxu0 0
        %1956 = vmatmul.mubr.bf16.gmra.mrb[0].mxu0 %v1885
        %v1957 = vpop.f32.mrb[0].mxu0
        %v1958 = vadd.f32 0.0, %v1957
        %v1959 = vpop.f32.mrb[0].mxu0
        %v1960 = vpop.f32.mrb[0].mxu0
        %v1961 = vadd.f32 0.0, %v1960
        %v1962 = vpop.f32.mrb[0].mxu0
        %1963 = vdwg.mxu0
        %1964 = vrot.lane.b32.xlu0 %v702, 96
        %v1965 = vpop.permute.xlu0 %1964
        %1966 = vrot.lane.b32.xlu0 %v703, 96
        %v1967 = vpop.permute.xlu0 %1966
        %1968 = vrot.lane.b32.xlu0 %v704, 96
        %v1969 = vpop.permute.xlu0 %1968
        %1970 = vrot.lane.b32.xlu0 %v705, 96
        %v1971 = vpop.permute.xlu0 %1970
        %1972 = vrot.lane.b32.xlu0 %v702, 32
        %v1973 = vpop.permute.xlu0 %1972
        %1974 = vrot.lane.b32.xlu0 %v703, 32
        %v1975 = vpop.permute.xlu0 %1974
        %1976 = vrot.lane.b32.xlu0 %v704, 32
        %v1977 = vpop.permute.xlu0 %1976
        %1978 = vrot.lane.b32.xlu0 %v705, 32
        %v1979 = vpop.permute.xlu0 %1978
        %v1981 = vsel %vm742, %v1965, 0
        %v1984 = vsel %vm742, %v1967, 0
        %v1987 = vsel %vm742, %v1969, 0
        %v1990 = vsel %vm742, %v1971, 0
        %v1993 = vsel %vm742, %v1973, 0
        %v1996 = vsel %vm742, %v1975, 0
        %v1999 = vsel %vm742, %v1977, 0
        %v2002 = vsel %vm742, %v1979, 0
        %2004 = vmatprep.subr.bf16.mxu0 0
        %2005 = vmatpush1.bf16.xpose.msra.mxu0 %v1993
        %2006 = vmatprep.subr.bf16.mxu0 0
        %2007 = vmatpush1.bf16.xpose.msra.mxu0 %v1996
        %2008 = vmatprep.subr.bf16.mxu0 0
        %2009 = vmatpush1.bf16.xpose.msra.mxu0 %v1999
        %2010 = vmatprep.subr.bf16.mxu0 0
        %2011 = vmatpush1.bf16.xpose.msra.mxu0 %v2002
        %2012 = vmatprep.subr.bf16.mxu0 0
        %2013 = vmatpush1.bf16.xpose.msra.mxu0 0
        %2014 = vmatprep.subr.bf16.mxu0 0
        %2015 = vmatpush1.bf16.xpose.msra.mxu0 0
        %2016 = vmatprep.subr.bf16.mxu0 0
        %2017 = vmatpush1.bf16.xpose.msra.mxu0 0
        %2018 = vmatprep.subr.bf16.mxu0 0
        %2019 = vmatpush1.bf16.xpose.msra.mxu0 0
        %2020 = vmatprep.subr.bf16.mxu0 0
        %2021 = vmatpush1.bf16.xpose.msra.mxu0 0
        %2022 = vmatprep.subr.bf16.mxu0 0
        %2023 = vmatpush1.bf16.xpose.msra.mxu0 0
        %2024 = vmatprep.subr.bf16.mxu0 0
        %2025 = vmatpush1.bf16.xpose.msra.mxu0 0
        %2026 = vmatprep.subr.bf16.mxu0 0
        %2027 = vmatpush1.bf16.xpose.msra.mxu0 0
        %2028 = vmatprep.subr.bf16.mxu0 0
        %2029 = vmatpush1.bf16.xpose.msra.mxu0 0
        %2030 = vmatprep.subr.bf16.mxu0 0
        %2031 = vmatpush1.bf16.xpose.msra.mxu0 0
        %2032 = vmatprep.subr.bf16.mxu0 0
        %2033 = vmatpush1.bf16.xpose.msra.mxu0 0
        %2034 = vmatprep.subr.bf16.mxu0 0
        %2035 = vmatpush1.bf16.xpose.msra.mxu0 0
        %2036 = vmatprep.mubr.bf16.mxu0 0
        %2037 = vmatmul.mubr.bf16.gmra.mrb[0].mxu0 %v1981
        %v2038 = vpop.f32.mrb[0].mxu0
        %v2039 = vadd.f32 0.0, %v2038
        %v2040 = vpop.f32.mrb[0].mxu0
        %v2041 = vpop.f32.mrb[0].mxu0
        %v2042 = vadd.f32 0.0, %v2041
        %v2043 = vpop.f32.mrb[0].mxu0
        %2044 = vmatprep.mubr.bf16.mxu0 0
        %2045 = vmatmul.mubr.bf16.gmra.mrb[0].mxu0 %v1984
        %v2046 = vpop.f32.mrb[0].mxu0
        %v2047 = vadd.f32 0.0, %v2046
        %v2048 = vpop.f32.mrb[0].mxu0
        %v2049 = vpop.f32.mrb[0].mxu0
        %v2050 = vadd.f32 0.0, %v2049
        %v2051 = vpop.f32.mrb[0].mxu0
        %2052 = vmatprep.mubr.bf16.mxu0 0
        %2053 = vmatmul.mubr.bf16.gmra.mrb[0].mxu0 %v1987
        %v2054 = vpop.f32.mrb[0].mxu0
        %v2055 = vadd.f32 0.0, %v2054
        %v2056 = vpop.f32.mrb[0].mxu0
        %v2057 = vpop.f32.mrb[0].mxu0
        %v2058 = vadd.f32 0.0, %v2057
        %v2059 = vpop.f32.mrb[0].mxu0
        %2060 = vmatprep.mubr.bf16.mxu0 0
        %2061 = vmatmul.mubr.bf16.gmra.mrb[0].mxu0 %v1990
        %v2062 = vpop.f32.mrb[0].mxu0
        %v2063 = vadd.f32 0.0, %v2062
        %v2064 = vpop.f32.mrb[0].mxu0
        %v2065 = vpop.f32.mrb[0].mxu0
        %v2066 = vadd.f32 0.0, %v2065
        %v2067 = vpop.f32.mrb[0].mxu0
        %2068 = vdwg.mxu0
        %2069 = vrot.lane.b32.xlu0 %v706, 96
        %v2070 = vpop.permute.xlu0 %2069
        %2071 = vrot.lane.b32.xlu0 %v707, 96
        %v2072 = vpop.permute.xlu0 %2071
        %2073 = vrot.lane.b32.xlu0 %v708, 96
        %v2074 = vpop.permute.xlu0 %2073
        %2075 = vrot.lane.b32.xlu0 %v709, 96
        %v2076 = vpop.permute.xlu0 %2075
        %2077 = vrot.lane.b32.xlu0 %v706, 32
        %v2078 = vpop.permute.xlu0 %2077
        %2079 = vrot.lane.b32.xlu0 %v707, 32
        %v2080 = vpop.permute.xlu0 %2079
        %2081 = vrot.lane.b32.xlu0 %v708, 32
        %v2082 = vpop.permute.xlu0 %2081
        %2083 = vrot.lane.b32.xlu0 %v709, 32
        %v2084 = vpop.permute.xlu0 %2083
        %v2086 = vsel %vm742, %v2070, 0
        %v2089 = vsel %vm742, %v2072, 0
        %v2092 = vsel %vm742, %v2074, 0
        %v2095 = vsel %vm742, %v2076, 0
        %v2098 = vsel %vm742, %v2078, 0
        %v2101 = vsel %vm742, %v2080, 0
        %v2104 = vsel %vm742, %v2082, 0
        %v2107 = vsel %vm742, %v2084, 0
        %2109 = vmatprep.subr.bf16.mxu0 0
        %2110 = vmatpush1.bf16.xpose.msra.mxu0 %v2098
        %2111 = vmatprep.subr.bf16.mxu0 0
        %2112 = vmatpush1.bf16.xpose.msra.mxu0 %v2101
        %2113 = vmatprep.subr.bf16.mxu0 0
        %2114 = vmatpush1.bf16.xpose.msra.mxu0 %v2104
        %2115 = vmatprep.subr.bf16.mxu0 0
        %2116 = vmatpush1.bf16.xpose.msra.mxu0 %v2107
        %2117 = vmatprep.subr.bf16.mxu0 0
        %2118 = vmatpush1.bf16.xpose.msra.mxu0 0
        %2119 = vmatprep.subr.bf16.mxu0 0
        %2120 = vmatpush1.bf16.xpose.msra.mxu0 0
        %2121 = vmatprep.subr.bf16.mxu0 0
        %2122 = vmatpush1.bf16.xpose.msra.mxu0 0
        %2123 = vmatprep.subr.bf16.mxu0 0
        %2124 = vmatpush1.bf16.xpose.msra.mxu0 0
        %2125 = vmatprep.subr.bf16.mxu0 0
        %2126 = vmatpush1.bf16.xpose.msra.mxu0 0
        %2127 = vmatprep.subr.bf16.mxu0 0
        %2128 = vmatpush1.bf16.xpose.msra.mxu0 0
        %2129 = vmatprep.subr.bf16.mxu0 0
        %2130 = vmatpush1.bf16.xpose.msra.mxu0 0
        %2131 = vmatprep.subr.bf16.mxu0 0
        %2132 = vmatpush1.bf16.xpose.msra.mxu0 0
        %2133 = vmatprep.subr.bf16.mxu0 0
        %2134 = vmatpush1.bf16.xpose.msra.mxu0 0
        %2135 = vmatprep.subr.bf16.mxu0 0
        %2136 = vmatpush1.bf16.xpose.msra.mxu0 0
        %2137 = vmatprep.subr.bf16.mxu0 0
        %2138 = vmatpush1.bf16.xpose.msra.mxu0 0
        %2139 = vmatprep.subr.bf16.mxu0 0
        %2140 = vmatpush1.bf16.xpose.msra.mxu0 0
        %2141 = vmatprep.mubr.bf16.mxu0 0
        %2142 = vmatmul.mubr.bf16.gmra.mrb[0].mxu0 %v2086
        %v2143 = vpop.f32.mrb[0].mxu0
        %v2144 = vadd.f32 0.0, %v2143
        %v2145 = vpop.f32.mrb[0].mxu0
        %v2146 = vpop.f32.mrb[0].mxu0
        %v2147 = vadd.f32 0.0, %v2146
        %v2148 = vpop.f32.mrb[0].mxu0
        %2149 = vmatprep.mubr.bf16.mxu0 0
        %2150 = vmatmul.mubr.bf16.gmra.mrb[0].mxu0 %v2089
        %v2151 = vpop.f32.mrb[0].mxu0
        %v2152 = vadd.f32 0.0, %v2151
        %v2153 = vpop.f32.mrb[0].mxu0
        %v2154 = vpop.f32.mrb[0].mxu0
        %v2155 = vadd.f32 0.0, %v2154
        %v2156 = vpop.f32.mrb[0].mxu0
        %2157 = vmatprep.mubr.bf16.mxu0 0
        %2158 = vmatmul.mubr.bf16.gmra.mrb[0].mxu0 %v2092
        %v2159 = vpop.f32.mrb[0].mxu0
        %v2160 = vadd.f32 0.0, %v2159
        %v2161 = vpop.f32.mrb[0].mxu0
        %v2162 = vpop.f32.mrb[0].mxu0
        %v2163 = vadd.f32 0.0, %v2162
        %v2164 = vpop.f32.mrb[0].mxu0
        %2165 = vmatprep.mubr.bf16.mxu0 0
        %2166 = vmatmul.mubr.bf16.gmra.mrb[0].mxu0 %v2095
        %v2167 = vpop.f32.mrb[0].mxu0
        %v2168 = vadd.f32 0.0, %v2167
        %v2169 = vpop.f32.mrb[0].mxu0
        %v2170 = vpop.f32.mrb[0].mxu0
        %v2171 = vadd.f32 0.0, %v2170
        %v2172 = vpop.f32.mrb[0].mxu0
        %2173 = vdwg.mxu0
        %2174 = vrot.lane.b32.xlu0 %v710, 96
        %v2175 = vpop.permute.xlu0 %2174
        %2176 = vrot.lane.b32.xlu0 %v711, 96
        %v2177 = vpop.permute.xlu0 %2176
        %2178 = vrot.lane.b32.xlu0 %v712, 96
        %v2179 = vpop.permute.xlu0 %2178
        %2180 = vrot.lane.b32.xlu0 %v713, 96
        %v2181 = vpop.permute.xlu0 %2180
        %2182 = vrot.lane.b32.xlu0 %v710, 32
        %v2183 = vpop.permute.xlu0 %2182
        %2184 = vrot.lane.b32.xlu0 %v711, 32
        %v2185 = vpop.permute.xlu0 %2184
        %2186 = vrot.lane.b32.xlu0 %v712, 32
        %v2187 = vpop.permute.xlu0 %2186
        %2188 = vrot.lane.b32.xlu0 %v713, 32
        %v2189 = vpop.permute.xlu0 %2188
        %v2191 = vsel %vm742, %v2175, 0
        %v2194 = vsel %vm742, %v2177, 0
        %v2197 = vsel %vm742, %v2179, 0
        %v2200 = vsel %vm742, %v2181, 0
        %v2203 = vsel %vm742, %v2183, 0
        %v2206 = vsel %vm742, %v2185, 0
        %v2209 = vsel %vm742, %v2187, 0
        %v2212 = vsel %vm742, %v2189, 0
        %2214 = vmatprep.subr.bf16.mxu0 0
        %2215 = vmatpush1.bf16.xpose.msra.mxu0 %v2203
        %2216 = vmatprep.subr.bf16.mxu0 0
        %2217 = vmatpush1.bf16.xpose.msra.mxu0 %v2206
        %2218 = vmatprep.subr.bf16.mxu0 0
        %2219 = vmatpush1.bf16.xpose.msra.mxu0 %v2209
        %2220 = vmatprep.subr.bf16.mxu0 0
        %2221 = vmatpush1.bf16.xpose.msra.mxu0 %v2212
        %2222 = vmatprep.subr.bf16.mxu0 0
        %2223 = vmatpush1.bf16.xpose.msra.mxu0 0
        %2224 = vmatprep.subr.bf16.mxu0 0
        %2225 = vmatpush1.bf16.xpose.msra.mxu0 0
        %2226 = vmatprep.subr.bf16.mxu0 0
        %2227 = vmatpush1.bf16.xpose.msra.mxu0 0
        %2228 = vmatprep.subr.bf16.mxu0 0
        %2229 = vmatpush1.bf16.xpose.msra.mxu0 0
        %2230 = vmatprep.subr.bf16.mxu0 0
        %2231 = vmatpush1.bf16.xpose.msra.mxu0 0
        %2232 = vmatprep.subr.bf16.mxu0 0
        %2233 = vmatpush1.bf16.xpose.msra.mxu0 0
        %2234 = vmatprep.subr.bf16.mxu0 0
        %2235 = vmatpush1.bf16.xpose.msra.mxu0 0
        %2236 = vmatprep.subr.bf16.mxu0 0
        %2237 = vmatpush1.bf16.xpose.msra.mxu0 0
        %2238 = vmatprep.subr.bf16.mxu0 0
        %2239 = vmatpush1.bf16.xpose.msra.mxu0 0
        %2240 = vmatprep.subr.bf16.mxu0 0
        %2241 = vmatpush1.bf16.xpose.msra.mxu0 0
        %2242 = vmatprep.subr.bf16.mxu0 0
        %2243 = vmatpush1.bf16.xpose.msra.mxu0 0
        %2244 = vmatprep.subr.bf16.mxu0 0
        %2245 = vmatpush1.bf16.xpose.msra.mxu0 0
        %2246 = vmatprep.mubr.bf16.mxu0 0
        %2247 = vmatmul.mubr.bf16.gmra.mrb[0].mxu0 %v2191
        %v2248 = vpop.f32.mrb[0].mxu0
        %v2249 = vadd.f32 0.0, %v2248
        %v2250 = vpop.f32.mrb[0].mxu0
        %v2251 = vpop.f32.mrb[0].mxu0
        %v2252 = vadd.f32 0.0, %v2251
        %v2253 = vpop.f32.mrb[0].mxu0
        %2254 = vmatprep.mubr.bf16.mxu0 0
        %2255 = vmatmul.mubr.bf16.gmra.mrb[0].mxu0 %v2194
        %v2256 = vpop.f32.mrb[0].mxu0
        %v2257 = vadd.f32 0.0, %v2256
        %v2258 = vpop.f32.mrb[0].mxu0
        %v2259 = vpop.f32.mrb[0].mxu0
        %v2260 = vadd.f32 0.0, %v2259
        %v2261 = vpop.f32.mrb[0].mxu0
        %2262 = vmatprep.mubr.bf16.mxu0 0
        %2263 = vmatmul.mubr.bf16.gmra.mrb[0].mxu0 %v2197
        %v2264 = vpop.f32.mrb[0].mxu0
        %v2265 = vadd.f32 0.0, %v2264
        %v2266 = vpop.f32.mrb[0].mxu0
        %v2267 = vpop.f32.mrb[0].mxu0
        %v2268 = vadd.f32 0.0, %v2267
        %v2269 = vpop.f32.mrb[0].mxu0
        %2270 = vmatprep.mubr.bf16.mxu0 0
        %2271 = vmatmul.mubr.bf16.gmra.mrb[0].mxu0 %v2200
        %v2272 = vpop.f32.mrb[0].mxu0
        %v2273 = vadd.f32 0.0, %v2272
        %v2274 = vpop.f32.mrb[0].mxu0
        %v2275 = vpop.f32.mrb[0].mxu0
        %v2276 = vadd.f32 0.0, %v2275
        %v2277 = vpop.f32.mrb[0].mxu0
        %2278 = vdwg.mxu0
        %v2279 = vsel %vm448, %v1934, -inf
        %2280 = vmax.xlane.f32.xlu0 %v2279
        %v2281 = vpop.xlane.xlu0 %2280
        %v2282 = vsel %vm448, %v1937, -inf
        %2283 = vmax.xlane.f32.xlu0 %v2282
        %v2284 = vpop.xlane.xlu0 %2283
        %v2285 = vsel %vm448, %v1942, -inf
        %2286 = vmax.xlane.f32.xlu0 %v2285
        %v2287 = vpop.xlane.xlu0 %2286
        %v2288 = vsel %vm448, %v1945, -inf
        %2289 = vmax.xlane.f32.xlu0 %v2288
        %v2290 = vpop.xlane.xlu0 %2289
        %v2291 = vsel %vm448, %v1950, -inf
        %2292 = vmax.xlane.f32.xlu0 %v2291
        %v2293 = vpop.xlane.xlu0 %2292
        %v2294 = vsel %vm448, %v1953, -inf
        %2295 = vmax.xlane.f32.xlu0 %v2294
        %v2296 = vpop.xlane.xlu0 %2295
        %v2297 = vsel %vm448, %v1958, -inf
        %2298 = vmax.xlane.f32.xlu0 %v2297
        %v2299 = vpop.xlane.xlu0 %2298
        %v2300 = vsel %vm448, %v1961, -inf
        %2301 = vmax.xlane.f32.xlu0 %v2300
        %v2302 = vpop.xlane.xlu0 %2301
        %v2303 = vsel %vm448, %v2039, -inf
        %2304 = vmax.xlane.f32.xlu0 %v2303
        %v2305 = vpop.xlane.xlu0 %2304
        %v2306 = vsel %vm448, %v2042, -inf
        %2307 = vmax.xlane.f32.xlu0 %v2306
        %v2308 = vpop.xlane.xlu0 %2307
        %v2309 = vsel %vm448, %v2047, -inf
        %2310 = vmax.xlane.f32.xlu0 %v2309
        %v2311 = vpop.xlane.xlu0 %2310
        %v2312 = vsel %vm448, %v2050, -inf
        %2313 = vmax.xlane.f32.xlu0 %v2312
        %v2314 = vpop.xlane.xlu0 %2313
        %v2315 = vsel %vm448, %v2055, -inf
        %2316 = vmax.xlane.f32.xlu0 %v2315
        %v2317 = vpop.xlane.xlu0 %2316
        %v2318 = vsel %vm448, %v2058, -inf
        %2319 = vmax.xlane.f32.xlu0 %v2318
        %v2320 = vpop.xlane.xlu0 %2319
        %v2321 = vsel %vm448, %v2063, -inf
        %2322 = vmax.xlane.f32.xlu0 %v2321
        %v2323 = vpop.xlane.xlu0 %2322
        %v2324 = vsel %vm448, %v2066, -inf
        %2325 = vmax.xlane.f32.xlu0 %v2324
        %v2326 = vpop.xlane.xlu0 %2325
        %v2327 = vsel %vm448, %v2144, -inf
        %2328 = vmax.xlane.f32.xlu0 %v2327
        %v2329 = vpop.xlane.xlu0 %2328
        %v2330 = vsel %vm448, %v2147, -inf
        %2331 = vmax.xlane.f32.xlu0 %v2330
        %v2332 = vpop.xlane.xlu0 %2331
        %v2333 = vsel %vm448, %v2152, -inf
        %2334 = vmax.xlane.f32.xlu0 %v2333
        %v2335 = vpop.xlane.xlu0 %2334
        %v2336 = vsel %vm448, %v2155, -inf
        %2337 = vmax.xlane.f32.xlu0 %v2336
        %v2338 = vpop.xlane.xlu0 %2337
        %v2339 = vsel %vm448, %v2160, -inf
        %2340 = vmax.xlane.f32.xlu0 %v2339
        %v2341 = vpop.xlane.xlu0 %2340
        %v2342 = vsel %vm448, %v2163, -inf
        %2343 = vmax.xlane.f32.xlu0 %v2342
        %v2344 = vpop.xlane.xlu0 %2343
        %v2345 = vsel %vm448, %v2168, -inf
        %2346 = vmax.xlane.f32.xlu0 %v2345
        %v2347 = vpop.xlane.xlu0 %2346
        %v2348 = vsel %vm448, %v2171, -inf
        %2349 = vmax.xlane.f32.xlu0 %v2348
        %v2350 = vpop.xlane.xlu0 %2349
        %v2351 = vsel %vm448, %v2249, -inf
        %2352 = vmax.xlane.f32.xlu0 %v2351
        %v2353 = vpop.xlane.xlu0 %2352
        %v2354 = vsel %vm448, %v2252, -inf
        %2355 = vmax.xlane.f32.xlu0 %v2354
        %v2356 = vpop.xlane.xlu0 %2355
        %v2357 = vsel %vm448, %v2257, -inf
        %2358 = vmax.xlane.f32.xlu0 %v2357
        %v2359 = vpop.xlane.xlu0 %2358
        %v2360 = vsel %vm448, %v2260, -inf
        %2361 = vmax.xlane.f32.xlu0 %v2360
        %v2362 = vpop.xlane.xlu0 %2361
        %v2363 = vsel %vm448, %v2265, -inf
        %2364 = vmax.xlane.f32.xlu0 %v2363
        %v2365 = vpop.xlane.xlu0 %2364
        %v2366 = vsel %vm448, %v2268, -inf
        %2367 = vmax.xlane.f32.xlu0 %v2366
        %v2368 = vpop.xlane.xlu0 %2367
        %v2369 = vsel %vm448, %v2273, -inf
        %2370 = vmax.xlane.f32.xlu0 %v2369
        %v2371 = vpop.xlane.xlu0 %2370
        %v2372 = vsel %vm448, %v2276, -inf
        %2373 = vmax.xlane.f32.xlu0 %v2372
        %v2374 = vpop.xlane.xlu0 %2373
        %v2375 = vsub.f32 %v1934, %v2281
        %v2376 = vsub.f32 %v1937, %v2284
        %v2377 = vsub.f32 %v1942, %v2287
        %v2378 = vsub.f32 %v1945, %v2290
        %v2379 = vsub.f32 %v1950, %v2293
        %v2380 = vsub.f32 %v1953, %v2296
        %v2381 = vsub.f32 %v1958, %v2299
        %v2382 = vsub.f32 %v1961, %v2302
        %v2383 = vsub.f32 %v2039, %v2305
        %v2384 = vsub.f32 %v2042, %v2308
        %v2385 = vsub.f32 %v2047, %v2311
        %v2386 = vsub.f32 %v2050, %v2314
        %v2387 = vsub.f32 %v2055, %v2317
        %v2388 = vsub.f32 %v2058, %v2320
        %v2389 = vsub.f32 %v2063, %v2323
        %v2390 = vsub.f32 %v2066, %v2326
        %v2391 = vsub.f32 %v2144, %v2329
        %v2392 = vsub.f32 %v2147, %v2332
        %v2393 = vsub.f32 %v2152, %v2335
        %v2394 = vsub.f32 %v2155, %v2338
        %v2395 = vsub.f32 %v2160, %v2341
        %v2396 = vsub.f32 %v2163, %v2344
        %v2397 = vsub.f32 %v2168, %v2347
        %v2398 = vsub.f32 %v2171, %v2350
        %v2399 = vsub.f32 %v2249, %v2353
        %v2400 = vsub.f32 %v2252, %v2356
        %v2401 = vsub.f32 %v2257, %v2359
        %v2402 = vsub.f32 %v2260, %v2362
        %v2403 = vsub.f32 %v2265, %v2365
        %v2404 = vsub.f32 %v2268, %v2368
        %v2405 = vsub.f32 %v2273, %v2371
        %v2406 = vsub.f32 %v2276, %v2374
        %v2407 = vmul.f32 %v2375, 1.442695
        %v2408 = vpow.pop %v2407
        %v2409 = vmul.f32 %v2376, 1.442695
        %v2410 = vpow.pop %v2409
        %v2411 = vmul.f32 %v2377, 1.442695
        %v2412 = vpow.pop %v2411
        %v2413 = vmul.f32 %v2378, 1.442695
        %v2414 = vpow.pop %v2413
        %v2415 = vmul.f32 %v2379, 1.442695
        %v2416 = vpow.pop %v2415
        %v2417 = vmul.f32 %v2380, 1.442695
        %v2418 = vpow.pop %v2417
        %v2419 = vmul.f32 %v2381, 1.442695
        %v2420 = vpow.pop %v2419
        %v2421 = vmul.f32 %v2382, 1.442695
        %v2422 = vpow.pop %v2421
        %v2423 = vmul.f32 %v2383, 1.442695
        %v2424 = vpow.pop %v2423
        %v2425 = vmul.f32 %v2384, 1.442695
        %v2426 = vpow.pop %v2425
        %v2427 = vmul.f32 %v2385, 1.442695
        %v2428 = vpow.pop %v2427
        %v2429 = vmul.f32 %v2386, 1.442695
        %v2430 = vpow.pop %v2429
        %v2431 = vmul.f32 %v2387, 1.442695
        %v2432 = vpow.pop %v2431
        %v2433 = vmul.f32 %v2388, 1.442695
        %v2434 = vpow.pop %v2433
        %v2435 = vmul.f32 %v2389, 1.442695
        %v2436 = vpow.pop %v2435
        %v2437 = vmul.f32 %v2390, 1.442695
        %v2438 = vpow.pop %v2437
        %v2439 = vmul.f32 %v2391, 1.442695
        %v2440 = vpow.pop %v2439
        %v2441 = vmul.f32 %v2392, 1.442695
        %v2442 = vpow.pop %v2441
        %v2443 = vmul.f32 %v2393, 1.442695
        %v2444 = vpow.pop %v2443
        %v2445 = vmul.f32 %v2394, 1.442695
        %v2446 = vpow.pop %v2445
        %v2447 = vmul.f32 %v2395, 1.442695
        %v2448 = vpow.pop %v2447
        %v2449 = vmul.f32 %v2396, 1.442695
        %v2450 = vpow.pop %v2449
        %v2451 = vmul.f32 %v2397, 1.442695
        %v2452 = vpow.pop %v2451
        %v2453 = vmul.f32 %v2398, 1.442695
        %v2454 = vpow.pop %v2453
        %v2455 = vmul.f32 %v2399, 1.442695
        %v2456 = vpow.pop %v2455
        %v2457 = vmul.f32 %v2400, 1.442695
        %v2458 = vpow.pop %v2457
        %v2459 = vmul.f32 %v2401, 1.442695
        %v2460 = vpow.pop %v2459
        %v2461 = vmul.f32 %v2402, 1.442695
        %v2462 = vpow.pop %v2461
        %v2463 = vmul.f32 %v2403, 1.442695
        %v2464 = vpow.pop %v2463
        %v2465 = vmul.f32 %v2404, 1.442695
        %v2466 = vpow.pop %v2465
        %v2467 = vmul.f32 %v2405, 1.442695
        %v2468 = vpow.pop %v2467
        %v2469 = vmul.f32 %v2406, 1.442695
        %v2470 = vpow.pop %v2469
        %v2471 = vsel %vm448, %v2408, 0.0
        %2472 = vadd.xlane.f32.xlu0 %v2471
        %v2473 = vpop.xlane.xlu0 %2472
        %v2474 = vsel %vm448, %v2410, 0.0
        %2475 = vadd.xlane.f32.xlu0 %v2474
        %v2476 = vpop.xlane.xlu0 %2475
        %v2477 = vsel %vm448, %v2412, 0.0
        %2478 = vadd.xlane.f32.xlu0 %v2477
        %v2479 = vpop.xlane.xlu0 %2478
        %v2480 = vsel %vm448, %v2414, 0.0
        %2481 = vadd.xlane.f32.xlu0 %v2480
        %v2482 = vpop.xlane.xlu0 %2481
        %v2483 = vsel %vm448, %v2416, 0.0
        %2484 = vadd.xlane.f32.xlu0 %v2483
        %v2485 = vpop.xlane.xlu0 %2484
        %v2486 = vsel %vm448, %v2418, 0.0
        %2487 = vadd.xlane.f32.xlu0 %v2486
        %v2488 = vpop.xlane.xlu0 %2487
        %v2489 = vsel %vm448, %v2420, 0.0
        %2490 = vadd.xlane.f32.xlu0 %v2489
        %v2491 = vpop.xlane.xlu0 %2490
        %v2492 = vsel %vm448, %v2422, 0.0
        %2493 = vadd.xlane.f32.xlu0 %v2492
        %v2494 = vpop.xlane.xlu0 %2493
        %v2495 = vsel %vm448, %v2424, 0.0
        %2496 = vadd.xlane.f32.xlu0 %v2495
        %v2497 = vpop.xlane.xlu0 %2496
        %v2498 = vsel %vm448, %v2426, 0.0
        %2499 = vadd.xlane.f32.xlu0 %v2498
        %v2500 = vpop.xlane.xlu0 %2499
        %v2501 = vsel %vm448, %v2428, 0.0
        %2502 = vadd.xlane.f32.xlu0 %v2501
        %v2503 = vpop.xlane.xlu0 %2502
        %v2504 = vsel %vm448, %v2430, 0.0
        %2505 = vadd.xlane.f32.xlu0 %v2504
        %v2506 = vpop.xlane.xlu0 %2505
        %v2507 = vsel %vm448, %v2432, 0.0
        %2508 = vadd.xlane.f32.xlu0 %v2507
        %v2509 = vpop.xlane.xlu0 %2508
        %v2510 = vsel %vm448, %v2434, 0.0
        %2511 = vadd.xlane.f32.xlu0 %v2510
        %v2512 = vpop.xlane.xlu0 %2511
        %v2513 = vsel %vm448, %v2436, 0.0
        %2514 = vadd.xlane.f32.xlu0 %v2513
        %v2515 = vpop.xlane.xlu0 %2514
        %v2516 = vsel %vm448, %v2438, 0.0
        %2517 = vadd.xlane.f32.xlu0 %v2516
        %v2518 = vpop.xlane.xlu0 %2517
        %v2519 = vsel %vm448, %v2440, 0.0
        %2520 = vadd.xlane.f32.xlu0 %v2519
        %v2521 = vpop.xlane.xlu0 %2520
        %v2522 = vsel %vm448, %v2442, 0.0
        %2523 = vadd.xlane.f32.xlu0 %v2522
        %v2524 = vpop.xlane.xlu0 %2523
        %v2525 = vsel %vm448, %v2444, 0.0
        %2526 = vadd.xlane.f32.xlu0 %v2525
        %v2527 = vpop.xlane.xlu0 %2526
        %v2528 = vsel %vm448, %v2446, 0.0
        %2529 = vadd.xlane.f32.xlu0 %v2528
        %v2530 = vpop.xlane.xlu0 %2529
        %v2531 = vsel %vm448, %v2448, 0.0
        %2532 = vadd.xlane.f32.xlu0 %v2531
        %v2533 = vpop.xlane.xlu0 %2532
        %v2534 = vsel %vm448, %v2450, 0.0
        %2535 = vadd.xlane.f32.xlu0 %v2534
        %v2536 = vpop.xlane.xlu0 %2535
        %v2537 = vsel %vm448, %v2452, 0.0
        %2538 = vadd.xlane.f32.xlu0 %v2537
        %v2539 = vpop.xlane.xlu0 %2538
        %v2540 = vsel %vm448, %v2454, 0.0
        %2541 = vadd.xlane.f32.xlu0 %v2540
        %v2542 = vpop.xlane.xlu0 %2541
        %v2543 = vsel %vm448, %v2456, 0.0
        %2544 = vadd.xlane.f32.xlu0 %v2543
        %v2545 = vpop.xlane.xlu0 %2544
        %v2546 = vsel %vm448, %v2458, 0.0
        %2547 = vadd.xlane.f32.xlu0 %v2546
        %v2548 = vpop.xlane.xlu0 %2547
        %v2549 = vsel %vm448, %v2460, 0.0
        %2550 = vadd.xlane.f32.xlu0 %v2549
        %v2551 = vpop.xlane.xlu0 %2550
        %v2552 = vsel %vm448, %v2462, 0.0
        %2553 = vadd.xlane.f32.xlu0 %v2552
        %v2554 = vpop.xlane.xlu0 %2553
        %v2555 = vsel %vm448, %v2464, 0.0
        %2556 = vadd.xlane.f32.xlu0 %v2555
        %v2557 = vpop.xlane.xlu0 %2556
        %v2558 = vsel %vm448, %v2466, 0.0
        %2559 = vadd.xlane.f32.xlu0 %v2558
        %v2560 = vpop.xlane.xlu0 %2559
        %v2561 = vsel %vm448, %v2468, 0.0
        %2562 = vadd.xlane.f32.xlu0 %v2561
        %v2563 = vpop.xlane.xlu0 %2562
        %v2564 = vsel %vm448, %v2470, 0.0
        %2565 = vadd.xlane.f32.xlu0 %v2564
        %v2566 = vpop.xlane.xlu0 %2565
        %v2567 = vrcp.pop %v2473
        %v2568 = vmul.f32 1.0, %v2567
        %v2569 = vrcp.pop %v2476
        %v2570 = vmul.f32 1.0, %v2569
        %v2571 = vrcp.pop %v2479
        %v2572 = vmul.f32 1.0, %v2571
        %v2573 = vrcp.pop %v2482
        %v2574 = vmul.f32 1.0, %v2573
        %v2575 = vrcp.pop %v2485
        %v2576 = vmul.f32 1.0, %v2575
        %v2577 = vrcp.pop %v2488
        %v2578 = vmul.f32 1.0, %v2577
        %v2579 = vrcp.pop %v2491
        %v2580 = vmul.f32 1.0, %v2579
        %v2581 = vrcp.pop %v2494
        %v2582 = vmul.f32 1.0, %v2581
        %v2583 = vrcp.pop %v2497
        %v2584 = vmul.f32 1.0, %v2583
        %v2585 = vrcp.pop %v2500
        %v2586 = vmul.f32 1.0, %v2585
        %v2587 = vrcp.pop %v2503
        %v2588 = vmul.f32 1.0, %v2587
        %v2589 = vrcp.pop %v2506
        %v2590 = vmul.f32 1.0, %v2589
        %v2591 = vrcp.pop %v2509
        %v2592 = vmul.f32 1.0, %v2591
        %v2593 = vrcp.pop %v2512
        %v2594 = vmul.f32 1.0, %v2593
        %v2595 = vrcp.pop %v2515
        %v2596 = vmul.f32 1.0, %v2595
        %v2597 = vrcp.pop %v2518
        %v2598 = vmul.f32 1.0, %v2597
        %v2599 = vrcp.pop %v2521
        %v2600 = vmul.f32 1.0, %v2599
        %v2601 = vrcp.pop %v2524
        %v2602 = vmul.f32 1.0, %v2601
        %v2603 = vrcp.pop %v2527
        %v2604 = vmul.f32 1.0, %v2603
        %v2605 = vrcp.pop %v2530
        %v2606 = vmul.f32 1.0, %v2605
        %v2607 = vrcp.pop %v2533
        %v2608 = vmul.f32 1.0, %v2607
        %v2609 = vrcp.pop %v2536
        %v2610 = vmul.f32 1.0, %v2609
        %v2611 = vrcp.pop %v2539
        %v2612 = vmul.f32 1.0, %v2611
        %v2613 = vrcp.pop %v2542
        %v2614 = vmul.f32 1.0, %v2613
        %v2615 = vrcp.pop %v2545
        %v2616 = vmul.f32 1.0, %v2615
        %v2617 = vrcp.pop %v2548
        %v2618 = vmul.f32 1.0, %v2617
        %v2619 = vrcp.pop %v2551
        %v2620 = vmul.f32 1.0, %v2619
        %v2621 = vrcp.pop %v2554
        %v2622 = vmul.f32 1.0, %v2621
        %v2623 = vrcp.pop %v2557
        %v2624 = vmul.f32 1.0, %v2623
        %v2625 = vrcp.pop %v2560
        %v2626 = vmul.f32 1.0, %v2625
        %v2627 = vrcp.pop %v2563
        %v2628 = vmul.f32 1.0, %v2627
        %v2629 = vrcp.pop %v2566
        %v2630 = vmul.f32 1.0, %v2629
        %v2631 = vmul.f32 %v2408, %v2568
        %v2632 = vmul.f32 %v2410, %v2570
        %v2633 = vmul.f32 %v2412, %v2572
        %v2634 = vmul.f32 %v2414, %v2574
        %v2635 = vmul.f32 %v2416, %v2576
        %v2636 = vmul.f32 %v2418, %v2578
        %v2637 = vmul.f32 %v2420, %v2580
        %v2638 = vmul.f32 %v2422, %v2582
        %v2639 = vmul.f32 %v2424, %v2584
        %v2640 = vmul.f32 %v2426, %v2586
        %v2641 = vmul.f32 %v2428, %v2588
        %v2642 = vmul.f32 %v2430, %v2590
        %v2643 = vmul.f32 %v2432, %v2592
        %v2644 = vmul.f32 %v2434, %v2594
        %v2645 = vmul.f32 %v2436, %v2596
        %v2646 = vmul.f32 %v2438, %v2598
        %v2647 = vmul.f32 %v2440, %v2600
        %v2648 = vmul.f32 %v2442, %v2602
        %v2649 = vmul.f32 %v2444, %v2604
        %v2650 = vmul.f32 %v2446, %v2606
        %v2651 = vmul.f32 %v2448, %v2608
        %v2652 = vmul.f32 %v2450, %v2610
        %v2653 = vmul.f32 %v2452, %v2612
        %v2654 = vmul.f32 %v2454, %v2614
        %v2655 = vmul.f32 %v2456, %v2616
        %v2656 = vmul.f32 %v2458, %v2618
        %v2657 = vmul.f32 %v2460, %v2620
        %v2658 = vmul.f32 %v2462, %v2622
        %v2659 = vmul.f32 %v2464, %v2624
        %v2660 = vmul.f32 %v2466, %v2626
        %v2661 = vmul.f32 %v2468, %v2628
        %v2662 = vmul.f32 %v2470, %v2630
        %v2663 = vpack.c.bf16 %v2632, %v2631
        %v2664 = vpack.c.bf16 %v2634, %v2633
        %v2665 = vpack.c.bf16 %v2636, %v2635
        %v2666 = vpack.c.bf16 %v2638, %v2637
        %v2667 = vpack.c.bf16 %v2640, %v2639
        %v2668 = vpack.c.bf16 %v2642, %v2641
        %v2669 = vpack.c.bf16 %v2644, %v2643
        %v2670 = vpack.c.bf16 %v2646, %v2645
        %v2671 = vpack.c.bf16 %v2648, %v2647
        %v2672 = vpack.c.bf16 %v2650, %v2649
        %v2673 = vpack.c.bf16 %v2652, %v2651
        %v2674 = vpack.c.bf16 %v2654, %v2653
        %v2675 = vpack.c.bf16 %v2656, %v2655
        %v2676 = vpack.c.bf16 %v2658, %v2657
        %v2677 = vpack.c.bf16 %v2660, %v2659
        %v2678 = vpack.c.bf16 %v2662, %v2661
        %2683 = vrot.lane.b32.xlu0 %v714, 96
        %v2684 = vpop.permute.xlu0 %2683
        %2685 = vrot.lane.b32.xlu0 %v715, 96
        %v2686 = vpop.permute.xlu0 %2685
        %2687 = vrot.lane.b32.xlu0 %v716, 96
        %v2688 = vpop.permute.xlu0 %2687
        %2689 = vrot.lane.b32.xlu0 %v717, 96
        %v2690 = vpop.permute.xlu0 %2689
        %v2696 = vsel %vm448, %v2663, 0
        %v2699 = vsel %vm448, %v2664, 0
        %v2702 = vsel %vm448, %v2665, 0
        %v2705 = vsel %vm448, %v2666, 0
        %2707 = vmatprep.subr.bf16.mxu0 0
        %2708 = vmatpush1.bf16.msra.mxu0 %v2684
        %2709 = vmatprep.subr.bf16.mxu0 0
        %2710 = vmatpush1.bf16.msra.mxu0 %v2686
        %2711 = vmatprep.subr.bf16.mxu0 0
        %2712 = vmatpush1.bf16.msra.mxu0 %v2688
        %2713 = vmatprep.subr.bf16.mxu0 0
        %2714 = vmatpush1.bf16.msra.mxu0 %v2690
        %2715 = vmatprep.subr.bf16.mxu0 0
        %2716 = vmatpush1.bf16.msra.mxu0 0
        %2717 = vmatprep.subr.bf16.mxu0 0
        %2718 = vmatpush1.bf16.msra.mxu0 0
        %2719 = vmatprep.subr.bf16.mxu0 0
        %2720 = vmatpush1.bf16.msra.mxu0 0
        %2721 = vmatprep.subr.bf16.mxu0 0
        %2722 = vmatpush1.bf16.msra.mxu0 0
        %2723 = vmatprep.subr.bf16.mxu0 0
        %2724 = vmatpush1.bf16.msra.mxu0 0
        %2725 = vmatprep.subr.bf16.mxu0 0
        %2726 = vmatpush1.bf16.msra.mxu0 0
        %2727 = vmatprep.subr.bf16.mxu0 0
        %2728 = vmatpush1.bf16.msra.mxu0 0
        %2729 = vmatprep.subr.bf16.mxu0 0
        %2730 = vmatpush1.bf16.msra.mxu0 0
        %2731 = vmatprep.subr.bf16.mxu0 0
        %2732 = vmatpush1.bf16.msra.mxu0 0
        %2733 = vmatprep.subr.bf16.mxu0 0
        %2734 = vmatpush1.bf16.msra.mxu0 0
        %2735 = vmatprep.subr.bf16.mxu0 0
        %2736 = vmatpush1.bf16.msra.mxu0 0
        %2737 = vmatprep.subr.bf16.mxu0 0
        %2738 = vmatpush1.bf16.msra.mxu0 0
        %2739 = vmatprep.mubr.bf16.mxu0 0
        %2740 = vmatmul.mubr.bf16.gmra.mrb[0].mxu0 %v2696
        %v2741 = vpop.f32.mrb[0].mxu0
        %v2742 = vadd.f32 0.0, %v2741
        %v2743 = vpop.f32.mrb[0].mxu0
        %v2744 = vpop.f32.mrb[0].mxu0
        %v2745 = vadd.f32 0.0, %v2744
        %v2746 = vpop.f32.mrb[0].mxu0
        %2747 = vmatprep.mubr.bf16.mxu0 0
        %2748 = vmatmul.mubr.bf16.gmra.mrb[0].mxu0 %v2699
        %v2749 = vpop.f32.mrb[0].mxu0
        %v2750 = vadd.f32 0.0, %v2749
        %v2751 = vpop.f32.mrb[0].mxu0
        %v2752 = vpop.f32.mrb[0].mxu0
        %v2753 = vadd.f32 0.0, %v2752
        %v2754 = vpop.f32.mrb[0].mxu0
        %2755 = vmatprep.mubr.bf16.mxu0 0
        %2756 = vmatmul.mubr.bf16.gmra.mrb[0].mxu0 %v2702
        %v2757 = vpop.f32.mrb[0].mxu0
        %v2758 = vadd.f32 0.0, %v2757
        %v2759 = vpop.f32.mrb[0].mxu0
        %v2760 = vpop.f32.mrb[0].mxu0
        %v2761 = vadd.f32 0.0, %v2760
        %v2762 = vpop.f32.mrb[0].mxu0
        %2763 = vmatprep.mubr.bf16.mxu0 0
        %2764 = vmatmul.mubr.bf16.gmra.mrb[0].mxu0 %v2705
        %v2765 = vpop.f32.mrb[0].mxu0
        %v2766 = vadd.f32 0.0, %v2765
        %v2767 = vpop.f32.mrb[0].mxu0
        %v2768 = vpop.f32.mrb[0].mxu0
        %v2769 = vadd.f32 0.0, %v2768
        %v2770 = vpop.f32.mrb[0].mxu0
        %2771 = vdwg.mxu0
        %2776 = vrot.lane.b32.xlu0 %v718, 96
        %v2777 = vpop.permute.xlu0 %2776
        %2778 = vrot.lane.b32.xlu0 %v719, 96
        %v2779 = vpop.permute.xlu0 %2778
        %2780 = vrot.lane.b32.xlu0 %v720, 96
        %v2781 = vpop.permute.xlu0 %2780
        %2782 = vrot.lane.b32.xlu0 %v721, 96
        %v2783 = vpop.permute.xlu0 %2782
        %v2789 = vsel %vm448, %v2667, 0
        %v2792 = vsel %vm448, %v2668, 0
        %v2795 = vsel %vm448, %v2669, 0
        %v2798 = vsel %vm448, %v2670, 0
        %2800 = vmatprep.subr.bf16.mxu0 0
        %2801 = vmatpush1.bf16.msra.mxu0 %v2777
        %2802 = vmatprep.subr.bf16.mxu0 0
        %2803 = vmatpush1.bf16.msra.mxu0 %v2779
        %2804 = vmatprep.subr.bf16.mxu0 0
        %2805 = vmatpush1.bf16.msra.mxu0 %v2781
        %2806 = vmatprep.subr.bf16.mxu0 0
        %2807 = vmatpush1.bf16.msra.mxu0 %v2783
        %2808 = vmatprep.subr.bf16.mxu0 0
        %2809 = vmatpush1.bf16.msra.mxu0 0
        %2810 = vmatprep.subr.bf16.mxu0 0
        %2811 = vmatpush1.bf16.msra.mxu0 0
        %2812 = vmatprep.subr.bf16.mxu0 0
        %2813 = vmatpush1.bf16.msra.mxu0 0
        %2814 = vmatprep.subr.bf16.mxu0 0
        %2815 = vmatpush1.bf16.msra.mxu0 0
        %2816 = vmatprep.subr.bf16.mxu0 0
        %2817 = vmatpush1.bf16.msra.mxu0 0
        %2818 = vmatprep.subr.bf16.mxu0 0
        %2819 = vmatpush1.bf16.msra.mxu0 0
        %2820 = vmatprep.subr.bf16.mxu0 0
        %2821 = vmatpush1.bf16.msra.mxu0 0
        %2822 = vmatprep.subr.bf16.mxu0 0
        %2823 = vmatpush1.bf16.msra.mxu0 0
        %2824 = vmatprep.subr.bf16.mxu0 0
        %2825 = vmatpush1.bf16.msra.mxu0 0
        %2826 = vmatprep.subr.bf16.mxu0 0
        %2827 = vmatpush1.bf16.msra.mxu0 0
        %2828 = vmatprep.subr.bf16.mxu0 0
        %2829 = vmatpush1.bf16.msra.mxu0 0
        %2830 = vmatprep.subr.bf16.mxu0 0
        %2831 = vmatpush1.bf16.msra.mxu0 0
        %2832 = vmatprep.mubr.bf16.mxu0 0
        %2833 = vmatmul.mubr.bf16.gmra.mrb[0].mxu0 %v2789
        %v2834 = vpop.f32.mrb[0].mxu0
        %v2835 = vadd.f32 0.0, %v2834
        %v2836 = vpop.f32.mrb[0].mxu0
        %v2837 = vpop.f32.mrb[0].mxu0
        %v2838 = vadd.f32 0.0, %v2837
        %v2839 = vpop.f32.mrb[0].mxu0
        %2840 = vmatprep.mubr.bf16.mxu0 0
        %2841 = vmatmul.mubr.bf16.gmra.mrb[0].mxu0 %v2792
        %v2842 = vpop.f32.mrb[0].mxu0
        %v2843 = vadd.f32 0.0, %v2842
        %v2844 = vpop.f32.mrb[0].mxu0
        %v2845 = vpop.f32.mrb[0].mxu0
        %v2846 = vadd.f32 0.0, %v2845
        %v2847 = vpop.f32.mrb[0].mxu0
        %2848 = vmatprep.mubr.bf16.mxu0 0
        %2849 = vmatmul.mubr.bf16.gmra.mrb[0].mxu0 %v2795
        %v2850 = vpop.f32.mrb[0].mxu0
        %v2851 = vadd.f32 0.0, %v2850
        %v2852 = vpop.f32.mrb[0].mxu0
        %v2853 = vpop.f32.mrb[0].mxu0
        %v2854 = vadd.f32 0.0, %v2853
        %v2855 = vpop.f32.mrb[0].mxu0
        %2856 = vmatprep.mubr.bf16.mxu0 0
        %2857 = vmatmul.mubr.bf16.gmra.mrb[0].mxu0 %v2798
        %v2858 = vpop.f32.mrb[0].mxu0
        %v2859 = vadd.f32 0.0, %v2858
        %v2860 = vpop.f32.mrb[0].mxu0
        %v2861 = vpop.f32.mrb[0].mxu0
        %v2862 = vadd.f32 0.0, %v2861
        %v2863 = vpop.f32.mrb[0].mxu0
        %2864 = vdwg.mxu0
        %2869 = vrot.lane.b32.xlu0 %v722, 96
        %v2870 = vpop.permute.xlu0 %2869
        %2871 = vrot.lane.b32.xlu0 %v723, 96
        %v2872 = vpop.permute.xlu0 %2871
        %2873 = vrot.lane.b32.xlu0 %v724, 96
        %v2874 = vpop.permute.xlu0 %2873
        %2875 = vrot.lane.b32.xlu0 %v725, 96
        %v2876 = vpop.permute.xlu0 %2875
        %v2882 = vsel %vm448, %v2671, 0
        %v2885 = vsel %vm448, %v2672, 0
        %v2888 = vsel %vm448, %v2673, 0
        %v2891 = vsel %vm448, %v2674, 0
        %2893 = vmatprep.subr.bf16.mxu0 0
        %2894 = vmatpush1.bf16.msra.mxu0 %v2870
        %2895 = vmatprep.subr.bf16.mxu0 0
        %2896 = vmatpush1.bf16.msra.mxu0 %v2872
        %2897 = vmatprep.subr.bf16.mxu0 0
        %2898 = vmatpush1.bf16.msra.mxu0 %v2874
        %2899 = vmatprep.subr.bf16.mxu0 0
        %2900 = vmatpush1.bf16.msra.mxu0 %v2876
        %2901 = vmatprep.subr.bf16.mxu0 0
        %2902 = vmatpush1.bf16.msra.mxu0 0
        %2903 = vmatprep.subr.bf16.mxu0 0
        %2904 = vmatpush1.bf16.msra.mxu0 0
        %2905 = vmatprep.subr.bf16.mxu0 0
        %2906 = vmatpush1.bf16.msra.mxu0 0
        %2907 = vmatprep.subr.bf16.mxu0 0
        %2908 = vmatpush1.bf16.msra.mxu0 0
        %2909 = vmatprep.subr.bf16.mxu0 0
        %2910 = vmatpush1.bf16.msra.mxu0 0
        %2911 = vmatprep.subr.bf16.mxu0 0
        %2912 = vmatpush1.bf16.msra.mxu0 0
        %2913 = vmatprep.subr.bf16.mxu0 0
        %2914 = vmatpush1.bf16.msra.mxu0 0
        %2915 = vmatprep.subr.bf16.mxu0 0
        %2916 = vmatpush1.bf16.msra.mxu0 0
        %2917 = vmatprep.subr.bf16.mxu0 0
        %2918 = vmatpush1.bf16.msra.mxu0 0
        %2919 = vmatprep.subr.bf16.mxu0 0
        %2920 = vmatpush1.bf16.msra.mxu0 0
        %2921 = vmatprep.subr.bf16.mxu0 0
        %2922 = vmatpush1.bf16.msra.mxu0 0
        %2923 = vmatprep.subr.bf16.mxu0 0
        %2924 = vmatpush1.bf16.msra.mxu0 0
        %2925 = vmatprep.mubr.bf16.mxu0 0
        %2926 = vmatmul.mubr.bf16.gmra.mrb[0].mxu0 %v2882
        %v2927 = vpop.f32.mrb[0].mxu0
        %v2928 = vadd.f32 0.0, %v2927
        %v2929 = vpop.f32.mrb[0].mxu0
        %v2930 = vpop.f32.mrb[0].mxu0
        %v2931 = vadd.f32 0.0, %v2930
        %v2932 = vpop.f32.mrb[0].mxu0
        %2933 = vmatprep.mubr.bf16.mxu0 0
        %2934 = vmatmul.mubr.bf16.gmra.mrb[0].mxu0 %v2885
        %v2935 = vpop.f32.mrb[0].mxu0
        %v2936 = vadd.f32 0.0, %v2935
        %v2937 = vpop.f32.mrb[0].mxu0
        %v2938 = vpop.f32.mrb[0].mxu0
        %v2939 = vadd.f32 0.0, %v2938
        %v2940 = vpop.f32.mrb[0].mxu0
        %2941 = vmatprep.mubr.bf16.mxu0 0
        %2942 = vmatmul.mubr.bf16.gmra.mrb[0].mxu0 %v2888
        %v2943 = vpop.f32.mrb[0].mxu0
        %v2944 = vadd.f32 0.0, %v2943
        %v2945 = vpop.f32.mrb[0].mxu0
        %v2946 = vpop.f32.mrb[0].mxu0
        %v2947 = vadd.f32 0.0, %v2946
        %v2948 = vpop.f32.mrb[0].mxu0
        %2949 = vmatprep.mubr.bf16.mxu0 0
        %2950 = vmatmul.mubr.bf16.gmra.mrb[0].mxu0 %v2891
        %v2951 = vpop.f32.mrb[0].mxu0
        %v2952 = vadd.f32 0.0, %v2951
        %v2953 = vpop.f32.mrb[0].mxu0
        %v2954 = vpop.f32.mrb[0].mxu0
        %v2955 = vadd.f32 0.0, %v2954
        %v2956 = vpop.f32.mrb[0].mxu0
        %2957 = vdwg.mxu0
        %2962 = vrot.lane.b32.xlu0 %v726, 96
        %v2963 = vpop.permute.xlu0 %2962
        %2964 = vrot.lane.b32.xlu0 %v727, 96
        %v2965 = vpop.permute.xlu0 %2964
        %2966 = vrot.lane.b32.xlu0 %v728, 96
        %v2967 = vpop.permute.xlu0 %2966
        %2968 = vrot.lane.b32.xlu0 %v729, 96
        %v2969 = vpop.permute.xlu0 %2968
        %v2975 = vsel %vm448, %v2675, 0
        %v2978 = vsel %vm448, %v2676, 0
        %v2981 = vsel %vm448, %v2677, 0
        %v2984 = vsel %vm448, %v2678, 0
        %2986 = vmatprep.subr.bf16.mxu0 0
        %2987 = vmatpush1.bf16.msra.mxu0 %v2963
        %2988 = vmatprep.subr.bf16.mxu0 0
        %2989 = vmatpush1.bf16.msra.mxu0 %v2965
        %2990 = vmatprep.subr.bf16.mxu0 0
        %2991 = vmatpush1.bf16.msra.mxu0 %v2967
        %2992 = vmatprep.subr.bf16.mxu0 0
        %2993 = vmatpush1.bf16.msra.mxu0 %v2969
        %2994 = vmatprep.subr.bf16.mxu0 0
        %2995 = vmatpush1.bf16.msra.mxu0 0
        %2996 = vmatprep.subr.bf16.mxu0 0
        %2997 = vmatpush1.bf16.msra.mxu0 0
        %2998 = vmatprep.subr.bf16.mxu0 0
        %2999 = vmatpush1.bf16.msra.mxu0 0
        %3000 = vmatprep.subr.bf16.mxu0 0
        %3001 = vmatpush1.bf16.msra.mxu0 0
        %3002 = vmatprep.subr.bf16.mxu0 0
        %3003 = vmatpush1.bf16.msra.mxu0 0
        %3004 = vmatprep.subr.bf16.mxu0 0
        %3005 = vmatpush1.bf16.msra.mxu0 0
        %3006 = vmatprep.subr.bf16.mxu0 0
        %3007 = vmatpush1.bf16.msra.mxu0 0
        %3008 = vmatprep.subr.bf16.mxu0 0
        %3009 = vmatpush1.bf16.msra.mxu0 0
        %3010 = vmatprep.subr.bf16.mxu0 0
        %3011 = vmatpush1.bf16.msra.mxu0 0
        %3012 = vmatprep.subr.bf16.mxu0 0
        %3013 = vmatpush1.bf16.msra.mxu0 0
        %3014 = vmatprep.subr.bf16.mxu0 0
        %3015 = vmatpush1.bf16.msra.mxu0 0
        %3016 = vmatprep.subr.bf16.mxu0 0
        %3017 = vmatpush1.bf16.msra.mxu0 0
        %3018 = vmatprep.mubr.bf16.mxu0 0
        %3019 = vmatmul.mubr.bf16.gmra.mrb[0].mxu0 %v2975
        %v3020 = vpop.f32.mrb[0].mxu0
        %v3021 = vadd.f32 0.0, %v3020
        %v3022 = vpop.f32.mrb[0].mxu0
        %v3023 = vpop.f32.mrb[0].mxu0
        %v3024 = vadd.f32 0.0, %v3023
        %v3025 = vpop.f32.mrb[0].mxu0
        %3026 = vmatprep.mubr.bf16.mxu0 0
        %3027 = vmatmul.mubr.bf16.gmra.mrb[0].mxu0 %v2978
        %v3028 = vpop.f32.mrb[0].mxu0
        %v3029 = vadd.f32 0.0, %v3028
        %v3030 = vpop.f32.mrb[0].mxu0
        %v3031 = vpop.f32.mrb[0].mxu0
        %v3032 = vadd.f32 0.0, %v3031
        %v3033 = vpop.f32.mrb[0].mxu0
        %3034 = vmatprep.mubr.bf16.mxu0 0
        %3035 = vmatmul.mubr.bf16.gmra.mrb[0].mxu0 %v2981
        %v3036 = vpop.f32.mrb[0].mxu0
        %v3037 = vadd.f32 0.0, %v3036
        %v3038 = vpop.f32.mrb[0].mxu0
        %v3039 = vpop.f32.mrb[0].mxu0
        %v3040 = vadd.f32 0.0, %v3039
        %v3041 = vpop.f32.mrb[0].mxu0
        %3042 = vmatprep.mubr.bf16.mxu0 0
        %3043 = vmatmul.mubr.bf16.gmra.mrb[0].mxu0 %v2984
        %v3044 = vpop.f32.mrb[0].mxu0
        %v3045 = vadd.f32 0.0, %v3044
        %v3046 = vpop.f32.mrb[0].mxu0
        %v3047 = vpop.f32.mrb[0].mxu0
        %v3048 = vadd.f32 0.0, %v3047
        %v3049 = vpop.f32.mrb[0].mxu0
        %3050 = vdwg.mxu0
        %v3051 = vpack.c.bf16 %v2745, %v2742
        %v3052 = vpack.c.bf16 %v2753, %v2750
        %v3053 = vpack.c.bf16 %v2761, %v2758
        %v3054 = vpack.c.bf16 %v2769, %v2766
        %v3055 = vpack.c.bf16 %v2838, %v2835
        %v3056 = vpack.c.bf16 %v2846, %v2843
        %v3057 = vpack.c.bf16 %v2854, %v2851
        %v3058 = vpack.c.bf16 %v2862, %v2859
        %v3059 = vpack.c.bf16 %v2931, %v2928
        %v3060 = vpack.c.bf16 %v2939, %v2936
        %v3061 = vpack.c.bf16 %v2947, %v2944
        %v3062 = vpack.c.bf16 %v2955, %v2952
        %v3063 = vpack.c.bf16 %v3024, %v3021
        %v3064 = vpack.c.bf16 %v3032, %v3029
        %v3065 = vpack.c.bf16 %v3040, %v3037
        %v3066 = vpack.c.bf16 %v3048, %v3045
        %v3071 = vunpack.c.l.b16 %v694
        %v3072 = vunpack.c.l.b16 %v695
        %v3073 = vunpack.c.l.b16 %v696
        %v3074 = vunpack.c.l.b16 %v697
        %v3075 = vpack.c.b16 %v3072, %v3071
        %v3076 = vpack.c.b16 %v3074, %v3073
        %v3080 = vsel %vm742, %v3051, 0
        %v3083 = vsel %vm742, %v3052, 0
        %v3086 = vsel %vm742, %v3053, 0
        %v3089 = vsel %vm742, %v3054, 0
        %v3092 = vsel %vm742, %v3055, 0
        %v3095 = vsel %vm742, %v3056, 0
        %v3098 = vsel %vm742, %v3057, 0
        %v3101 = vsel %vm742, %v3058, 0
        %v3104 = vsel %vm742, %v3059, 0
        %v3107 = vsel %vm742, %v3060, 0
        %v3110 = vsel %vm742, %v3061, 0
        %v3113 = vsel %vm742, %v3062, 0
        %v3116 = vsel %vm742, %v3063, 0
        %v3119 = vsel %vm742, %v3064, 0
        %v3122 = vsel %vm742, %v3065, 0
        %v3125 = vsel %vm742, %v3066, 0
        %3127 = vmatprep.subr.bf16.mxu0 0
        %3128 = vmatpush1.bf16.msra.mxu0 %v3075
        %3129 = vmatprep.subr.bf16.mxu0 0
        %3130 = vmatpush1.bf16.msra.mxu0 %v3076
        %3131 = vmatprep.subr.bf16.mxu0 0
        %3132 = vmatpush1.bf16.msra.mxu0 0
        %3133 = vmatprep.subr.bf16.mxu0 0
        %3134 = vmatpush1.bf16.msra.mxu0 0
        %3135 = vmatprep.subr.bf16.mxu0 0
        %3136 = vmatpush1.bf16.msra.mxu0 0
        %3137 = vmatprep.subr.bf16.mxu0 0
        %3138 = vmatpush1.bf16.msra.mxu0 0
        %3139 = vmatprep.subr.bf16.mxu0 0
        %3140 = vmatpush1.bf16.msra.mxu0 0
        %3141 = vmatprep.subr.bf16.mxu0 0
        %3142 = vmatpush1.bf16.msra.mxu0 0
        %3143 = vmatprep.subr.bf16.mxu0 0
        %3144 = vmatpush1.bf16.msra.mxu0 0
        %3145 = vmatprep.subr.bf16.mxu0 0
        %3146 = vmatpush1.bf16.msra.mxu0 0
        %3147 = vmatprep.subr.bf16.mxu0 0
        %3148 = vmatpush1.bf16.msra.mxu0 0
        %3149 = vmatprep.subr.bf16.mxu0 0
        %3150 = vmatpush1.bf16.msra.mxu0 0
        %3151 = vmatprep.subr.bf16.mxu0 0
        %3152 = vmatpush1.bf16.msra.mxu0 0
        %3153 = vmatprep.subr.bf16.mxu0 0
        %3154 = vmatpush1.bf16.msra.mxu0 0
        %3155 = vmatprep.subr.bf16.mxu0 0
        %3156 = vmatpush1.bf16.msra.mxu0 0
        %3157 = vmatprep.subr.bf16.mxu0 0
        %3158 = vmatpush1.bf16.msra.mxu0 0
        %3159 = vmatprep.mubr.bf16.mxu0 0
        %3160 = vmatmul.mubr.bf16.gmra.mrb[0].mxu0 %v3080
        %v3161 = vpop.f32.mrb[0].mxu0
        %v3162 = vadd.f32 0.0, %v3161
        %v3163 = vpop.f32.mrb[0].mxu0
        %v3164 = vpop.f32.mrb[0].mxu0
        %v3165 = vadd.f32 0.0, %v3164
        %v3166 = vpop.f32.mrb[0].mxu0
        %3167 = vmatprep.mubr.bf16.mxu0 0
        %3168 = vmatmul.mubr.bf16.gmra.mrb[0].mxu0 %v3083
        %v3169 = vpop.f32.mrb[0].mxu0
        %v3170 = vadd.f32 0.0, %v3169
        %v3171 = vpop.f32.mrb[0].mxu0
        %v3172 = vpop.f32.mrb[0].mxu0
        %v3173 = vadd.f32 0.0, %v3172
        %v3174 = vpop.f32.mrb[0].mxu0
        %3175 = vmatprep.mubr.bf16.mxu0 0
        %3176 = vmatmul.mubr.bf16.gmra.mrb[0].mxu0 %v3086
        %v3177 = vpop.f32.mrb[0].mxu0
        %v3178 = vadd.f32 0.0, %v3177
        %v3179 = vpop.f32.mrb[0].mxu0
        %v3180 = vpop.f32.mrb[0].mxu0
        %v3181 = vadd.f32 0.0, %v3180
        %v3182 = vpop.f32.mrb[0].mxu0
        %3183 = vmatprep.mubr.bf16.mxu0 0
        %3184 = vmatmul.mubr.bf16.gmra.mrb[0].mxu0 %v3089
        %v3185 = vpop.f32.mrb[0].mxu0
        %v3186 = vadd.f32 0.0, %v3185
        %v3187 = vpop.f32.mrb[0].mxu0
        %v3188 = vpop.f32.mrb[0].mxu0
        %v3189 = vadd.f32 0.0, %v3188
        %v3190 = vpop.f32.mrb[0].mxu0
        %3191 = vmatprep.mubr.bf16.mxu0 0
        %3192 = vmatmul.mubr.bf16.gmra.mrb[0].mxu0 %v3092
        %v3193 = vpop.f32.mrb[0].mxu0
        %v3194 = vadd.f32 0.0, %v3193
        %v3195 = vpop.f32.mrb[0].mxu0
        %v3196 = vpop.f32.mrb[0].mxu0
        %v3197 = vadd.f32 0.0, %v3196
        %v3198 = vpop.f32.mrb[0].mxu0
        %3199 = vmatprep.mubr.bf16.mxu0 0
        %3200 = vmatmul.mubr.bf16.gmra.mrb[0].mxu0 %v3095
        %v3201 = vpop.f32.mrb[0].mxu0
        %v3202 = vadd.f32 0.0, %v3201
        %v3203 = vpop.f32.mrb[0].mxu0
        %v3204 = vpop.f32.mrb[0].mxu0
        %v3205 = vadd.f32 0.0, %v3204
        %v3206 = vpop.f32.mrb[0].mxu0
        %3207 = vmatprep.mubr.bf16.mxu0 0
        %3208 = vmatmul.mubr.bf16.gmra.mrb[0].mxu0 %v3098
        %v3209 = vpop.f32.mrb[0].mxu0
        %v3210 = vadd.f32 0.0, %v3209
        %v3211 = vpop.f32.mrb[0].mxu0
        %v3212 = vpop.f32.mrb[0].mxu0
        %v3213 = vadd.f32 0.0, %v3212
        %v3214 = vpop.f32.mrb[0].mxu0
        %3215 = vmatprep.mubr.bf16.mxu0 0
        %3216 = vmatmul.mubr.bf16.gmra.mrb[0].mxu0 %v3101
        %v3217 = vpop.f32.mrb[0].mxu0
        %v3218 = vadd.f32 0.0, %v3217
        %v3219 = vpop.f32.mrb[0].mxu0
        %v3220 = vpop.f32.mrb[0].mxu0
        %v3221 = vadd.f32 0.0, %v3220
        %v3222 = vpop.f32.mrb[0].mxu0
        %3223 = vmatprep.mubr.bf16.mxu0 0
        %3224 = vmatmul.mubr.bf16.gmra.mrb[0].mxu0 %v3104
        %v3225 = vpop.f32.mrb[0].mxu0
        %v3226 = vadd.f32 0.0, %v3225
        %v3227 = vpop.f32.mrb[0].mxu0
        %v3228 = vpop.f32.mrb[0].mxu0
        %v3229 = vadd.f32 0.0, %v3228
        %v3230 = vpop.f32.mrb[0].mxu0
        %3231 = vmatprep.mubr.bf16.mxu0 0
        %3232 = vmatmul.mubr.bf16.gmra.mrb[0].mxu0 %v3107
        %v3233 = vpop.f32.mrb[0].mxu0
        %v3234 = vadd.f32 0.0, %v3233
        %v3235 = vpop.f32.mrb[0].mxu0
        %v3236 = vpop.f32.mrb[0].mxu0
        %v3237 = vadd.f32 0.0, %v3236
        %v3238 = vpop.f32.mrb[0].mxu0
        %3239 = vmatprep.mubr.bf16.mxu0 0
        %3240 = vmatmul.mubr.bf16.gmra.mrb[0].mxu0 %v3110
        %v3241 = vpop.f32.mrb[0].mxu0
        %v3242 = vadd.f32 0.0, %v3241
        %v3243 = vpop.f32.mrb[0].mxu0
        %v3244 = vpop.f32.mrb[0].mxu0
        %v3245 = vadd.f32 0.0, %v3244
        %v3246 = vpop.f32.mrb[0].mxu0
        %3247 = vmatprep.mubr.bf16.mxu0 0
        %3248 = vmatmul.mubr.bf16.gmra.mrb[0].mxu0 %v3113
        %v3249 = vpop.f32.mrb[0].mxu0
        %v3250 = vadd.f32 0.0, %v3249
        %v3251 = vpop.f32.mrb[0].mxu0
        %v3252 = vpop.f32.mrb[0].mxu0
        %v3253 = vadd.f32 0.0, %v3252
        %v3254 = vpop.f32.mrb[0].mxu0
        %3255 = vmatprep.mubr.bf16.mxu0 0
        %3256 = vmatmul.mubr.bf16.gmra.mrb[0].mxu0 %v3116
        %v3257 = vpop.f32.mrb[0].mxu0
        %v3258 = vadd.f32 0.0, %v3257
        %v3259 = vpop.f32.mrb[0].mxu0
        %v3260 = vpop.f32.mrb[0].mxu0
        %v3261 = vadd.f32 0.0, %v3260
        %v3262 = vpop.f32.mrb[0].mxu0
        %3263 = vmatprep.mubr.bf16.mxu0 0
        %3264 = vmatmul.mubr.bf16.gmra.mrb[0].mxu0 %v3119
        %v3265 = vpop.f32.mrb[0].mxu0
        %v3266 = vadd.f32 0.0, %v3265
        %v3267 = vpop.f32.mrb[0].mxu0
        %v3268 = vpop.f32.mrb[0].mxu0
        %v3269 = vadd.f32 0.0, %v3268
        %v3270 = vpop.f32.mrb[0].mxu0
        %3271 = vmatprep.mubr.bf16.mxu0 0
        %3272 = vmatmul.mubr.bf16.gmra.mrb[0].mxu0 %v3122
        %v3273 = vpop.f32.mrb[0].mxu0
        %v3274 = vadd.f32 0.0, %v3273
        %v3275 = vpop.f32.mrb[0].mxu0
        %v3276 = vpop.f32.mrb[0].mxu0
        %v3277 = vadd.f32 0.0, %v3276
        %v3278 = vpop.f32.mrb[0].mxu0
        %3279 = vmatprep.mubr.bf16.mxu0 0
        %3280 = vmatmul.mubr.bf16.gmra.mrb[0].mxu0 %v3125
        %v3281 = vpop.f32.mrb[0].mxu0
        %v3282 = vadd.f32 0.0, %v3281
        %v3283 = vpop.f32.mrb[0].mxu0
        %v3284 = vpop.f32.mrb[0].mxu0
        %v3285 = vadd.f32 0.0, %v3284
        %v3286 = vpop.f32.mrb[0].mxu0
        %3287 = vdwg.mxu0
        %v3292 = vunpack.c.l.b16 %v690
        %v3293 = vunpack.c.l.b16 %v691
        %v3294 = vunpack.c.l.b16 %v692
        %v3295 = vunpack.c.l.b16 %v693
        %v3296 = vpack.c.b16 %v3293, %v3292
        %v3297 = vpack.c.b16 %v3295, %v3294
        %v3301 = vsel %vm742, %v1843, 0
        %v3304 = vsel %vm742, %v1844, 0
        %v3307 = vsel %vm742, %v1845, 0
        %v3310 = vsel %vm742, %v1846, 0
        %v3313 = vsel %vm742, %v1847, 0
        %v3316 = vsel %vm742, %v1848, 0
        %v3319 = vsel %vm742, %v1849, 0
        %v3322 = vsel %vm742, %v1850, 0
        %v3325 = vsel %vm742, %v1851, 0
        %v3328 = vsel %vm742, %v1852, 0
        %v3331 = vsel %vm742, %v1853, 0
        %v3334 = vsel %vm742, %v1854, 0
        %v3337 = vsel %vm742, %v1855, 0
        %v3340 = vsel %vm742, %v1856, 0
        %v3343 = vsel %vm742, %v1857, 0
        %v3346 = vsel %vm742, %v1858, 0
        %3348 = vmatprep.subr.bf16.mxu0 0
        %3349 = vmatpush1.bf16.msra.mxu0 %v3296
        %3350 = vmatprep.subr.bf16.mxu0 0
        %3351 = vmatpush1.bf16.msra.mxu0 %v3297
        %3352 = vmatprep.subr.bf16.mxu0 0
        %3353 = vmatpush1.bf16.msra.mxu0 0
        %3354 = vmatprep.subr.bf16.mxu0 0
        %3355 = vmatpush1.bf16.msra.mxu0 0
        %3356 = vmatprep.subr.bf16.mxu0 0
        %3357 = vmatpush1.bf16.msra.mxu0 0
        %3358 = vmatprep.subr.bf16.mxu0 0
        %3359 = vmatpush1.bf16.msra.mxu0 0
        %3360 = vmatprep.subr.bf16.mxu0 0
        %3361 = vmatpush1.bf16.msra.mxu0 0
        %3362 = vmatprep.subr.bf16.mxu0 0
        %3363 = vmatpush1.bf16.msra.mxu0 0
        %3364 = vmatprep.subr.bf16.mxu0 0
        %3365 = vmatpush1.bf16.msra.mxu0 0
        %3366 = vmatprep.subr.bf16.mxu0 0
        %3367 = vmatpush1.bf16.msra.mxu0 0
        %3368 = vmatprep.subr.bf16.mxu0 0
        %3369 = vmatpush1.bf16.msra.mxu0 0
        %3370 = vmatprep.subr.bf16.mxu0 0
        %3371 = vmatpush1.bf16.msra.mxu0 0
        %3372 = vmatprep.subr.bf16.mxu0 0
        %3373 = vmatpush1.bf16.msra.mxu0 0
        %3374 = vmatprep.subr.bf16.mxu0 0
        %3375 = vmatpush1.bf16.msra.mxu0 0
        %3376 = vmatprep.subr.bf16.mxu0 0
        %3377 = vmatpush1.bf16.msra.mxu0 0
        %3378 = vmatprep.subr.bf16.mxu0 0
        %3379 = vmatpush1.bf16.msra.mxu0 0
        %3380 = vmatprep.mubr.bf16.mxu0 0
        %3381 = vmatmul.mubr.bf16.gmra.mrb[0].mxu0 %v3301
        %v3382 = vpop.f32.mrb[0].mxu0
        %v3383 = vadd.f32 %v3162, %v3382
        %v3384 = vpop.f32.mrb[0].mxu0
        %v3385 = vpop.f32.mrb[0].mxu0
        %v3386 = vadd.f32 %v3165, %v3385
        %v3387 = vpop.f32.mrb[0].mxu0
        %3388 = vmatprep.mubr.bf16.mxu0 0
        %3389 = vmatmul.mubr.bf16.gmra.mrb[0].mxu0 %v3304
        %v3390 = vpop.f32.mrb[0].mxu0
        %v3391 = vadd.f32 %v3170, %v3390
        %v3392 = vpop.f32.mrb[0].mxu0
        %v3393 = vpop.f32.mrb[0].mxu0
        %v3394 = vadd.f32 %v3173, %v3393
        %v3395 = vpop.f32.mrb[0].mxu0
        %3396 = vmatprep.mubr.bf16.mxu0 0
        %3397 = vmatmul.mubr.bf16.gmra.mrb[0].mxu0 %v3307
        %v3398 = vpop.f32.mrb[0].mxu0
        %v3399 = vadd.f32 %v3178, %v3398
        %v3400 = vpop.f32.mrb[0].mxu0
        %v3401 = vpop.f32.mrb[0].mxu0
        %v3402 = vadd.f32 %v3181, %v3401
        %v3403 = vpop.f32.mrb[0].mxu0
        %3404 = vmatprep.mubr.bf16.mxu0 0
        %3405 = vmatmul.mubr.bf16.gmra.mrb[0].mxu0 %v3310
        %v3406 = vpop.f32.mrb[0].mxu0
        %v3407 = vadd.f32 %v3186, %v3406
        %v3408 = vpop.f32.mrb[0].mxu0
        %v3409 = vpop.f32.mrb[0].mxu0
        %v3410 = vadd.f32 %v3189, %v3409
        %v3411 = vpop.f32.mrb[0].mxu0
        %3412 = vmatprep.mubr.bf16.mxu0 0
        %3413 = vmatmul.mubr.bf16.gmra.mrb[0].mxu0 %v3313
        %v3414 = vpop.f32.mrb[0].mxu0
        %v3415 = vadd.f32 %v3194, %v3414
        %v3416 = vpop.f32.mrb[0].mxu0
        %v3417 = vpop.f32.mrb[0].mxu0
        %v3418 = vadd.f32 %v3197, %v3417
        %v3419 = vpop.f32.mrb[0].mxu0
        %3420 = vmatprep.mubr.bf16.mxu0 0
        %3421 = vmatmul.mubr.bf16.gmra.mrb[0].mxu0 %v3316
        %v3422 = vpop.f32.mrb[0].mxu0
        %v3423 = vadd.f32 %v3202, %v3422
        %v3424 = vpop.f32.mrb[0].mxu0
        %v3425 = vpop.f32.mrb[0].mxu0
        %v3426 = vadd.f32 %v3205, %v3425
        %v3427 = vpop.f32.mrb[0].mxu0
        %3428 = vmatprep.mubr.bf16.mxu0 0
        %3429 = vmatmul.mubr.bf16.gmra.mrb[0].mxu0 %v3319
        %v3430 = vpop.f32.mrb[0].mxu0
        %v3431 = vadd.f32 %v3210, %v3430
        %v3432 = vpop.f32.mrb[0].mxu0
        %v3433 = vpop.f32.mrb[0].mxu0
        %v3434 = vadd.f32 %v3213, %v3433
        %v3435 = vpop.f32.mrb[0].mxu0
        %3436 = vmatprep.mubr.bf16.mxu0 0
        %3437 = vmatmul.mubr.bf16.gmra.mrb[0].mxu0 %v3322
        %v3438 = vpop.f32.mrb[0].mxu0
        %v3439 = vadd.f32 %v3218, %v3438
        %v3440 = vpop.f32.mrb[0].mxu0
        %v3441 = vpop.f32.mrb[0].mxu0
        %v3442 = vadd.f32 %v3221, %v3441
        %v3443 = vpop.f32.mrb[0].mxu0
        %3444 = vmatprep.mubr.bf16.mxu0 0
        %3445 = vmatmul.mubr.bf16.gmra.mrb[0].mxu0 %v3325
        %v3446 = vpop.f32.mrb[0].mxu0
        %v3447 = vadd.f32 %v3226, %v3446
        %v3448 = vpop.f32.mrb[0].mxu0
        %v3449 = vpop.f32.mrb[0].mxu0
        %v3450 = vadd.f32 %v3229, %v3449
        %v3451 = vpop.f32.mrb[0].mxu0
        %3452 = vmatprep.mubr.bf16.mxu0 0
        %3453 = vmatmul.mubr.bf16.gmra.mrb[0].mxu0 %v3328
        %v3454 = vpop.f32.mrb[0].mxu0
        %v3455 = vadd.f32 %v3234, %v3454
        %v3456 = vpop.f32.mrb[0].mxu0
        %v3457 = vpop.f32.mrb[0].mxu0
        %v3458 = vadd.f32 %v3237, %v3457
        %v3459 = vpop.f32.mrb[0].mxu0
        %3460 = vmatprep.mubr.bf16.mxu0 0
        %3461 = vmatmul.mubr.bf16.gmra.mrb[0].mxu0 %v3331
        %v3462 = vpop.f32.mrb[0].mxu0
        %v3463 = vadd.f32 %v3242, %v3462
        %v3464 = vpop.f32.mrb[0].mxu0
        %v3465 = vpop.f32.mrb[0].mxu0
        %v3466 = vadd.f32 %v3245, %v3465
        %v3467 = vpop.f32.mrb[0].mxu0
        %3468 = vmatprep.mubr.bf16.mxu0 0
        %3469 = vmatmul.mubr.bf16.gmra.mrb[0].mxu0 %v3334
        %v3470 = vpop.f32.mrb[0].mxu0
        %v3471 = vadd.f32 %v3250, %v3470
        %v3472 = vpop.f32.mrb[0].mxu0
        %v3473 = vpop.f32.mrb[0].mxu0
        %v3474 = vadd.f32 %v3253, %v3473
        %v3475 = vpop.f32.mrb[0].mxu0
        %3476 = vmatprep.mubr.bf16.mxu0 0
        %3477 = vmatmul.mubr.bf16.gmra.mrb[0].mxu0 %v3337
        %v3478 = vpop.f32.mrb[0].mxu0
        %v3479 = vadd.f32 %v3258, %v3478
        %v3480 = vpop.f32.mrb[0].mxu0
        %v3481 = vpop.f32.mrb[0].mxu0
        %v3482 = vadd.f32 %v3261, %v3481
        %v3483 = vpop.f32.mrb[0].mxu0
        %3484 = vmatprep.mubr.bf16.mxu0 0
        %3485 = vmatmul.mubr.bf16.gmra.mrb[0].mxu0 %v3340
        %v3486 = vpop.f32.mrb[0].mxu0
        %v3487 = vadd.f32 %v3266, %v3486
        %v3488 = vpop.f32.mrb[0].mxu0
        %v3489 = vpop.f32.mrb[0].mxu0
        %v3490 = vadd.f32 %v3269, %v3489
        %v3491 = vpop.f32.mrb[0].mxu0
        %3492 = vmatprep.mubr.bf16.mxu0 0
        %3493 = vmatmul.mubr.bf16.gmra.mrb[0].mxu0 %v3343
        %v3494 = vpop.f32.mrb[0].mxu0
        %v3495 = vadd.f32 %v3274, %v3494
        %v3496 = vpop.f32.mrb[0].mxu0
        %v3497 = vpop.f32.mrb[0].mxu0
        %v3498 = vadd.f32 %v3277, %v3497
        %v3499 = vpop.f32.mrb[0].mxu0
        %3500 = vmatprep.mubr.bf16.mxu0 0
        %3501 = vmatmul.mubr.bf16.gmra.mrb[0].mxu0 %v3346
        %v3502 = vpop.f32.mrb[0].mxu0
        %v3503 = vadd.f32 %v3282, %v3502
        %v3504 = vpop.f32.mrb[0].mxu0
        %v3505 = vpop.f32.mrb[0].mxu0
        %v3506 = vadd.f32 %v3285, %v3505
        %v3507 = vpop.f32.mrb[0].mxu0
        %3508 = vdwg.mxu0
        %v3509 = vld [vmem:[%s4] sm:$0x1]
        %v3511 = vlaneseq
        %v3512 = vshrl.u32 %v3511, 7
        %v3513 = vsub.s32 0, %v3512
        %v3514 = vrot.slane %v3509, %v3513
        %v3516 = vadd.f32 %v3383, %v3514
        %v3517 = vadd.f32 %v3386, %v3514
        %v3518 = vadd.f32 %v3391, %v3514
        %v3519 = vadd.f32 %v3394, %v3514
        %v3520 = vadd.f32 %v3399, %v3514
        %v3521 = vadd.f32 %v3402, %v3514
        %v3522 = vadd.f32 %v3407, %v3514
        %v3523 = vadd.f32 %v3410, %v3514
        %v3524 = vadd.f32 %v3415, %v3514
        %v3525 = vadd.f32 %v3418, %v3514
        %v3526 = vadd.f32 %v3423, %v3514
        %v3527 = vadd.f32 %v3426, %v3514
        %v3528 = vadd.f32 %v3431, %v3514
        %v3529 = vadd.f32 %v3434, %v3514
        %v3530 = vadd.f32 %v3439, %v3514
        %v3531 = vadd.f32 %v3442, %v3514
        %v3532 = vadd.f32 %v3447, %v3514
        %v3533 = vadd.f32 %v3450, %v3514
        %v3534 = vadd.f32 %v3455, %v3514
        %v3535 = vadd.f32 %v3458, %v3514
        %v3536 = vadd.f32 %v3463, %v3514
        %v3537 = vadd.f32 %v3466, %v3514
        %v3538 = vadd.f32 %v3471, %v3514
        %v3539 = vadd.f32 %v3474, %v3514
        %v3540 = vadd.f32 %v3479, %v3514
        %v3541 = vadd.f32 %v3482, %v3514
        %v3542 = vadd.f32 %v3487, %v3514
        %v3543 = vadd.f32 %v3490, %v3514
        %v3544 = vadd.f32 %v3495, %v3514
        %v3545 = vadd.f32 %v3498, %v3514
        %v3546 = vadd.f32 %v3503, %v3514
        %v3547 = vadd.f32 %v3506, %v3514
        %3548 = vst.msk [vmem:[%s272] sm:$0xff] %vm448, %v3516
        %3549 = vst.msk [vmem:[%s272 + $0x8] sm:$0xff] %vm448, %v3517
        %3550 = vst.msk [vmem:[%s272 + $0x10] sm:$0xff] %vm448, %v3518
        %3551 = vst.msk [vmem:[%s272 + $0x18] sm:$0xff] %vm448, %v3519
        %3552 = vst.msk [vmem:[%s272 + $0x20] sm:$0xff] %vm448, %v3520
        %3553 = vst.msk [vmem:[%s272 + $0x28] sm:$0xff] %vm448, %v3521
        %3554 = vst.msk [vmem:[%s272 + $0x30] sm:$0xff] %vm448, %v3522
        %3555 = vst.msk [vmem:[%s272 + $0x38] sm:$0xff] %vm448, %v3523
        %3556 = vst.msk [vmem:[%s272 + $0x40] sm:$0xff] %vm448, %v3524
        %3557 = vst.msk [vmem:[%s272 + $0x48] sm:$0xff] %vm448, %v3525
        %3558 = vst.msk [vmem:[%s272 + $0x50] sm:$0xff] %vm448, %v3526
        %3559 = vst.msk [vmem:[%s272 + $0x58] sm:$0xff] %vm448, %v3527
        %3560 = vst.msk [vmem:[%s272 + $0x60] sm:$0xff] %vm448, %v3528
        %3561 = vst.msk [vmem:[%s272 + $0x68] sm:$0xff] %vm448, %v3529
        %3562 = vst.msk [vmem:[%s272 + $0x70] sm:$0xff] %vm448, %v3530
        %3563 = vst.msk [vmem:[%s272 + $0x78] sm:$0xff] %vm448, %v3531
        %3564 = vst.msk [vmem:[%s272 + $0x80] sm:$0xff] %vm448, %v3532
        %3565 = vst.msk [vmem:[%s272 + $0x88] sm:$0xff] %vm448, %v3533
        %3566 = vst.msk [vmem:[%s272 + $0x90] sm:$0xff] %vm448, %v3534
        %3567 = vst.msk [vmem:[%s272 + $0x98] sm:$0xff] %vm448, %v3535
        %3568 = vst.msk [vmem:[%s272 + $0xa0] sm:$0xff] %vm448, %v3536
        %3569 = vst.msk [vmem:[%s272 + $0xa8] sm:$0xff] %vm448, %v3537
        %3570 = vst.msk [vmem:[%s272 + $0xb0] sm:$0xff] %vm448, %v3538
        %3571 = vst.msk [vmem:[%s272 + $0xb8] sm:$0xff] %vm448, %v3539
        %3572 = vst.msk [vmem:[%s272 + $0xc0] sm:$0xff] %vm448, %v3540
        %3573 = vst.msk [vmem:[%s272 + $0xc8] sm:$0xff] %vm448, %v3541
        %3574 = vst.msk [vmem:[%s272 + $0xd0] sm:$0xff] %vm448, %v3542
        %3575 = vst.msk [vmem:[%s272 + $0xd8] sm:$0xff] %vm448, %v3543
        %3576 = vst.msk [vmem:[%s272 + $0xe0] sm:$0xff] %vm448, %v3544
        %3577 = vst.msk [vmem:[%s272 + $0xe8] sm:$0xff] %vm448, %v3545
        %3578 = vst.msk [vmem:[%s272 + $0xf0] sm:$0xff] %vm448, %v3546
        %3579 = vst.msk [vmem:[%s272 + $0xf8] sm:$0xff] %vm448, %v3547
        %s3580 = sand.u32 %s141, 1
        %s3581 = scalar_lea.sflag [#allocation4], %s3580
        %s3582 = sand.u32 %s141, 1
        %s3583 = smul.addr %s3582, 256
        %s3584 = scalar_lea.vmem [#allocation8], %s3583
        // Predicated region
        $region53: #{tpu_custom_call.1} parent=39 // pred_check
          %p3585 = pneg %p151
        $region54: #{tpu_custom_call.1} parent=39 // pred_check_branch
          %3587 = sbr.rel (%p3585) target = $region56
        $region55: #{tpu_custom_call.1} parent=39 // pred_region
          %s3588 = smul.u32 4, %s23
          %s3590 = ssub.s32 4096, 4096
          %3591 = vsyncadd %s3581, %s3590
          %s3592 = smul.addr %s3588, 8
          %s3593 = smul.addr %s3592, 128
          %s3594 = scalar_lea.hbm %s5, %s3593
          %s3595 = sshll.u32 %s3584, 4
          %s3596 = int_to_ptr.vmem [resolvable:$true] %s3595
          %3601 = dma.vmem_to_hbm [thread:$0]  %s3596, 4096, %s3594, %s3581, 128, 128, 8
        $region56: #{tpu_custom_call.1} parent=39 // pred_fallthru
          _
      $region40: #{tpu_custom_call.1} parent=5 // pred_fallthru
        _
      %p3602 = scmp.le.s32.totalorder 2, %s18
      // Predicated region
      $region57: #{tpu_custom_call.1} parent=5 // pred_check
        %p3603 = pneg %p3602
      $region58: #{tpu_custom_call.1} parent=5 // pred_check_branch
        %3605 = sbr.rel (%p3603) target = $region60
      $region59: #{tpu_custom_call.1} parent=5 // pred_region
        %s3606 = ssub.s32 %s18, 2
        // Predicated region
        $region61: #{tpu_custom_call.1} parent=59 // pred_check
          %p3607 = pneg %p157
        $region62: #{tpu_custom_call.1} parent=59 // pred_check_branch
          %3609 = sbr.rel (%p3607) target = $region64
        $region63: #{tpu_custom_call.1} parent=59 // pred_region
          %s3610 = sand.u32 %s142, 1
          %s3611 = scalar_lea.sflag [#allocation4], %s3610
          %s3612 = sand.u32 %s142, 1
          %s3613 = smul.addr %s3612, 256
          %s3614 = scalar_lea.vmem [#allocation8], %s3613
          %3615 = dma.done %s3611, 4096
        $region64: #{tpu_custom_call.1} parent=59 // pred_fallthru
          _
      $region60: #{tpu_custom_call.1} parent=5 // pred_fallthru
        _
    $region6: #{tpu_custom_call.1} parent=1 // loop_footer
      %s22 = sadd.s32 1, %s18
    $region7: #{tpu_custom_call.1} parent=1 // loop_footer_branch
      %17 = sbr.rel target = $region3
    $region8: #{tpu_custom_call.1} parent=1 // loop_exit
      _
    %3616 = vsyncpa [#allocation3], 1
    %s3617 = scalar_lea.sflag [#allocation3], 1
    %3618 = vsyncpa %s3617, 1
    %3619 = vsyncpa [#allocation6], 1
    %3620 = vsyncpa [#allocation4], 1
    %s3621 = scalar_lea.sflag [#allocation4], 1
    %3622 = vsyncpa %s3621, 1

</llo_original>
